<compile_context>
chip_gen: v5e
topology: v5e:2x2
jax: 0.10.0
libtpu: 0.0.40
codegen_flags: <defaults>
</compile_context>

<pallas_src>
import functools

import numpy as np
import jax
import jax.numpy as jnp
from jax.experimental import pallas as pl
from jax.experimental.pallas import tpu as pltpu


def _round_up(x, m):
    return (x + m - 1) // m * m


# --------------------------------------------------------------------------
# Static gating selection matrices (precomputed on host, deduped per config)
# --------------------------------------------------------------------------
def _build_gate_consts(expert_units, n_task_experts, n_shared_experts):
    consts = []     # list of np.float32 arrays
    index = {}      # key -> position in consts

    def get_s(e_tot, off, e_part, h):
        key = ("S", e_tot, off, e_part, h)
        if key not in index:
            col = np.arange(e_part * h) // h + off          # expert id per column
            row = np.arange(e_tot)[:, None]
            index[key] = len(consts)
            consts.append((row == col[None, :]).astype(np.float32))
        return index[key]

    def get_r(e_part, h):
        key = ("R", e_part, h)
        if key not in index:
            m = np.arange(e_part * h) % h
            k = np.arange(h)
            index[key] = len(consts)
            consts.append((m[:, None] == k[None, :]).astype(np.float32))
        return index[key]

    num_cgc = len(expert_units)
    num_tasks = len(n_task_experts[0])
    plans = []                                              # plans[i][g] = [(e_part, s_idx, r_idx)]
    for i in range(num_cgc):
        h = expert_units[i]
        need_r = (h % 128 != 0)                             # big h -> lane-slice sum instead
        n_gates = num_tasks + 1 if i < num_cgc - 1 else num_tasks
        layer_plans = []
        for g in range(n_gates):
            if g < num_tasks:
                part_counts = [n_task_experts[i][g], n_shared_experts[i]]
            else:
                part_counts = list(n_task_experts[i]) + [n_shared_experts[i]]
            e_tot = sum(part_counts)
            parts, off = [], 0
            for e_part in part_counts:
                s_idx = get_s(e_tot, off, e_part, h)
                r_idx = get_r(e_part, h) if need_r else -1
                parts.append((e_part, s_idx, r_idx))
                off += e_part
            layer_plans.append(parts)
        plans.append(layer_plans)
    return consts, plans


# --------------------------------------------------------------------------
# Fused PLE kernel (generated per static config)
# --------------------------------------------------------------------------
def _make_ple_kernel(expert_units, n_task_experts, n_shared_experts,
                     task_hidden_units, gate_plans, n_consts, out_dims, out_pad):
    num_cgc = len(expert_units)
    num_tasks = len(task_hidden_units)

    def kernel(x_ref, *rest):
        out_ref = rest[-1]
        const_refs = rest[len(rest) - 1 - n_consts: len(rest) - 1]
        wit = iter(rest[: len(rest) - 1 - n_consts])

        x = x_ref[...]                                      # (TB, in_dim) f32

        def dense(xin, w_ref):                              # bf16 MXU, f32 acc
            return jnp.dot(xin.astype(jnp.bfloat16), w_ref[...],
                           preferred_element_type=jnp.float32)

        def dense_bias_relu(xin, w_ref, b_ref):
            return jnp.maximum(dense(xin, w_ref) + b_ref[...], 0.0)

        def softmax(logits):                                # f32, EUP reciprocal
            logits = logits - jnp.max(logits, axis=-1, keepdims=True)
            p = jnp.exp(logits)
            return p * pl.reciprocal(jnp.sum(p, axis=-1, keepdims=True),
                                     approx=True)

        def gate_mix(gates, y_parts, h, plan):
            # out[b,:] = sum_e gates[b,e] * expert_e[b,:], experts laid out as
            # lane-concatenated parts (task experts first, then shared).
            out = None
            for y_part, (e_part, s_idx, r_idx) in zip(y_parts, plan):
                s_mat = const_refs[s_idx][...]              # (E_tot, e_part*h) 0/1
                g_exp = jnp.dot(gates.astype(jnp.bfloat16), s_mat,
                                preferred_element_type=jnp.float32)
                z = y_part * g_exp
                if r_idx < 0:
                    # h % 128 == 0: lane-aligned slice sum on the VPU.
                    contrib = z[:, 0:h]
                    for e in range(1, e_part):
                        contrib = contrib + z[:, e * h:(e + 1) * h]
                else:
                    r_mat = const_refs[r_idx][...]          # (e_part*h, h) 0/1
                    contrib = jnp.dot(z.astype(jnp.bfloat16), r_mat,
                                      preferred_element_type=jnp.float32)
                out = contrib if out is None else out + contrib
            return out

        # ---------------- CGC layer 0 (merged expert bank + merged gate logits) ----
        h0 = expert_units[0]
        n_sh0 = n_shared_experts[0]
        w_ref = next(wit); b_ref = next(wit)
        y0 = dense_bias_relu(x, w_ref, b_ref)               # (TB, (ΣEt+Es)*h0)
        task_exp, off = [], 0
        for j in range(num_tasks):
            w = n_task_experts[0][j] * h0
            task_exp.append(y0[:, off:off + w]); off += w
        shared_exp = y0[:, off:off + n_sh0 * h0]

        wg_ref = next(wit)
        logits_all = dense(x, wg_ref)                       # all layer-0 gates at once
        n_gates0 = num_tasks + 1 if num_cgc > 1 else num_tasks
        gate_widths0 = []
        for g in range(n_gates0):
            if g < num_tasks:
                gate_widths0.append(n_task_experts[0][g] + n_sh0)
            else:
                gate_widths0.append(sum(n_task_experts[0]) + n_sh0)
        gates0, goff = [], 0
        for w in gate_widths0:
            gates0.append(softmax(logits_all[:, goff:goff + w])); goff += w

        task_outs = [gate_mix(gates0[j], [task_exp[j], shared_exp], h0,
                              gate_plans[0][j]) for j in range(num_tasks)]
        shared_out = None
        if num_cgc > 1:
            shared_out = gate_mix(gates0[-1], task_exp + [shared_exp], h0,
                                  gate_plans[0][-1])

        # ---------------- CGC layers 1 .. num_cgc-1 ----------------
        for i in range(1, num_cgc):
            h = expert_units[i]
            shared_in = shared_out
            task_ins = list(task_outs)

            ws_ref = next(wit); bs_ref = next(wit)
            shared_exp = dense_bias_relu(shared_in, ws_ref, bs_ref)
            task_exp = []
            for j in range(num_tasks):
                wt_ref = next(wit); bt_ref = next(wit)
                task_exp.append(dense_bias_relu(task_ins[j], wt_ref, bt_ref))

            new_task_outs = []
            for j in range(num_tasks):
                wg_ref = next(wit)
                gates = softmax(dense(task_ins[j], wg_ref))
                new_task_outs.append(gate_mix(gates, [task_exp[j], shared_exp],
                                              h, gate_plans[i][j]))
            if i < num_cgc - 1:
                wg_ref = next(wit)
                gates = softmax(dense(shared_in, wg_ref))
                shared_out = gate_mix(gates, task_exp + [shared_exp], h,
                                      gate_plans[i][-1])
            task_outs = new_task_outs

        # ---------------- Task towers (apply_final_act=True) ----------------
        results = []
        for t in range(num_tasks):
            ht = task_outs[t]
            for _ in task_hidden_units[t]:
                w_ref = next(wit); b_ref = next(wit)
                ht = dense_bias_relu(ht, w_ref, b_ref)
            results.append(ht)

        # One lane-dense padded output slab (split per task in the wrapper).
        tb = x.shape[0]
        total = sum(out_dims)
        pieces = [r.astype(jnp.float32) for r in results]
        if out_pad > total:
            pieces.append(jnp.zeros((tb, out_pad - total), jnp.float32))
        out_ref[...] = jnp.concatenate(pieces, axis=-1)

    return kernel


# --------------------------------------------------------------------------
# Wrapper: one pallas_call for the whole PLE forward
# --------------------------------------------------------------------------
def ple_forward(params, x, *, expert_units, n_task_experts, n_shared_experts,
                task_hidden_units, single_buffer_weights=True):
    num_cgc = len(expert_units)
    num_tasks = len(task_hidden_units)
    B, in_dim = x.shape

    # Batch tile heuristic: >=2 tiles once batch is large (v7x 2-TC megacore),
    # 256-wide M tiles for big batches (v6e 256x256 MXU); tiny batches -> 1 tile.
    bp8 = _round_up(B, 8)
    if bp8 >= 512:
        tb = 256
    elif bp8 >= 256:
        tb = 128
    else:
        tb = bp8
    bp = _round_up(B, tb)
    xp = jnp.pad(x, ((0, bp - B), (0, 0))) if bp != B else x
    nb = bp // tb

    wdt = jnp.bfloat16
    flat = [xp]
    in_specs = [pl.BlockSpec((tb, in_dim), lambda i: (i, 0))]

    const_kwargs = {}
    if single_buffer_weights:
        # Constant-index blocks never re-DMA; single-buffer to halve weight VMEM.
        const_kwargs["pipeline_mode"] = pl.Buffered(1)

    def add_const_input(arr):
        flat.append(arr)
        in_specs.append(pl.BlockSpec(arr.shape, lambda i: (0, 0), **const_kwargs))

    # ---- layer 0: merged expert bank (tasks then shared) + merged gate logits ----
    w0 = jnp.concatenate(
        [params["task_experts"][0][j]["W"] for j in range(num_tasks)]
        + [params["shared_experts"][0]["W"]], axis=1).astype(wdt)
    b0 = jnp.concatenate(
        [params["task_experts"][0][j]["b"] for j in range(num_tasks)]
        + [params["shared_experts"][0]["b"]], axis=1)
    wg0 = jnp.concatenate(params["gates"][0], axis=1).astype(wdt)
    add_const_input(w0); add_const_input(b0); add_const_input(wg0)

    # ---- later CGC layers (inputs differ per bank -> kept separate) ----
    for i in range(1, num_cgc):
        add_const_input(params["shared_experts"][i]["W"].astype(wdt))
        add_const_input(params["shared_experts"][i]["b"])
        for j in range(num_tasks):
            add_const_input(params["task_experts"][i][j]["W"].astype(wdt))
            add_const_input(params["task_experts"][i][j]["b"])
        for wg in params["gates"][i]:
            add_const_input(wg.astype(wdt))

    # ---- tower weights ----
    for t in range(num_tasks):
        for layer in params["task_layers"][t]:
            add_const_input(layer["W"].astype(wdt))
            add_const_input(layer["b"])

    # ---- static gating selection constants ----
    consts_np, gate_plans = _build_gate_consts(expert_units, n_task_experts,
                                               n_shared_experts)
    n_consts = len(consts_np)
    for c in consts_np:
        add_const_input(jnp.asarray(c, dtype=wdt))

    # ---- single lane-dense output slab ----
    out_dims = [units[-1] for units in task_hidden_units]
    total = sum(out_dims)
    out_pad = max(128, _round_up(total, 128))
    out_shape = jax.ShapeDtypeStruct((bp, out_pad), jnp.float32)
    out_specs = pl.BlockSpec((tb, out_pad), lambda i: (i, 0))

    kernel = _make_ple_kernel(expert_units, n_task_experts, n_shared_experts,
                              task_hidden_units, gate_plans, n_consts,
                              out_dims, out_pad)

    in_bytes = sum(int(a.size) * a.dtype.itemsize for a in flat)
    out_bytes = bp * out_pad * 4
    vmem_limit = int(min(64 << 20, max(32 << 20, 2 * (in_bytes + out_bytes) + (8 << 20))))

    out = pl.pallas_call(
        kernel,
        out_shape=out_shape,
        grid=(nb,),
        in_specs=in_specs,
        out_specs=out_specs,
        compiler_params=pltpu.CompilerParams(
            dimension_semantics=("parallel",),
            vmem_limit_bytes=vmem_limit),
    )(*flat)

    outs, off = [], 0
    for d in out_dims:
        outs.append(out[:B, off:off + d])
        off += d
    return outs


# --------------------------------------------------------------------------
# Parameter initialization (deterministic, Xavier-normal-like)
# Weights stored in MERGED layout: (D_in, E*H) so each expert bank is one matmul.
# --------------------------------------------------------------------------
def _xavier(key, shape, fan_in, fan_out):
    std = (2.0 / (fan_in + fan_out)) ** 0.5
    return std * jax.random.normal(key, shape, jnp.float32)


def init_ple_params(key, in_shape, expert_units, n_task_experts,
                    n_shared_experts, task_hidden_units):
    num_cgc = len(expert_units)
    num_tasks = len(task_hidden_units)
    keys = iter(jax.random.split(key, 256))
    params = {"task_experts": [], "shared_experts": [], "gates": [], "task_layers": []}

    for i in range(num_cgc):
        input_dim = in_shape if i == 0 else expert_units[i - 1]
        h = expert_units[i]

        task_exp_i = []
        for n_exp in n_task_experts[i]:
            task_exp_i.append({
                "W": _xavier(next(keys), (input_dim, n_exp * h), input_dim, h),
                "b": jnp.zeros((1, n_exp * h), jnp.float32),
            })
        params["task_experts"].append(task_exp_i)

        n_sh = n_shared_experts[i]
        params["shared_experts"].append({
            "W": _xavier(next(keys), (input_dim, n_sh * h), input_dim, h),
            "b": jnp.zeros((1, n_sh * h), jnp.float32),
        })

        n_gates = num_tasks + 1 if i < num_cgc - 1 else num_tasks
        gates_i = []
        for j in range(n_gates):
            if j < num_tasks:
                tot = n_task_experts[i][j] + n_shared_experts[i]
            else:
                tot = sum(n_task_experts[i]) + n_shared_experts[i]
            gates_i.append(_xavier(next(keys), (input_dim, tot), input_dim, tot))
        params["gates"].append(gates_i)

    for units in task_hidden_units:
        layers = []
        d = expert_units[-1]
        for u in units:
            layers.append({
                "W": _xavier(next(keys), (d, u), d, u),
                "b": jnp.zeros((1, u), jnp.float32),
            })
            d = u
        params["task_layers"].append(layers)
    return params


# --------------------------------------------------------------------------
# Pure-JAX f32 reference (for correctness check)
# --------------------------------------------------------------------------
def ple_reference(params, inputs, expert_units, n_task_experts, n_shared_experts,
                  task_hidden_units):
    num_cgc = len(expert_units)
    num_tasks = len(task_hidden_units)
    bsz = inputs.shape[0]

    def pdnn(x, w_m, b_m, n_e, h):
        y = jax.nn.relu(x @ w_m + b_m)
        return y.reshape(bsz, n_e, h)

    def gate(experts, gate_in, wg):
        g = jax.nn.softmax(gate_in @ wg, axis=-1)
        return jnp.einsum("beh,be->bh", experts, g)

    task_outs = [None] * num_tasks
    shared_out = inputs
    for i in range(num_cgc):
        h = expert_units[i]
        n_sh = n_shared_experts[i]
        shared_in = shared_out
        se = pdnn(shared_in, params["shared_experts"][i]["W"],
                  params["shared_experts"][i]["b"], n_sh, h)
        tmp = []
        for j in range(num_tasks):
            tin = inputs if i == 0 else task_outs[j]
            te = pdnn(tin, params["task_experts"][i][j]["W"],
                      params["task_experts"][i][j]["b"], n_task_experts[i][j], h)
            tmp.append(te)
            comb = jnp.concatenate([te, se], axis=1)
            task_outs[j] = gate(comb, tin, params["gates"][i][j])
        if i < num_cgc - 1:
            comb_all = jnp.concatenate(tmp + [se], axis=1)
            shared_out = gate(comb_all, shared_in, params["gates"][i][-1])

    outs = []
    for t in range(num_tasks):
        ht = task_outs[t]
        for layer in params["task_layers"][t]:
            ht = jax.nn.relu(ht @ layer["W"] + layer["b"])
        outs.append(ht)
    return outs


# --------------------------------------------------------------------------
if __name__ == "__main__":
    batch = 8
    in_shape = 32
    expert_units = [32, 16]            # 2 CGC layers
    n_task_experts = [[2, 3], [2, 3]]  # per-layer, per-task expert counts
    n_shared_experts = [2, 2]
    task_hidden_units = [[16, 8], [16]]

    key = jax.random.PRNGKey(0)
    kx, kp = jax.random.split(key)
    x = jax.random.normal(kx, (batch, in_shape), jnp.float32)
    params = init_ple_params(kp, in_shape, expert_units, n_task_experts,
                             n_shared_experts, task_hidden_units)

    def make_fwd(sbw):
        return jax.jit(functools.partial(
            ple_forward,
            expert_units=expert_units,
            n_task_experts=n_task_experts,
            n_shared_experts=n_shared_experts,
            task_hidden_units=task_hidden_units,
            single_buffer_weights=sbw))

    outs = None
    for sbw in (True, False):
        try:
            fwd = make_fwd(sbw)
            outs = [jax.block_until_ready(o) for o in fwd(params, x)]
            break
        except Exception:
            # Fallback: this JAX build rejects pl.Buffered(1) single-buffering of
            # the resident weight blocks; rerun with default double-buffering.
            if not sbw:
                raise

    refs = ple_reference(params, x, expert_units, n_task_experts,
                         n_shared_experts, task_hidden_units)
    for o, r in zip(outs, refs):
        assert o.shape == r.shape, (o.shape, r.shape)
        # bf16 matmuls with f32 accumulation vs f32 reference -> loose tolerance.
        rel = float(jnp.max(jnp.abs(o - r) / (1.0 + jnp.abs(r))))
        assert rel < 8e-2, rel

    print("KERNEL_OK")
</pallas_src>

<mosaic_0001>
module attributes {stable_mosaic.version = 11 : i64} {
  func.func @kernel(%arg0: i32, %arg1: memref<8x32xf32, #tpu.memory_space<vmem>>, %arg2: memref<32x224xbf16, #tpu.memory_space<vmem>>, %arg3: memref<1x224xf32, #tpu.memory_space<vmem>>, %arg4: memref<32x16xbf16, #tpu.memory_space<vmem>>, %arg5: memref<32x32xbf16, #tpu.memory_space<vmem>>, %arg6: memref<1x32xf32, #tpu.memory_space<vmem>>, %arg7: memref<32x32xbf16, #tpu.memory_space<vmem>>, %arg8: memref<1x32xf32, #tpu.memory_space<vmem>>, %arg9: memref<32x48xbf16, #tpu.memory_space<vmem>>, %arg10: memref<1x48xf32, #tpu.memory_space<vmem>>, %arg11: memref<32x4xbf16, #tpu.memory_space<vmem>>, %arg12: memref<32x5xbf16, #tpu.memory_space<vmem>>, %arg13: memref<16x16xbf16, #tpu.memory_space<vmem>>, %arg14: memref<1x16xf32, #tpu.memory_space<vmem>>, %arg15: memref<16x8xbf16, #tpu.memory_space<vmem>>, %arg16: memref<1x8xf32, #tpu.memory_space<vmem>>, %arg17: memref<16x16xbf16, #tpu.memory_space<vmem>>, %arg18: memref<1x16xf32, #tpu.memory_space<vmem>>, %arg19: memref<4x64xbf16, #tpu.memory_space<vmem>>, %arg20: memref<64x32xbf16, #tpu.memory_space<vmem>>, %arg21: memref<4x64xbf16, #tpu.memory_space<vmem>>, %arg22: memref<5x96xbf16, #tpu.memory_space<vmem>>, %arg23: memref<96x32xbf16, #tpu.memory_space<vmem>>, %arg24: memref<5x64xbf16, #tpu.memory_space<vmem>>, %arg25: memref<7x64xbf16, #tpu.memory_space<vmem>>, %arg26: memref<7x96xbf16, #tpu.memory_space<vmem>>, %arg27: memref<7x64xbf16, #tpu.memory_space<vmem>>, %arg28: memref<4x32xbf16, #tpu.memory_space<vmem>>, %arg29: memref<32x16xbf16, #tpu.memory_space<vmem>>, %arg30: memref<4x32xbf16, #tpu.memory_space<vmem>>, %arg31: memref<5x48xbf16, #tpu.memory_space<vmem>>, %arg32: memref<48x16xbf16, #tpu.memory_space<vmem>>, %arg33: memref<5x32xbf16, #tpu.memory_space<vmem>>, %arg34: memref<8x128xf32, #tpu.memory_space<vmem>>) attributes {dimension_semantics = [#tpu.dimension_semantics<parallel>], iteration_bounds = array<i64: 1>, scalar_prefetch = 0 : i64, scratch_operands = 0 : i64, tpu.core_type = #tpu.core_type<tc>, window_params = [{transform_indices = @transform_0, window_bounds = array<i64: 8, 32>}, {pipeline_mode = #tpu.pipeline_mode<synchronous>, transform_indices = @transform_1, window_bounds = array<i64: 32, 224>}, {pipeline_mode = #tpu.pipeline_mode<synchronous>, transform_indices = @transform_2, window_bounds = array<i64: 1, 224>}, {pipeline_mode = #tpu.pipeline_mode<synchronous>, transform_indices = @transform_3, window_bounds = array<i64: 32, 16>}, {pipeline_mode = #tpu.pipeline_mode<synchronous>, transform_indices = @transform_4, window_bounds = array<i64: 32, 32>}, {pipeline_mode = #tpu.pipeline_mode<synchronous>, transform_indices = @transform_5, window_bounds = array<i64: 1, 32>}, {pipeline_mode = #tpu.pipeline_mode<synchronous>, transform_indices = @transform_6, window_bounds = array<i64: 32, 32>}, {pipeline_mode = #tpu.pipeline_mode<synchronous>, transform_indices = @transform_7, window_bounds = array<i64: 1, 32>}, {pipeline_mode = #tpu.pipeline_mode<synchronous>, transform_indices = @transform_8, window_bounds = array<i64: 32, 48>}, {pipeline_mode = #tpu.pipeline_mode<synchronous>, transform_indices = @transform_9, window_bounds = array<i64: 1, 48>}, {pipeline_mode = #tpu.pipeline_mode<synchronous>, transform_indices = @transform_10, window_bounds = array<i64: 32, 4>}, {pipeline_mode = #tpu.pipeline_mode<synchronous>, transform_indices = @transform_11, window_bounds = array<i64: 32, 5>}, {pipeline_mode = #tpu.pipeline_mode<synchronous>, transform_indices = @transform_12, window_bounds = array<i64: 16, 16>}, {pipeline_mode = #tpu.pipeline_mode<synchronous>, transform_indices = @transform_13, window_bounds = array<i64: 1, 16>}, {pipeline_mode = #tpu.pipeline_mode<synchronous>, transform_indices = @transform_14, window_bounds = array<i64: 16, 8>}, {pipeline_mode = #tpu.pipeline_mode<synchronous>, transform_indices = @transform_15, window_bounds = array<i64: 1, 8>}, {pipeline_mode = #tpu.pipeline_mode<synchronous>, transform_indices = @transform_16, window_bounds = array<i64: 16, 16>}, {pipeline_mode = #tpu.pipeline_mode<synchronous>, transform_indices = @transform_17, window_bounds = array<i64: 1, 16>}, {pipeline_mode = #tpu.pipeline_mode<synchronous>, transform_indices = @transform_18, window_bounds = array<i64: 4, 64>}, {pipeline_mode = #tpu.pipeline_mode<synchronous>, transform_indices = @transform_19, window_bounds = array<i64: 64, 32>}, {pipeline_mode = #tpu.pipeline_mode<synchronous>, transform_indices = @transform_20, window_bounds = array<i64: 4, 64>}, {pipeline_mode = #tpu.pipeline_mode<synchronous>, transform_indices = @transform_21, window_bounds = array<i64: 5, 96>}, {pipeline_mode = #tpu.pipeline_mode<synchronous>, transform_indices = @transform_22, window_bounds = array<i64: 96, 32>}, {pipeline_mode = #tpu.pipeline_mode<synchronous>, transform_indices = @transform_23, window_bounds = array<i64: 5, 64>}, {pipeline_mode = #tpu.pipeline_mode<synchronous>, transform_indices = @transform_24, window_bounds = array<i64: 7, 64>}, {pipeline_mode = #tpu.pipeline_mode<synchronous>, transform_indices = @transform_25, window_bounds = array<i64: 7, 96>}, {pipeline_mode = #tpu.pipeline_mode<synchronous>, transform_indices = @transform_26, window_bounds = array<i64: 7, 64>}, {pipeline_mode = #tpu.pipeline_mode<synchronous>, transform_indices = @transform_27, window_bounds = array<i64: 4, 32>}, {pipeline_mode = #tpu.pipeline_mode<synchronous>, transform_indices = @transform_28, window_bounds = array<i64: 32, 16>}, {pipeline_mode = #tpu.pipeline_mode<synchronous>, transform_indices = @transform_29, window_bounds = array<i64: 4, 32>}, {pipeline_mode = #tpu.pipeline_mode<synchronous>, transform_indices = @transform_30, window_bounds = array<i64: 5, 48>}, {pipeline_mode = #tpu.pipeline_mode<synchronous>, transform_indices = @transform_31, window_bounds = array<i64: 48, 16>}, {pipeline_mode = #tpu.pipeline_mode<synchronous>, transform_indices = @transform_32, window_bounds = array<i64: 5, 32>}, {transform_indices = @transform_33, window_bounds = array<i64: 8, 128>}]} {
    %c0 = arith.constant 0 : index
    %c0_0 = arith.constant 0 : index
    %0 = vector.load %arg1[%c0, %c0_0] : memref<8x32xf32, #tpu.memory_space<vmem>>, vector<8x32xf32>
    %1 = arith.truncf %0 : vector<8x32xf32> to vector<8x32xbf16>
    %c0_1 = arith.constant 0 : index
    %c0_2 = arith.constant 0 : index
    %2 = vector.load %arg2[%c0_1, %c0_2] : memref<32x224xbf16, #tpu.memory_space<vmem>>, vector<32x224xbf16>
    %cst = arith.constant dense<0.000000e+00> : vector<8x224xf32>
    %3 = tpu.matmul %1, %2, %cst {dimension_numbers = #tpu.dot_dimension_numbers<[1], [0], [0], [1], [0, 0, 1, 1], [], []>} : vector<8x32xbf16>, vector<32x224xbf16>, vector<8x224xf32> -> vector<8x224xf32>
    %c0_3 = arith.constant 0 : index
    %c0_4 = arith.constant 0 : index
    %4 = vector.load %arg3[%c0_3, %c0_4] : memref<1x224xf32, #tpu.memory_space<vmem>>, vector<1x224xf32>
    %5 = vector.broadcast %4 : vector<1x224xf32> to vector<8x224xf32>
    %6 = arith.addf %3, %5 : vector<8x224xf32>
    %cst_5 = arith.constant 0.000000e+00 : f32
    %7 = vector.broadcast %cst_5 : f32 to vector<8x224xf32>
    %8 = arith.maximumf %6, %7 : vector<8x224xf32>
    %9 = vector.extract_strided_slice %8 {offsets = [0, 0], sizes = [8, 64], strides = [1, 1]} : vector<8x224xf32> to vector<8x64xf32>
    %10 = vector.extract_strided_slice %8 {offsets = [0, 64], sizes = [8, 96], strides = [1, 1]} : vector<8x224xf32> to vector<8x96xf32>
    %11 = vector.extract_strided_slice %8 {offsets = [0, 160], sizes = [8, 64], strides = [1, 1]} : vector<8x224xf32> to vector<8x64xf32>
    %12 = arith.truncf %0 : vector<8x32xf32> to vector<8x32xbf16>
    %c0_6 = arith.constant 0 : index
    %c0_7 = arith.constant 0 : index
    %13 = vector.load %arg4[%c0_6, %c0_7] : memref<32x16xbf16, #tpu.memory_space<vmem>>, vector<32x16xbf16>
    %cst_8 = arith.constant dense<0.000000e+00> : vector<8x16xf32>
    %14 = tpu.matmul %12, %13, %cst_8 {dimension_numbers = #tpu.dot_dimension_numbers<[1], [0], [0], [1], [0, 0, 1, 1], [], []>} : vector<8x32xbf16>, vector<32x16xbf16>, vector<8x16xf32> -> vector<8x16xf32>
    %15 = vector.extract_strided_slice %14 {offsets = [0, 0], sizes = [8, 4], strides = [1, 1]} : vector<8x16xf32> to vector<8x4xf32>
    %cst_9 = arith.constant dense<0xFF800000> : vector<8xf32>
    %16 = vector.multi_reduction <maximumf>, %15, %cst_9 [1] : vector<8x4xf32> to vector<8xf32>
    %17 = vector.shape_cast %16 : vector<8xf32> to vector<8x1xf32>
    %18 = vector.broadcast %17 : vector<8x1xf32> to vector<8x4xf32>
    %19 = arith.subf %15, %18 : vector<8x4xf32>
    %20 = math.exp %19 : vector<8x4xf32>
    %cst_10 = arith.constant dense<0.000000e+00> : vector<8xf32>
    %21 = vector.multi_reduction <add>, %20, %cst_10 [1] : vector<8x4xf32> to vector<8xf32>
    %22 = vector.shape_cast %21 : vector<8xf32> to vector<8x1xf32>
    %23 = tpu.reciprocal %22 {approx = true} : vector<8x1xf32> -> vector<8x1xf32>
    %24 = vector.broadcast %23 : vector<8x1xf32> to vector<8x4xf32>
    %25 = arith.mulf %20, %24 : vector<8x4xf32>
    %26 = vector.extract_strided_slice %14 {offsets = [0, 4], sizes = [8, 5], strides = [1, 1]} : vector<8x16xf32> to vector<8x5xf32>
    %cst_11 = arith.constant dense<0xFF800000> : vector<8xf32>
    %27 = vector.multi_reduction <maximumf>, %26, %cst_11 [1] : vector<8x5xf32> to vector<8xf32>
    %28 = vector.shape_cast %27 : vector<8xf32> to vector<8x1xf32>
    %29 = vector.broadcast %28 : vector<8x1xf32> to vector<8x5xf32>
    %30 = arith.subf %26, %29 : vector<8x5xf32>
    %31 = math.exp %30 : vector<8x5xf32>
    %cst_12 = arith.constant dense<0.000000e+00> : vector<8xf32>
    %32 = vector.multi_reduction <add>, %31, %cst_12 [1] : vector<8x5xf32> to vector<8xf32>
    %33 = vector.shape_cast %32 : vector<8xf32> to vector<8x1xf32>
    %34 = tpu.reciprocal %33 {approx = true} : vector<8x1xf32> -> vector<8x1xf32>
    %35 = vector.broadcast %34 : vector<8x1xf32> to vector<8x5xf32>
    %36 = arith.mulf %31, %35 : vector<8x5xf32>
    %37 = vector.extract_strided_slice %14 {offsets = [0, 9], sizes = [8, 7], strides = [1, 1]} : vector<8x16xf32> to vector<8x7xf32>
    %cst_13 = arith.constant dense<0xFF800000> : vector<8xf32>
    %38 = vector.multi_reduction <maximumf>, %37, %cst_13 [1] : vector<8x7xf32> to vector<8xf32>
    %39 = vector.shape_cast %38 : vector<8xf32> to vector<8x1xf32>
    %40 = vector.broadcast %39 : vector<8x1xf32> to vector<8x7xf32>
    %41 = arith.subf %37, %40 : vector<8x7xf32>
    %42 = math.exp %41 : vector<8x7xf32>
    %cst_14 = arith.constant dense<0.000000e+00> : vector<8xf32>
    %43 = vector.multi_reduction <add>, %42, %cst_14 [1] : vector<8x7xf32> to vector<8xf32>
    %44 = vector.shape_cast %43 : vector<8xf32> to vector<8x1xf32>
    %45 = tpu.reciprocal %44 {approx = true} : vector<8x1xf32> -> vector<8x1xf32>
    %46 = vector.broadcast %45 : vector<8x1xf32> to vector<8x7xf32>
    %47 = arith.mulf %42, %46 : vector<8x7xf32>
    %c0_15 = arith.constant 0 : index
    %c0_16 = arith.constant 0 : index
    %48 = vector.load %arg19[%c0_15, %c0_16] : memref<4x64xbf16, #tpu.memory_space<vmem>>, vector<4x64xbf16>
    %49 = arith.truncf %25 : vector<8x4xf32> to vector<8x4xbf16>
    %cst_17 = arith.constant dense<0.000000e+00> : vector<8x64xf32>
    %50 = tpu.matmul %49, %48, %cst_17 {dimension_numbers = #tpu.dot_dimension_numbers<[1], [0], [0], [1], [0, 0, 1, 1], [], []>} : vector<8x4xbf16>, vector<4x64xbf16>, vector<8x64xf32> -> vector<8x64xf32>
    %51 = arith.mulf %9, %50 : vector<8x64xf32>
    %c0_18 = arith.constant 0 : index
    %c0_19 = arith.constant 0 : index
    %52 = vector.load %arg20[%c0_18, %c0_19] : memref<64x32xbf16, #tpu.memory_space<vmem>>, vector<64x32xbf16>
    %53 = arith.truncf %51 : vector<8x64xf32> to vector<8x64xbf16>
    %cst_20 = arith.constant dense<0.000000e+00> : vector<8x32xf32>
    %54 = tpu.matmul %53, %52, %cst_20 {dimension_numbers = #tpu.dot_dimension_numbers<[1], [0], [0], [1], [0, 0, 1, 1], [], []>} : vector<8x64xbf16>, vector<64x32xbf16>, vector<8x32xf32> -> vector<8x32xf32>
    %c0_21 = arith.constant 0 : index
    %c0_22 = arith.constant 0 : index
    %55 = vector.load %arg21[%c0_21, %c0_22] : memref<4x64xbf16, #tpu.memory_space<vmem>>, vector<4x64xbf16>
    %56 = arith.truncf %25 : vector<8x4xf32> to vector<8x4xbf16>
    %cst_23 = arith.constant dense<0.000000e+00> : vector<8x64xf32>
    %57 = tpu.matmul %56, %55, %cst_23 {dimension_numbers = #tpu.dot_dimension_numbers<[1], [0], [0], [1], [0, 0, 1, 1], [], []>} : vector<8x4xbf16>, vector<4x64xbf16>, vector<8x64xf32> -> vector<8x64xf32>
    %58 = arith.mulf %11, %57 : vector<8x64xf32>
    %c0_24 = arith.constant 0 : index
    %c0_25 = arith.constant 0 : index
    %59 = vector.load %arg20[%c0_24, %c0_25] : memref<64x32xbf16, #tpu.memory_space<vmem>>, vector<64x32xbf16>
    %60 = arith.truncf %58 : vector<8x64xf32> to vector<8x64xbf16>
    %cst_26 = arith.constant dense<0.000000e+00> : vector<8x32xf32>
    %61 = tpu.matmul %60, %59, %cst_26 {dimension_numbers = #tpu.dot_dimension_numbers<[1], [0], [0], [1], [0, 0, 1, 1], [], []>} : vector<8x64xbf16>, vector<64x32xbf16>, vector<8x32xf32> -> vector<8x32xf32>
    %62 = arith.addf %54, %61 : vector<8x32xf32>
    %c0_27 = arith.constant 0 : index
    %c0_28 = arith.constant 0 : index
    %63 = vector.load %arg22[%c0_27, %c0_28] : memref<5x96xbf16, #tpu.memory_space<vmem>>, vector<5x96xbf16>
    %64 = arith.truncf %36 : vector<8x5xf32> to vector<8x5xbf16>
    %cst_29 = arith.constant dense<0.000000e+00> : vector<8x96xf32>
    %65 = tpu.matmul %64, %63, %cst_29 {dimension_numbers = #tpu.dot_dimension_numbers<[1], [0], [0], [1], [0, 0, 1, 1], [], []>} : vector<8x5xbf16>, vector<5x96xbf16>, vector<8x96xf32> -> vector<8x96xf32>
    %66 = arith.mulf %10, %65 : vector<8x96xf32>
    %c0_30 = arith.constant 0 : index
    %c0_31 = arith.constant 0 : index
    %67 = vector.load %arg23[%c0_30, %c0_31] : memref<96x32xbf16, #tpu.memory_space<vmem>>, vector<96x32xbf16>
    %68 = arith.truncf %66 : vector<8x96xf32> to vector<8x96xbf16>
    %cst_32 = arith.constant dense<0.000000e+00> : vector<8x32xf32>
    %69 = tpu.matmul %68, %67, %cst_32 {dimension_numbers = #tpu.dot_dimension_numbers<[1], [0], [0], [1], [0, 0, 1, 1], [], []>} : vector<8x96xbf16>, vector<96x32xbf16>, vector<8x32xf32> -> vector<8x32xf32>
    %c0_33 = arith.constant 0 : index
    %c0_34 = arith.constant 0 : index
    %70 = vector.load %arg24[%c0_33, %c0_34] : memref<5x64xbf16, #tpu.memory_space<vmem>>, vector<5x64xbf16>
    %71 = arith.truncf %36 : vector<8x5xf32> to vector<8x5xbf16>
    %cst_35 = arith.constant dense<0.000000e+00> : vector<8x64xf32>
    %72 = tpu.matmul %71, %70, %cst_35 {dimension_numbers = #tpu.dot_dimension_numbers<[1], [0], [0], [1], [0, 0, 1, 1], [], []>} : vector<8x5xbf16>, vector<5x64xbf16>, vector<8x64xf32> -> vector<8x64xf32>
    %73 = arith.mulf %11, %72 : vector<8x64xf32>
    %c0_36 = arith.constant 0 : index
    %c0_37 = arith.constant 0 : index
    %74 = vector.load %arg20[%c0_36, %c0_37] : memref<64x32xbf16, #tpu.memory_space<vmem>>, vector<64x32xbf16>
    %75 = arith.truncf %73 : vector<8x64xf32> to vector<8x64xbf16>
    %cst_38 = arith.constant dense<0.000000e+00> : vector<8x32xf32>
    %76 = tpu.matmul %75, %74, %cst_38 {dimension_numbers = #tpu.dot_dimension_numbers<[1], [0], [0], [1], [0, 0, 1, 1], [], []>} : vector<8x64xbf16>, vector<64x32xbf16>, vector<8x32xf32> -> vector<8x32xf32>
    %77 = arith.addf %69, %76 : vector<8x32xf32>
    %c0_39 = arith.constant 0 : index
    %c0_40 = arith.constant 0 : index
    %78 = vector.load %arg25[%c0_39, %c0_40] : memref<7x64xbf16, #tpu.memory_space<vmem>>, vector<7x64xbf16>
    %79 = arith.truncf %47 : vector<8x7xf32> to vector<8x7xbf16>
    %cst_41 = arith.constant dense<0.000000e+00> : vector<8x64xf32>
    %80 = tpu.matmul %79, %78, %cst_41 {dimension_numbers = #tpu.dot_dimension_numbers<[1], [0], [0], [1], [0, 0, 1, 1], [], []>} : vector<8x7xbf16>, vector<7x64xbf16>, vector<8x64xf32> -> vector<8x64xf32>
    %81 = arith.mulf %9, %80 : vector<8x64xf32>
    %c0_42 = arith.constant 0 : index
    %c0_43 = arith.constant 0 : index
    %82 = vector.load %arg20[%c0_42, %c0_43] : memref<64x32xbf16, #tpu.memory_space<vmem>>, vector<64x32xbf16>
    %83 = arith.truncf %81 : vector<8x64xf32> to vector<8x64xbf16>
    %cst_44 = arith.constant dense<0.000000e+00> : vector<8x32xf32>
    %84 = tpu.matmul %83, %82, %cst_44 {dimension_numbers = #tpu.dot_dimension_numbers<[1], [0], [0], [1], [0, 0, 1, 1], [], []>} : vector<8x64xbf16>, vector<64x32xbf16>, vector<8x32xf32> -> vector<8x32xf32>
    %c0_45 = arith.constant 0 : index
    %c0_46 = arith.constant 0 : index
    %85 = vector.load %arg26[%c0_45, %c0_46] : memref<7x96xbf16, #tpu.memory_space<vmem>>, vector<7x96xbf16>
    %86 = arith.truncf %47 : vector<8x7xf32> to vector<8x7xbf16>
    %cst_47 = arith.constant dense<0.000000e+00> : vector<8x96xf32>
    %87 = tpu.matmul %86, %85, %cst_47 {dimension_numbers = #tpu.dot_dimension_numbers<[1], [0], [0], [1], [0, 0, 1, 1], [], []>} : vector<8x7xbf16>, vector<7x96xbf16>, vector<8x96xf32> -> vector<8x96xf32>
    %88 = arith.mulf %10, %87 : vector<8x96xf32>
    %c0_48 = arith.constant 0 : index
    %c0_49 = arith.constant 0 : index
    %89 = vector.load %arg23[%c0_48, %c0_49] : memref<96x32xbf16, #tpu.memory_space<vmem>>, vector<96x32xbf16>
    %90 = arith.truncf %88 : vector<8x96xf32> to vector<8x96xbf16>
    %cst_50 = arith.constant dense<0.000000e+00> : vector<8x32xf32>
    %91 = tpu.matmul %90, %89, %cst_50 {dimension_numbers = #tpu.dot_dimension_numbers<[1], [0], [0], [1], [0, 0, 1, 1], [], []>} : vector<8x96xbf16>, vector<96x32xbf16>, vector<8x32xf32> -> vector<8x32xf32>
    %92 = arith.addf %84, %91 : vector<8x32xf32>
    %c0_51 = arith.constant 0 : index
    %c0_52 = arith.constant 0 : index
    %93 = vector.load %arg27[%c0_51, %c0_52] : memref<7x64xbf16, #tpu.memory_space<vmem>>, vector<7x64xbf16>
    %94 = arith.truncf %47 : vector<8x7xf32> to vector<8x7xbf16>
    %cst_53 = arith.constant dense<0.000000e+00> : vector<8x64xf32>
    %95 = tpu.matmul %94, %93, %cst_53 {dimension_numbers = #tpu.dot_dimension_numbers<[1], [0], [0], [1], [0, 0, 1, 1], [], []>} : vector<8x7xbf16>, vector<7x64xbf16>, vector<8x64xf32> -> vector<8x64xf32>
    %96 = arith.mulf %11, %95 : vector<8x64xf32>
    %c0_54 = arith.constant 0 : index
    %c0_55 = arith.constant 0 : index
    %97 = vector.load %arg20[%c0_54, %c0_55] : memref<64x32xbf16, #tpu.memory_space<vmem>>, vector<64x32xbf16>
    %98 = arith.truncf %96 : vector<8x64xf32> to vector<8x64xbf16>
    %cst_56 = arith.constant dense<0.000000e+00> : vector<8x32xf32>
    %99 = tpu.matmul %98, %97, %cst_56 {dimension_numbers = #tpu.dot_dimension_numbers<[1], [0], [0], [1], [0, 0, 1, 1], [], []>} : vector<8x64xbf16>, vector<64x32xbf16>, vector<8x32xf32> -> vector<8x32xf32>
    %100 = arith.addf %92, %99 : vector<8x32xf32>
    %101 = arith.truncf %100 : vector<8x32xf32> to vector<8x32xbf16>
    %c0_57 = arith.constant 0 : index
    %c0_58 = arith.constant 0 : index
    %102 = vector.load %arg5[%c0_57, %c0_58] : memref<32x32xbf16, #tpu.memory_space<vmem>>, vector<32x32xbf16>
    %cst_59 = arith.constant dense<0.000000e+00> : vector<8x32xf32>
    %103 = tpu.matmul %101, %102, %cst_59 {dimension_numbers = #tpu.dot_dimension_numbers<[1], [0], [0], [1], [0, 0, 1, 1], [], []>} : vector<8x32xbf16>, vector<32x32xbf16>, vector<8x32xf32> -> vector<8x32xf32>
    %c0_60 = arith.constant 0 : index
    %c0_61 = arith.constant 0 : index
    %104 = vector.load %arg6[%c0_60, %c0_61] : memref<1x32xf32, #tpu.memory_space<vmem>>, vector<1x32xf32>
    %105 = vector.broadcast %104 : vector<1x32xf32> to vector<8x32xf32>
    %106 = arith.addf %103, %105 : vector<8x32xf32>
    %cst_62 = arith.constant 0.000000e+00 : f32
    %107 = vector.broadcast %cst_62 : f32 to vector<8x32xf32>
    %108 = arith.maximumf %106, %107 : vector<8x32xf32>
    %109 = arith.truncf %62 : vector<8x32xf32> to vector<8x32xbf16>
    %c0_63 = arith.constant 0 : index
    %c0_64 = arith.constant 0 : index
    %110 = vector.load %arg7[%c0_63, %c0_64] : memref<32x32xbf16, #tpu.memory_space<vmem>>, vector<32x32xbf16>
    %cst_65 = arith.constant dense<0.000000e+00> : vector<8x32xf32>
    %111 = tpu.matmul %109, %110, %cst_65 {dimension_numbers = #tpu.dot_dimension_numbers<[1], [0], [0], [1], [0, 0, 1, 1], [], []>} : vector<8x32xbf16>, vector<32x32xbf16>, vector<8x32xf32> -> vector<8x32xf32>
    %c0_66 = arith.constant 0 : index
    %c0_67 = arith.constant 0 : index
    %112 = vector.load %arg8[%c0_66, %c0_67] : memref<1x32xf32, #tpu.memory_space<vmem>>, vector<1x32xf32>
    %113 = vector.broadcast %112 : vector<1x32xf32> to vector<8x32xf32>
    %114 = arith.addf %111, %113 : vector<8x32xf32>
    %cst_68 = arith.constant 0.000000e+00 : f32
    %115 = vector.broadcast %cst_68 : f32 to vector<8x32xf32>
    %116 = arith.maximumf %114, %115 : vector<8x32xf32>
    %117 = arith.truncf %77 : vector<8x32xf32> to vector<8x32xbf16>
    %c0_69 = arith.constant 0 : index
    %c0_70 = arith.constant 0 : index
    %118 = vector.load %arg9[%c0_69, %c0_70] : memref<32x48xbf16, #tpu.memory_space<vmem>>, vector<32x48xbf16>
    %cst_71 = arith.constant dense<0.000000e+00> : vector<8x48xf32>
    %119 = tpu.matmul %117, %118, %cst_71 {dimension_numbers = #tpu.dot_dimension_numbers<[1], [0], [0], [1], [0, 0, 1, 1], [], []>} : vector<8x32xbf16>, vector<32x48xbf16>, vector<8x48xf32> -> vector<8x48xf32>
    %c0_72 = arith.constant 0 : index
    %c0_73 = arith.constant 0 : index
    %120 = vector.load %arg10[%c0_72, %c0_73] : memref<1x48xf32, #tpu.memory_space<vmem>>, vector<1x48xf32>
    %121 = vector.broadcast %120 : vector<1x48xf32> to vector<8x48xf32>
    %122 = arith.addf %119, %121 : vector<8x48xf32>
    %cst_74 = arith.constant 0.000000e+00 : f32
    %123 = vector.broadcast %cst_74 : f32 to vector<8x48xf32>
    %124 = arith.maximumf %122, %123 : vector<8x48xf32>
    %125 = arith.truncf %62 : vector<8x32xf32> to vector<8x32xbf16>
    %c0_75 = arith.constant 0 : index
    %c0_76 = arith.constant 0 : index
    %126 = vector.load %arg11[%c0_75, %c0_76] : memref<32x4xbf16, #tpu.memory_space<vmem>>, vector<32x4xbf16>
    %cst_77 = arith.constant dense<0.000000e+00> : vector<8x4xf32>
    %127 = tpu.matmul %125, %126, %cst_77 {dimension_numbers = #tpu.dot_dimension_numbers<[1], [0], [0], [1], [0, 0, 1, 1], [], []>} : vector<8x32xbf16>, vector<32x4xbf16>, vector<8x4xf32> -> vector<8x4xf32>
    %cst_78 = arith.constant dense<0xFF800000> : vector<8xf32>
    %128 = vector.multi_reduction <maximumf>, %127, %cst_78 [1] : vector<8x4xf32> to vector<8xf32>
    %129 = vector.shape_cast %128 : vector<8xf32> to vector<8x1xf32>
    %130 = vector.broadcast %129 : vector<8x1xf32> to vector<8x4xf32>
    %131 = arith.subf %127, %130 : vector<8x4xf32>
    %132 = math.exp %131 : vector<8x4xf32>
    %cst_79 = arith.constant dense<0.000000e+00> : vector<8xf32>
    %133 = vector.multi_reduction <add>, %132, %cst_79 [1] : vector<8x4xf32> to vector<8xf32>
    %134 = vector.shape_cast %133 : vector<8xf32> to vector<8x1xf32>
    %135 = tpu.reciprocal %134 {approx = true} : vector<8x1xf32> -> vector<8x1xf32>
    %136 = vector.broadcast %135 : vector<8x1xf32> to vector<8x4xf32>
    %137 = arith.mulf %132, %136 : vector<8x4xf32>
    %c0_80 = arith.constant 0 : index
    %c0_81 = arith.constant 0 : index
    %138 = vector.load %arg28[%c0_80, %c0_81] : memref<4x32xbf16, #tpu.memory_space<vmem>>, vector<4x32xbf16>
    %139 = arith.truncf %137 : vector<8x4xf32> to vector<8x4xbf16>
    %cst_82 = arith.constant dense<0.000000e+00> : vector<8x32xf32>
    %140 = tpu.matmul %139, %138, %cst_82 {dimension_numbers = #tpu.dot_dimension_numbers<[1], [0], [0], [1], [0, 0, 1, 1], [], []>} : vector<8x4xbf16>, vector<4x32xbf16>, vector<8x32xf32> -> vector<8x32xf32>
    %141 = arith.mulf %116, %140 : vector<8x32xf32>
    %c0_83 = arith.constant 0 : index
    %c0_84 = arith.constant 0 : index
    %142 = vector.load %arg29[%c0_83, %c0_84] : memref<32x16xbf16, #tpu.memory_space<vmem>>, vector<32x16xbf16>
    %143 = arith.truncf %141 : vector<8x32xf32> to vector<8x32xbf16>
    %cst_85 = arith.constant dense<0.000000e+00> : vector<8x16xf32>
    %144 = tpu.matmul %143, %142, %cst_85 {dimension_numbers = #tpu.dot_dimension_numbers<[1], [0], [0], [1], [0, 0, 1, 1], [], []>} : vector<8x32xbf16>, vector<32x16xbf16>, vector<8x16xf32> -> vector<8x16xf32>
    %c0_86 = arith.constant 0 : index
    %c0_87 = arith.constant 0 : index
    %145 = vector.load %arg30[%c0_86, %c0_87] : memref<4x32xbf16, #tpu.memory_space<vmem>>, vector<4x32xbf16>
    %146 = arith.truncf %137 : vector<8x4xf32> to vector<8x4xbf16>
    %cst_88 = arith.constant dense<0.000000e+00> : vector<8x32xf32>
    %147 = tpu.matmul %146, %145, %cst_88 {dimension_numbers = #tpu.dot_dimension_numbers<[1], [0], [0], [1], [0, 0, 1, 1], [], []>} : vector<8x4xbf16>, vector<4x32xbf16>, vector<8x32xf32> -> vector<8x32xf32>
    %148 = arith.mulf %108, %147 : vector<8x32xf32>
    %c0_89 = arith.constant 0 : index
    %c0_90 = arith.constant 0 : index
    %149 = vector.load %arg29[%c0_89, %c0_90] : memref<32x16xbf16, #tpu.memory_space<vmem>>, vector<32x16xbf16>
    %150 = arith.truncf %148 : vector<8x32xf32> to vector<8x32xbf16>
    %cst_91 = arith.constant dense<0.000000e+00> : vector<8x16xf32>
    %151 = tpu.matmul %150, %149, %cst_91 {dimension_numbers = #tpu.dot_dimension_numbers<[1], [0], [0], [1], [0, 0, 1, 1], [], []>} : vector<8x32xbf16>, vector<32x16xbf16>, vector<8x16xf32> -> vector<8x16xf32>
    %152 = arith.addf %144, %151 : vector<8x16xf32>
    %153 = arith.truncf %77 : vector<8x32xf32> to vector<8x32xbf16>
    %c0_92 = arith.constant 0 : index
    %c0_93 = arith.constant 0 : index
    %154 = vector.load %arg12[%c0_92, %c0_93] : memref<32x5xbf16, #tpu.memory_space<vmem>>, vector<32x5xbf16>
    %cst_94 = arith.constant dense<0.000000e+00> : vector<8x5xf32>
    %155 = tpu.matmul %153, %154, %cst_94 {dimension_numbers = #tpu.dot_dimension_numbers<[1], [0], [0], [1], [0, 0, 1, 1], [], []>} : vector<8x32xbf16>, vector<32x5xbf16>, vector<8x5xf32> -> vector<8x5xf32>
    %cst_95 = arith.constant dense<0xFF800000> : vector<8xf32>
    %156 = vector.multi_reduction <maximumf>, %155, %cst_95 [1] : vector<8x5xf32> to vector<8xf32>
    %157 = vector.shape_cast %156 : vector<8xf32> to vector<8x1xf32>
    %158 = vector.broadcast %157 : vector<8x1xf32> to vector<8x5xf32>
    %159 = arith.subf %155, %158 : vector<8x5xf32>
    %160 = math.exp %159 : vector<8x5xf32>
    %cst_96 = arith.constant dense<0.000000e+00> : vector<8xf32>
    %161 = vector.multi_reduction <add>, %160, %cst_96 [1] : vector<8x5xf32> to vector<8xf32>
    %162 = vector.shape_cast %161 : vector<8xf32> to vector<8x1xf32>
    %163 = tpu.reciprocal %162 {approx = true} : vector<8x1xf32> -> vector<8x1xf32>
    %164 = vector.broadcast %163 : vector<8x1xf32> to vector<8x5xf32>
    %165 = arith.mulf %160, %164 : vector<8x5xf32>
    %c0_97 = arith.constant 0 : index
    %c0_98 = arith.constant 0 : index
    %166 = vector.load %arg31[%c0_97, %c0_98] : memref<5x48xbf16, #tpu.memory_space<vmem>>, vector<5x48xbf16>
    %167 = arith.truncf %165 : vector<8x5xf32> to vector<8x5xbf16>
    %cst_99 = arith.constant dense<0.000000e+00> : vector<8x48xf32>
    %168 = tpu.matmul %167, %166, %cst_99 {dimension_numbers = #tpu.dot_dimension_numbers<[1], [0], [0], [1], [0, 0, 1, 1], [], []>} : vector<8x5xbf16>, vector<5x48xbf16>, vector<8x48xf32> -> vector<8x48xf32>
    %169 = arith.mulf %124, %168 : vector<8x48xf32>
    %c0_100 = arith.constant 0 : index
    %c0_101 = arith.constant 0 : index
    %170 = vector.load %arg32[%c0_100, %c0_101] : memref<48x16xbf16, #tpu.memory_space<vmem>>, vector<48x16xbf16>
    %171 = arith.truncf %169 : vector<8x48xf32> to vector<8x48xbf16>
    %cst_102 = arith.constant dense<0.000000e+00> : vector<8x16xf32>
    %172 = tpu.matmul %171, %170, %cst_102 {dimension_numbers = #tpu.dot_dimension_numbers<[1], [0], [0], [1], [0, 0, 1, 1], [], []>} : vector<8x48xbf16>, vector<48x16xbf16>, vector<8x16xf32> -> vector<8x16xf32>
    %c0_103 = arith.constant 0 : index
    %c0_104 = arith.constant 0 : index
    %173 = vector.load %arg33[%c0_103, %c0_104] : memref<5x32xbf16, #tpu.memory_space<vmem>>, vector<5x32xbf16>
    %174 = arith.truncf %165 : vector<8x5xf32> to vector<8x5xbf16>
    %cst_105 = arith.constant dense<0.000000e+00> : vector<8x32xf32>
    %175 = tpu.matmul %174, %173, %cst_105 {dimension_numbers = #tpu.dot_dimension_numbers<[1], [0], [0], [1], [0, 0, 1, 1], [], []>} : vector<8x5xbf16>, vector<5x32xbf16>, vector<8x32xf32> -> vector<8x32xf32>
    %176 = arith.mulf %108, %175 : vector<8x32xf32>
    %c0_106 = arith.constant 0 : index
    %c0_107 = arith.constant 0 : index
    %177 = vector.load %arg29[%c0_106, %c0_107] : memref<32x16xbf16, #tpu.memory_space<vmem>>, vector<32x16xbf16>
    %178 = arith.truncf %176 : vector<8x32xf32> to vector<8x32xbf16>
    %cst_108 = arith.constant dense<0.000000e+00> : vector<8x16xf32>
    %179 = tpu.matmul %178, %177, %cst_108 {dimension_numbers = #tpu.dot_dimension_numbers<[1], [0], [0], [1], [0, 0, 1, 1], [], []>} : vector<8x32xbf16>, vector<32x16xbf16>, vector<8x16xf32> -> vector<8x16xf32>
    %180 = arith.addf %172, %179 : vector<8x16xf32>
    %181 = arith.truncf %152 : vector<8x16xf32> to vector<8x16xbf16>
    %c0_109 = arith.constant 0 : index
    %c0_110 = arith.constant 0 : index
    %182 = vector.load %arg13[%c0_109, %c0_110] : memref<16x16xbf16, #tpu.memory_space<vmem>>, vector<16x16xbf16>
    %cst_111 = arith.constant dense<0.000000e+00> : vector<8x16xf32>
    %183 = tpu.matmul %181, %182, %cst_111 {dimension_numbers = #tpu.dot_dimension_numbers<[1], [0], [0], [1], [0, 0, 1, 1], [], []>} : vector<8x16xbf16>, vector<16x16xbf16>, vector<8x16xf32> -> vector<8x16xf32>
    %c0_112 = arith.constant 0 : index
    %c0_113 = arith.constant 0 : index
    %184 = vector.load %arg14[%c0_112, %c0_113] : memref<1x16xf32, #tpu.memory_space<vmem>>, vector<1x16xf32>
    %185 = vector.broadcast %184 : vector<1x16xf32> to vector<8x16xf32>
    %186 = arith.addf %183, %185 : vector<8x16xf32>
    %cst_114 = arith.constant 0.000000e+00 : f32
    %187 = vector.broadcast %cst_114 : f32 to vector<8x16xf32>
    %188 = arith.maximumf %186, %187 : vector<8x16xf32>
    %189 = arith.truncf %188 : vector<8x16xf32> to vector<8x16xbf16>
    %c0_115 = arith.constant 0 : index
    %c0_116 = arith.constant 0 : index
    %190 = vector.load %arg15[%c0_115, %c0_116] : memref<16x8xbf16, #tpu.memory_space<vmem>>, vector<16x8xbf16>
    %cst_117 = arith.constant dense<0.000000e+00> : vector<8x8xf32>
    %191 = tpu.matmul %189, %190, %cst_117 {dimension_numbers = #tpu.dot_dimension_numbers<[1], [0], [0], [1], [0, 0, 1, 1], [], []>} : vector<8x16xbf16>, vector<16x8xbf16>, vector<8x8xf32> -> vector<8x8xf32>
    %c0_118 = arith.constant 0 : index
    %c0_119 = arith.constant 0 : index
    %192 = vector.load %arg16[%c0_118, %c0_119] : memref<1x8xf32, #tpu.memory_space<vmem>>, vector<1x8xf32>
    %193 = vector.broadcast %192 : vector<1x8xf32> to vector<8x8xf32>
    %194 = arith.addf %191, %193 : vector<8x8xf32>
    %cst_120 = arith.constant 0.000000e+00 : f32
    %195 = vector.broadcast %cst_120 : f32 to vector<8x8xf32>
    %196 = arith.maximumf %194, %195 : vector<8x8xf32>
    %197 = arith.truncf %180 : vector<8x16xf32> to vector<8x16xbf16>
    %c0_121 = arith.constant 0 : index
    %c0_122 = arith.constant 0 : index
    %198 = vector.load %arg17[%c0_121, %c0_122] : memref<16x16xbf16, #tpu.memory_space<vmem>>, vector<16x16xbf16>
    %cst_123 = arith.constant dense<0.000000e+00> : vector<8x16xf32>
    %199 = tpu.matmul %197, %198, %cst_123 {dimension_numbers = #tpu.dot_dimension_numbers<[1], [0], [0], [1], [0, 0, 1, 1], [], []>} : vector<8x16xbf16>, vector<16x16xbf16>, vector<8x16xf32> -> vector<8x16xf32>
    %c0_124 = arith.constant 0 : index
    %c0_125 = arith.constant 0 : index
    %200 = vector.load %arg18[%c0_124, %c0_125] : memref<1x16xf32, #tpu.memory_space<vmem>>, vector<1x16xf32>
    %201 = vector.broadcast %200 : vector<1x16xf32> to vector<8x16xf32>
    %202 = arith.addf %199, %201 : vector<8x16xf32>
    %cst_126 = arith.constant 0.000000e+00 : f32
    %203 = vector.broadcast %cst_126 : f32 to vector<8x16xf32>
    %204 = arith.maximumf %202, %203 : vector<8x16xf32>
    %cst_127 = arith.constant 0.000000e+00 : f32
    %205 = vector.broadcast %cst_127 : f32 to vector<8x104xf32>
    %206 = tpu.concatenate %196, %204, %205 in 1 : vector<8x8xf32>, vector<8x16xf32>, vector<8x104xf32> -> vector<8x128xf32>
    %c0_128 = arith.constant 0 : index
    %c0_129 = arith.constant 0 : index
    %207 = vector.load %arg34[%c0_128, %c0_129] : memref<8x128xf32, #tpu.memory_space<vmem>>, vector<8x128xf32>
    tpu.vector_store %arg34[%c0_128, %c0_129], %206 {strides = array<i32>} : memref<8x128xf32, #tpu.memory_space<vmem>>, vector<8x128xf32>,
    return
  }
  func.func @transform_0(%arg0: i32) -> (i32, i32) {
    %c0_i32 = arith.constant 0 : i32
    %c0_i32_0 = arith.constant 0 : i32
    return %arg0, %c0_i32 : i32, i32
  }
  func.func @transform_1(%arg0: i32) -> (i32, i32) {
    %c0_i32 = arith.constant 0 : i32
    %c0_i32_0 = arith.constant 0 : i32
    %c0_i32_1 = arith.constant 0 : i32
    return %c0_i32, %c0_i32_0 : i32, i32
  }
  func.func @transform_2(%arg0: i32) -> (i32, i32) {
    %c0_i32 = arith.constant 0 : i32
    %c0_i32_0 = arith.constant 0 : i32
    %c0_i32_1 = arith.constant 0 : i32
    return %c0_i32, %c0_i32_0 : i32, i32
  }
  func.func @transform_3(%arg0: i32) -> (i32, i32) {
    %c0_i32 = arith.constant 0 : i32
    %c0_i32_0 = arith.constant 0 : i32
    %c0_i32_1 = arith.constant 0 : i32
    return %c0_i32, %c0_i32_0 : i32, i32
  }
  func.func @transform_4(%arg0: i32) -> (i32, i32) {
    %c0_i32 = arith.constant 0 : i32
    %c0_i32_0 = arith.constant 0 : i32
    %c0_i32_1 = arith.constant 0 : i32
    return %c0_i32, %c0_i32_0 : i32, i32
  }
  func.func @transform_5(%arg0: i32) -> (i32, i32) {
    %c0_i32 = arith.constant 0 : i32
    %c0_i32_0 = arith.constant 0 : i32
    %c0_i32_1 = arith.constant 0 : i32
    return %c0_i32, %c0_i32_0 : i32, i32
  }
  func.func @transform_6(%arg0: i32) -> (i32, i32) {
    %c0_i32 = arith.constant 0 : i32
    %c0_i32_0 = arith.constant 0 : i32
    %c0_i32_1 = arith.constant 0 : i32
    return %c0_i32, %c0_i32_0 : i32, i32
  }
  func.func @transform_7(%arg0: i32) -> (i32, i32) {
    %c0_i32 = arith.constant 0 : i32
    %c0_i32_0 = arith.constant 0 : i32
    %c0_i32_1 = arith.constant 0 : i32
    return %c0_i32, %c0_i32_0 : i32, i32
  }
  func.func @transform_8(%arg0: i32) -> (i32, i32) {
    %c0_i32 = arith.constant 0 : i32
    %c0_i32_0 = arith.constant 0 : i32
    %c0_i32_1 = arith.constant 0 : i32
    return %c0_i32, %c0_i32_0 : i32, i32
  }
  func.func @transform_9(%arg0: i32) -> (i32, i32) {
    %c0_i32 = arith.constant 0 : i32
    %c0_i32_0 = arith.constant 0 : i32
    %c0_i32_1 = arith.constant 0 : i32
    return %c0_i32, %c0_i32_0 : i32, i32
  }
  func.func @transform_10(%arg0: i32) -> (i32, i32) {
    %c0_i32 = arith.constant 0 : i32
    %c0_i32_0 = arith.constant 0 : i32
    %c0_i32_1 = arith.constant 0 : i32
    return %c0_i32, %c0_i32_0 : i32, i32
  }
  func.func @transform_11(%arg0: i32) -> (i32, i32) {
    %c0_i32 = arith.constant 0 : i32
    %c0_i32_0 = arith.constant 0 : i32
    %c0_i32_1 = arith.constant 0 : i32
    return %c0_i32, %c0_i32_0 : i32, i32
  }
  func.func @transform_12(%arg0: i32) -> (i32, i32) {
    %c0_i32 = arith.constant 0 : i32
    %c0_i32_0 = arith.constant 0 : i32
    %c0_i32_1 = arith.constant 0 : i32
    return %c0_i32, %c0_i32_0 : i32, i32
  }
  func.func @transform_13(%arg0: i32) -> (i32, i32) {
    %c0_i32 = arith.constant 0 : i32
    %c0_i32_0 = arith.constant 0 : i32
    %c0_i32_1 = arith.constant 0 : i32
    return %c0_i32, %c0_i32_0 : i32, i32
  }
  func.func @transform_14(%arg0: i32) -> (i32, i32) {
    %c0_i32 = arith.constant 0 : i32
    %c0_i32_0 = arith.constant 0 : i32
    %c0_i32_1 = arith.constant 0 : i32
    return %c0_i32, %c0_i32_0 : i32, i32
  }
  func.func @transform_15(%arg0: i32) -> (i32, i32) {
    %c0_i32 = arith.constant 0 : i32
    %c0_i32_0 = arith.constant 0 : i32
    %c0_i32_1 = arith.constant 0 : i32
    return %c0_i32, %c0_i32_0 : i32, i32
  }
  func.func @transform_16(%arg0: i32) -> (i32, i32) {
    %c0_i32 = arith.constant 0 : i32
    %c0_i32_0 = arith.constant 0 : i32
    %c0_i32_1 = arith.constant 0 : i32
    return %c0_i32, %c0_i32_0 : i32, i32
  }
  func.func @transform_17(%arg0: i32) -> (i32, i32) {
    %c0_i32 = arith.constant 0 : i32
    %c0_i32_0 = arith.constant 0 : i32
    %c0_i32_1 = arith.constant 0 : i32
    return %c0_i32, %c0_i32_0 : i32, i32
  }
  func.func @transform_18(%arg0: i32) -> (i32, i32) {
    %c0_i32 = arith.constant 0 : i32
    %c0_i32_0 = arith.constant 0 : i32
    %c0_i32_1 = arith.constant 0 : i32
    return %c0_i32, %c0_i32_0 : i32, i32
  }
  func.func @transform_19(%arg0: i32) -> (i32, i32) {
    %c0_i32 = arith.constant 0 : i32
    %c0_i32_0 = arith.constant 0 : i32
    %c0_i32_1 = arith.constant 0 : i32
    return %c0_i32, %c0_i32_0 : i32, i32
  }
  func.func @transform_20(%arg0: i32) -> (i32, i32) {
    %c0_i32 = arith.constant 0 : i32
    %c0_i32_0 = arith.constant 0 : i32
    %c0_i32_1 = arith.constant 0 : i32
    return %c0_i32, %c0_i32_0 : i32, i32
  }
  func.func @transform_21(%arg0: i32) -> (i32, i32) {
    %c0_i32 = arith.constant 0 : i32
    %c0_i32_0 = arith.constant 0 : i32
    %c0_i32_1 = arith.constant 0 : i32
    return %c0_i32, %c0_i32_0 : i32, i32
  }
  func.func @transform_22(%arg0: i32) -> (i32, i32) {
    %c0_i32 = arith.constant 0 : i32
    %c0_i32_0 = arith.constant 0 : i32
    %c0_i32_1 = arith.constant 0 : i32
    return %c0_i32, %c0_i32_0 : i32, i32
  }
  func.func @transform_23(%arg0: i32) -> (i32, i32) {
    %c0_i32 = arith.constant 0 : i32
    %c0_i32_0 = arith.constant 0 : i32
    %c0_i32_1 = arith.constant 0 : i32
    return %c0_i32, %c0_i32_0 : i32, i32
  }
  func.func @transform_24(%arg0: i32) -> (i32, i32) {
    %c0_i32 = arith.constant 0 : i32
    %c0_i32_0 = arith.constant 0 : i32
    %c0_i32_1 = arith.constant 0 : i32
    return %c0_i32, %c0_i32_0 : i32, i32
  }
  func.func @transform_25(%arg0: i32) -> (i32, i32) {
    %c0_i32 = arith.constant 0 : i32
    %c0_i32_0 = arith.constant 0 : i32
    %c0_i32_1 = arith.constant 0 : i32
    return %c0_i32, %c0_i32_0 : i32, i32
  }
  func.func @transform_26(%arg0: i32) -> (i32, i32) {
    %c0_i32 = arith.constant 0 : i32
    %c0_i32_0 = arith.constant 0 : i32
    %c0_i32_1 = arith.constant 0 : i32
    return %c0_i32, %c0_i32_0 : i32, i32
  }
  func.func @transform_27(%arg0: i32) -> (i32, i32) {
    %c0_i32 = arith.constant 0 : i32
    %c0_i32_0 = arith.constant 0 : i32
    %c0_i32_1 = arith.constant 0 : i32
    return %c0_i32, %c0_i32_0 : i32, i32
  }
  func.func @transform_28(%arg0: i32) -> (i32, i32) {
    %c0_i32 = arith.constant 0 : i32
    %c0_i32_0 = arith.constant 0 : i32
    %c0_i32_1 = arith.constant 0 : i32
    return %c0_i32, %c0_i32_0 : i32, i32
  }
  func.func @transform_29(%arg0: i32) -> (i32, i32) {
    %c0_i32 = arith.constant 0 : i32
    %c0_i32_0 = arith.constant 0 : i32
    %c0_i32_1 = arith.constant 0 : i32
    return %c0_i32, %c0_i32_0 : i32, i32
  }
  func.func @transform_30(%arg0: i32) -> (i32, i32) {
    %c0_i32 = arith.constant 0 : i32
    %c0_i32_0 = arith.constant 0 : i32
    %c0_i32_1 = arith.constant 0 : i32
    return %c0_i32, %c0_i32_0 : i32, i32
  }
  func.func @transform_31(%arg0: i32) -> (i32, i32) {
    %c0_i32 = arith.constant 0 : i32
    %c0_i32_0 = arith.constant 0 : i32
    %c0_i32_1 = arith.constant 0 : i32
    return %c0_i32, %c0_i32_0 : i32, i32
  }
  func.func @transform_32(%arg0: i32) -> (i32, i32) {
    %c0_i32 = arith.constant 0 : i32
    %c0_i32_0 = arith.constant 0 : i32
    %c0_i32_1 = arith.constant 0 : i32
    return %c0_i32, %c0_i32_0 : i32, i32
  }
  func.func @transform_33(%arg0: i32) -> (i32, i32) {
    %c0_i32 = arith.constant 0 : i32
    %c0_i32_0 = arith.constant 0 : i32
    return %arg0, %c0_i32 : i32, i32
  }
}

module attributes {stable_mosaic.version = 11 : i64} {
  func.func @kernel(%arg0: i32, %arg1: memref<8x32xf32, #tpu.memory_space<vmem>>, %arg2: memref<32x224xbf16, #tpu.memory_space<vmem>>, %arg3: memref<1x224xf32, #tpu.memory_space<vmem>>, %arg4: memref<32x16xbf16, #tpu.memory_space<vmem>>, %arg5: memref<32x32xbf16, #tpu.memory_space<vmem>>, %arg6: memref<1x32xf32, #tpu.memory_space<vmem>>, %arg7: memref<32x32xbf16, #tpu.memory_space<vmem>>, %arg8: memref<1x32xf32, #tpu.memory_space<vmem>>, %arg9: memref<32x48xbf16, #tpu.memory_space<vmem>>, %arg10: memref<1x48xf32, #tpu.memory_space<vmem>>, %arg11: memref<32x4xbf16, #tpu.memory_space<vmem>>, %arg12: memref<32x5xbf16, #tpu.memory_space<vmem>>, %arg13: memref<16x16xbf16, #tpu.memory_space<vmem>>, %arg14: memref<1x16xf32, #tpu.memory_space<vmem>>, %arg15: memref<16x8xbf16, #tpu.memory_space<vmem>>, %arg16: memref<1x8xf32, #tpu.memory_space<vmem>>, %arg17: memref<16x16xbf16, #tpu.memory_space<vmem>>, %arg18: memref<1x16xf32, #tpu.memory_space<vmem>>, %arg19: memref<4x64xbf16, #tpu.memory_space<vmem>>, %arg20: memref<64x32xbf16, #tpu.memory_space<vmem>>, %arg21: memref<4x64xbf16, #tpu.memory_space<vmem>>, %arg22: memref<5x96xbf16, #tpu.memory_space<vmem>>, %arg23: memref<96x32xbf16, #tpu.memory_space<vmem>>, %arg24: memref<5x64xbf16, #tpu.memory_space<vmem>>, %arg25: memref<7x64xbf16, #tpu.memory_space<vmem>>, %arg26: memref<7x96xbf16, #tpu.memory_space<vmem>>, %arg27: memref<7x64xbf16, #tpu.memory_space<vmem>>, %arg28: memref<4x32xbf16, #tpu.memory_space<vmem>>, %arg29: memref<32x16xbf16, #tpu.memory_space<vmem>>, %arg30: memref<4x32xbf16, #tpu.memory_space<vmem>>, %arg31: memref<5x48xbf16, #tpu.memory_space<vmem>>, %arg32: memref<48x16xbf16, #tpu.memory_space<vmem>>, %arg33: memref<5x32xbf16, #tpu.memory_space<vmem>>, %arg34: memref<8x128xf32, #tpu.memory_space<vmem>>) attributes {dimension_semantics = [#tpu.dimension_semantics<parallel>], iteration_bounds = array<i64: 1>, scalar_prefetch = 0 : i64, scratch_operands = 0 : i64, tpu.core_type = #tpu.core_type<tc>, window_params = [{transform_indices = @transform_0, window_bounds = array<i64: 8, 32>}, {pipeline_mode = #tpu.pipeline_mode<synchronous>, transform_indices = @transform_1, window_bounds = array<i64: 32, 224>}, {pipeline_mode = #tpu.pipeline_mode<synchronous>, transform_indices = @transform_2, window_bounds = array<i64: 1, 224>}, {pipeline_mode = #tpu.pipeline_mode<synchronous>, transform_indices = @transform_3, window_bounds = array<i64: 32, 16>}, {pipeline_mode = #tpu.pipeline_mode<synchronous>, transform_indices = @transform_4, window_bounds = array<i64: 32, 32>}, {pipeline_mode = #tpu.pipeline_mode<synchronous>, transform_indices = @transform_5, window_bounds = array<i64: 1, 32>}, {pipeline_mode = #tpu.pipeline_mode<synchronous>, transform_indices = @transform_6, window_bounds = array<i64: 32, 32>}, {pipeline_mode = #tpu.pipeline_mode<synchronous>, transform_indices = @transform_7, window_bounds = array<i64: 1, 32>}, {pipeline_mode = #tpu.pipeline_mode<synchronous>, transform_indices = @transform_8, window_bounds = array<i64: 32, 48>}, {pipeline_mode = #tpu.pipeline_mode<synchronous>, transform_indices = @transform_9, window_bounds = array<i64: 1, 48>}, {pipeline_mode = #tpu.pipeline_mode<synchronous>, transform_indices = @transform_10, window_bounds = array<i64: 32, 4>}, {pipeline_mode = #tpu.pipeline_mode<synchronous>, transform_indices = @transform_11, window_bounds = array<i64: 32, 5>}, {pipeline_mode = #tpu.pipeline_mode<synchronous>, transform_indices = @transform_12, window_bounds = array<i64: 16, 16>}, {pipeline_mode = #tpu.pipeline_mode<synchronous>, transform_indices = @transform_13, window_bounds = array<i64: 1, 16>}, {pipeline_mode = #tpu.pipeline_mode<synchronous>, transform_indices = @transform_14, window_bounds = array<i64: 16, 8>}, {pipeline_mode = #tpu.pipeline_mode<synchronous>, transform_indices = @transform_15, window_bounds = array<i64: 1, 8>}, {pipeline_mode = #tpu.pipeline_mode<synchronous>, transform_indices = @transform_16, window_bounds = array<i64: 16, 16>}, {pipeline_mode = #tpu.pipeline_mode<synchronous>, transform_indices = @transform_17, window_bounds = array<i64: 1, 16>}, {pipeline_mode = #tpu.pipeline_mode<synchronous>, transform_indices = @transform_18, window_bounds = array<i64: 4, 64>}, {pipeline_mode = #tpu.pipeline_mode<synchronous>, transform_indices = @transform_19, window_bounds = array<i64: 64, 32>}, {pipeline_mode = #tpu.pipeline_mode<synchronous>, transform_indices = @transform_20, window_bounds = array<i64: 4, 64>}, {pipeline_mode = #tpu.pipeline_mode<synchronous>, transform_indices = @transform_21, window_bounds = array<i64: 5, 96>}, {pipeline_mode = #tpu.pipeline_mode<synchronous>, transform_indices = @transform_22, window_bounds = array<i64: 96, 32>}, {pipeline_mode = #tpu.pipeline_mode<synchronous>, transform_indices = @transform_23, window_bounds = array<i64: 5, 64>}, {pipeline_mode = #tpu.pipeline_mode<synchronous>, transform_indices = @transform_24, window_bounds = array<i64: 7, 64>}, {pipeline_mode = #tpu.pipeline_mode<synchronous>, transform_indices = @transform_25, window_bounds = array<i64: 7, 96>}, {pipeline_mode = #tpu.pipeline_mode<synchronous>, transform_indices = @transform_26, window_bounds = array<i64: 7, 64>}, {pipeline_mode = #tpu.pipeline_mode<synchronous>, transform_indices = @transform_27, window_bounds = array<i64: 4, 32>}, {pipeline_mode = #tpu.pipeline_mode<synchronous>, transform_indices = @transform_28, window_bounds = array<i64: 32, 16>}, {pipeline_mode = #tpu.pipeline_mode<synchronous>, transform_indices = @transform_29, window_bounds = array<i64: 4, 32>}, {pipeline_mode = #tpu.pipeline_mode<synchronous>, transform_indices = @transform_30, window_bounds = array<i64: 5, 48>}, {pipeline_mode = #tpu.pipeline_mode<synchronous>, transform_indices = @transform_31, window_bounds = array<i64: 48, 16>}, {pipeline_mode = #tpu.pipeline_mode<synchronous>, transform_indices = @transform_32, window_bounds = array<i64: 5, 32>}, {transform_indices = @transform_33, window_bounds = array<i64: 8, 128>}]} {
    %c0 = arith.constant 0 : index
    %c0_0 = arith.constant 0 : index
    %0 = vector.load %arg1[%c0, %c0_0] : memref<8x32xf32, #tpu.memory_space<vmem>>, vector<8x32xf32>
    %1 = arith.truncf %0 : vector<8x32xf32> to vector<8x32xbf16>
    %c0_1 = arith.constant 0 : index
    %c0_2 = arith.constant 0 : index
    %2 = vector.load %arg2[%c0_1, %c0_2] : memref<32x224xbf16, #tpu.memory_space<vmem>>, vector<32x224xbf16>
    %cst = arith.constant dense<0.000000e+00> : vector<8x224xf32>
    %3 = tpu.matmul %1, %2, %cst {dimension_numbers = #tpu.dot_dimension_numbers<[1], [0], [0], [1], [0, 0, 1, 1], [], []>} : vector<8x32xbf16>, vector<32x224xbf16>, vector<8x224xf32> -> vector<8x224xf32>
    %c0_3 = arith.constant 0 : index
    %c0_4 = arith.constant 0 : index
    %4 = vector.load %arg3[%c0_3, %c0_4] : memref<1x224xf32, #tpu.memory_space<vmem>>, vector<1x224xf32>
    %5 = vector.broadcast %4 : vector<1x224xf32> to vector<8x224xf32>
    %6 = arith.addf %3, %5 : vector<8x224xf32>
    %cst_5 = arith.constant 0.000000e+00 : f32
    %7 = vector.broadcast %cst_5 : f32 to vector<8x224xf32>
    %8 = arith.maximumf %6, %7 : vector<8x224xf32>
    %9 = vector.extract_strided_slice %8 {offsets = [0, 0], sizes = [8, 64], strides = [1, 1]} : vector<8x224xf32> to vector<8x64xf32>
    %10 = vector.extract_strided_slice %8 {offsets = [0, 64], sizes = [8, 96], strides = [1, 1]} : vector<8x224xf32> to vector<8x96xf32>
    %11 = vector.extract_strided_slice %8 {offsets = [0, 160], sizes = [8, 64], strides = [1, 1]} : vector<8x224xf32> to vector<8x64xf32>
    %12 = arith.truncf %0 : vector<8x32xf32> to vector<8x32xbf16>
    %c0_6 = arith.constant 0 : index
    %c0_7 = arith.constant 0 : index
    %13 = vector.load %arg4[%c0_6, %c0_7] : memref<32x16xbf16, #tpu.memory_space<vmem>>, vector<32x16xbf16>
    %cst_8 = arith.constant dense<0.000000e+00> : vector<8x16xf32>
    %14 = tpu.matmul %12, %13, %cst_8 {dimension_numbers = #tpu.dot_dimension_numbers<[1], [0], [0], [1], [0, 0, 1, 1], [], []>} : vector<8x32xbf16>, vector<32x16xbf16>, vector<8x16xf32> -> vector<8x16xf32>
    %15 = vector.extract_strided_slice %14 {offsets = [0, 0], sizes = [8, 4], strides = [1, 1]} : vector<8x16xf32> to vector<8x4xf32>
    %cst_9 = arith.constant dense<0xFF800000> : vector<8xf32>
    %16 = vector.multi_reduction <maximumf>, %15, %cst_9 [1] : vector<8x4xf32> to vector<8xf32>
    %17 = vector.shape_cast %16 : vector<8xf32> to vector<8x1xf32>
    %18 = vector.broadcast %17 : vector<8x1xf32> to vector<8x4xf32>
    %19 = arith.subf %15, %18 : vector<8x4xf32>
    %20 = math.exp %19 : vector<8x4xf32>
    %cst_10 = arith.constant dense<0.000000e+00> : vector<8xf32>
    %21 = vector.multi_reduction <add>, %20, %cst_10 [1] : vector<8x4xf32> to vector<8xf32>
    %22 = vector.shape_cast %21 : vector<8xf32> to vector<8x1xf32>
    %23 = tpu.reciprocal %22 {approx = true} : vector<8x1xf32> -> vector<8x1xf32>
    %24 = vector.broadcast %23 : vector<8x1xf32> to vector<8x4xf32>
    %25 = arith.mulf %20, %24 : vector<8x4xf32>
    %26 = vector.extract_strided_slice %14 {offsets = [0, 4], sizes = [8, 5], strides = [1, 1]} : vector<8x16xf32> to vector<8x5xf32>
    %cst_11 = arith.constant dense<0xFF800000> : vector<8xf32>
    %27 = vector.multi_reduction <maximumf>, %26, %cst_11 [1] : vector<8x5xf32> to vector<8xf32>
    %28 = vector.shape_cast %27 : vector<8xf32> to vector<8x1xf32>
    %29 = vector.broadcast %28 : vector<8x1xf32> to vector<8x5xf32>
    %30 = arith.subf %26, %29 : vector<8x5xf32>
    %31 = math.exp %30 : vector<8x5xf32>
    %cst_12 = arith.constant dense<0.000000e+00> : vector<8xf32>
    %32 = vector.multi_reduction <add>, %31, %cst_12 [1] : vector<8x5xf32> to vector<8xf32>
    %33 = vector.shape_cast %32 : vector<8xf32> to vector<8x1xf32>
    %34 = tpu.reciprocal %33 {approx = true} : vector<8x1xf32> -> vector<8x1xf32>
    %35 = vector.broadcast %34 : vector<8x1xf32> to vector<8x5xf32>
    %36 = arith.mulf %31, %35 : vector<8x5xf32>
    %37 = vector.extract_strided_slice %14 {offsets = [0, 9], sizes = [8, 7], strides = [1, 1]} : vector<8x16xf32> to vector<8x7xf32>
    %cst_13 = arith.constant dense<0xFF800000> : vector<8xf32>
    %38 = vector.multi_reduction <maximumf>, %37, %cst_13 [1] : vector<8x7xf32> to vector<8xf32>
    %39 = vector.shape_cast %38 : vector<8xf32> to vector<8x1xf32>
    %40 = vector.broadcast %39 : vector<8x1xf32> to vector<8x7xf32>
    %41 = arith.subf %37, %40 : vector<8x7xf32>
    %42 = math.exp %41 : vector<8x7xf32>
    %cst_14 = arith.constant dense<0.000000e+00> : vector<8xf32>
    %43 = vector.multi_reduction <add>, %42, %cst_14 [1] : vector<8x7xf32> to vector<8xf32>
    %44 = vector.shape_cast %43 : vector<8xf32> to vector<8x1xf32>
    %45 = tpu.reciprocal %44 {approx = true} : vector<8x1xf32> -> vector<8x1xf32>
    %46 = vector.broadcast %45 : vector<8x1xf32> to vector<8x7xf32>
    %47 = arith.mulf %42, %46 : vector<8x7xf32>
    %c0_15 = arith.constant 0 : index
    %c0_16 = arith.constant 0 : index
    %48 = vector.load %arg19[%c0_15, %c0_16] : memref<4x64xbf16, #tpu.memory_space<vmem>>, vector<4x64xbf16>
    %49 = arith.truncf %25 : vector<8x4xf32> to vector<8x4xbf16>
    %cst_17 = arith.constant dense<0.000000e+00> : vector<8x64xf32>
    %50 = tpu.matmul %49, %48, %cst_17 {dimension_numbers = #tpu.dot_dimension_numbers<[1], [0], [0], [1], [0, 0, 1, 1], [], []>} : vector<8x4xbf16>, vector<4x64xbf16>, vector<8x64xf32> -> vector<8x64xf32>
    %51 = arith.mulf %9, %50 : vector<8x64xf32>
    %c0_18 = arith.constant 0 : index
    %c0_19 = arith.constant 0 : index
    %52 = vector.load %arg20[%c0_18, %c0_19] : memref<64x32xbf16, #tpu.memory_space<vmem>>, vector<64x32xbf16>
    %53 = arith.truncf %51 : vector<8x64xf32> to vector<8x64xbf16>
    %cst_20 = arith.constant dense<0.000000e+00> : vector<8x32xf32>
    %54 = tpu.matmul %53, %52, %cst_20 {dimension_numbers = #tpu.dot_dimension_numbers<[1], [0], [0], [1], [0, 0, 1, 1], [], []>} : vector<8x64xbf16>, vector<64x32xbf16>, vector<8x32xf32> -> vector<8x32xf32>
    %c0_21 = arith.constant 0 : index
    %c0_22 = arith.constant 0 : index
    %55 = vector.load %arg21[%c0_21, %c0_22] : memref<4x64xbf16, #tpu.memory_space<vmem>>, vector<4x64xbf16>
    %56 = arith.truncf %25 : vector<8x4xf32> to vector<8x4xbf16>
    %cst_23 = arith.constant dense<0.000000e+00> : vector<8x64xf32>
    %57 = tpu.matmul %56, %55, %cst_23 {dimension_numbers = #tpu.dot_dimension_numbers<[1], [0], [0], [1], [0, 0, 1, 1], [], []>} : vector<8x4xbf16>, vector<4x64xbf16>, vector<8x64xf32> -> vector<8x64xf32>
    %58 = arith.mulf %11, %57 : vector<8x64xf32>
    %c0_24 = arith.constant 0 : index
    %c0_25 = arith.constant 0 : index
    %59 = vector.load %arg20[%c0_24, %c0_25] : memref<64x32xbf16, #tpu.memory_space<vmem>>, vector<64x32xbf16>
    %60 = arith.truncf %58 : vector<8x64xf32> to vector<8x64xbf16>
    %cst_26 = arith.constant dense<0.000000e+00> : vector<8x32xf32>
    %61 = tpu.matmul %60, %59, %cst_26 {dimension_numbers = #tpu.dot_dimension_numbers<[1], [0], [0], [1], [0, 0, 1, 1], [], []>} : vector<8x64xbf16>, vector<64x32xbf16>, vector<8x32xf32> -> vector<8x32xf32>
    %62 = arith.addf %54, %61 : vector<8x32xf32>
    %c0_27 = arith.constant 0 : index
    %c0_28 = arith.constant 0 : index
    %63 = vector.load %arg22[%c0_27, %c0_28] : memref<5x96xbf16, #tpu.memory_space<vmem>>, vector<5x96xbf16>
    %64 = arith.truncf %36 : vector<8x5xf32> to vector<8x5xbf16>
    %cst_29 = arith.constant dense<0.000000e+00> : vector<8x96xf32>
    %65 = tpu.matmul %64, %63, %cst_29 {dimension_numbers = #tpu.dot_dimension_numbers<[1], [0], [0], [1], [0, 0, 1, 1], [], []>} : vector<8x5xbf16>, vector<5x96xbf16>, vector<8x96xf32> -> vector<8x96xf32>
    %66 = arith.mulf %10, %65 : vector<8x96xf32>
    %c0_30 = arith.constant 0 : index
    %c0_31 = arith.constant 0 : index
    %67 = vector.load %arg23[%c0_30, %c0_31] : memref<96x32xbf16, #tpu.memory_space<vmem>>, vector<96x32xbf16>
    %68 = arith.truncf %66 : vector<8x96xf32> to vector<8x96xbf16>
    %cst_32 = arith.constant dense<0.000000e+00> : vector<8x32xf32>
    %69 = tpu.matmul %68, %67, %cst_32 {dimension_numbers = #tpu.dot_dimension_numbers<[1], [0], [0], [1], [0, 0, 1, 1], [], []>} : vector<8x96xbf16>, vector<96x32xbf16>, vector<8x32xf32> -> vector<8x32xf32>
    %c0_33 = arith.constant 0 : index
    %c0_34 = arith.constant 0 : index
    %70 = vector.load %arg24[%c0_33, %c0_34] : memref<5x64xbf16, #tpu.memory_space<vmem>>, vector<5x64xbf16>
    %71 = arith.truncf %36 : vector<8x5xf32> to vector<8x5xbf16>
    %cst_35 = arith.constant dense<0.000000e+00> : vector<8x64xf32>
    %72 = tpu.matmul %71, %70, %cst_35 {dimension_numbers = #tpu.dot_dimension_numbers<[1], [0], [0], [1], [0, 0, 1, 1], [], []>} : vector<8x5xbf16>, vector<5x64xbf16>, vector<8x64xf32> -> vector<8x64xf32>
    %73 = arith.mulf %11, %72 : vector<8x64xf32>
    %c0_36 = arith.constant 0 : index
    %c0_37 = arith.constant 0 : index
    %74 = vector.load %arg20[%c0_36, %c0_37] : memref<64x32xbf16, #tpu.memory_space<vmem>>, vector<64x32xbf16>
    %75 = arith.truncf %73 : vector<8x64xf32> to vector<8x64xbf16>
    %cst_38 = arith.constant dense<0.000000e+00> : vector<8x32xf32>
    %76 = tpu.matmul %75, %74, %cst_38 {dimension_numbers = #tpu.dot_dimension_numbers<[1], [0], [0], [1], [0, 0, 1, 1], [], []>} : vector<8x64xbf16>, vector<64x32xbf16>, vector<8x32xf32> -> vector<8x32xf32>
    %77 = arith.addf %69, %76 : vector<8x32xf32>
    %c0_39 = arith.constant 0 : index
    %c0_40 = arith.constant 0 : index
    %78 = vector.load %arg25[%c0_39, %c0_40] : memref<7x64xbf16, #tpu.memory_space<vmem>>, vector<7x64xbf16>
    %79 = arith.truncf %47 : vector<8x7xf32> to vector<8x7xbf16>
    %cst_41 = arith.constant dense<0.000000e+00> : vector<8x64xf32>
    %80 = tpu.matmul %79, %78, %cst_41 {dimension_numbers = #tpu.dot_dimension_numbers<[1], [0], [0], [1], [0, 0, 1, 1], [], []>} : vector<8x7xbf16>, vector<7x64xbf16>, vector<8x64xf32> -> vector<8x64xf32>
    %81 = arith.mulf %9, %80 : vector<8x64xf32>
    %c0_42 = arith.constant 0 : index
    %c0_43 = arith.constant 0 : index
    %82 = vector.load %arg20[%c0_42, %c0_43] : memref<64x32xbf16, #tpu.memory_space<vmem>>, vector<64x32xbf16>
    %83 = arith.truncf %81 : vector<8x64xf32> to vector<8x64xbf16>
    %cst_44 = arith.constant dense<0.000000e+00> : vector<8x32xf32>
    %84 = tpu.matmul %83, %82, %cst_44 {dimension_numbers = #tpu.dot_dimension_numbers<[1], [0], [0], [1], [0, 0, 1, 1], [], []>} : vector<8x64xbf16>, vector<64x32xbf16>, vector<8x32xf32> -> vector<8x32xf32>
    %c0_45 = arith.constant 0 : index
    %c0_46 = arith.constant 0 : index
    %85 = vector.load %arg26[%c0_45, %c0_46] : memref<7x96xbf16, #tpu.memory_space<vmem>>, vector<7x96xbf16>
    %86 = arith.truncf %47 : vector<8x7xf32> to vector<8x7xbf16>
    %cst_47 = arith.constant dense<0.000000e+00> : vector<8x96xf32>
    %87 = tpu.matmul %86, %85, %cst_47 {dimension_numbers = #tpu.dot_dimension_numbers<[1], [0], [0], [1], [0, 0, 1, 1], [], []>} : vector<8x7xbf16>, vector<7x96xbf16>, vector<8x96xf32> -> vector<8x96xf32>
    %88 = arith.mulf %10, %87 : vector<8x96xf32>
    %c0_48 = arith.constant 0 : index
    %c0_49 = arith.constant 0 : index
    %89 = vector.load %arg23[%c0_48, %c0_49] : memref<96x32xbf16, #tpu.memory_space<vmem>>, vector<96x32xbf16>
    %90 = arith.truncf %88 : vector<8x96xf32> to vector<8x96xbf16>
    %cst_50 = arith.constant dense<0.000000e+00> : vector<8x32xf32>
    %91 = tpu.matmul %90, %89, %cst_50 {dimension_numbers = #tpu.dot_dimension_numbers<[1], [0], [0], [1], [0, 0, 1, 1], [], []>} : vector<8x96xbf16>, vector<96x32xbf16>, vector<8x32xf32> -> vector<8x32xf32>
    %92 = arith.addf %84, %91 : vector<8x32xf32>
    %c0_51 = arith.constant 0 : index
    %c0_52 = arith.constant 0 : index
    %93 = vector.load %arg27[%c0_51, %c0_52] : memref<7x64xbf16, #tpu.memory_space<vmem>>, vector<7x64xbf16>
    %94 = arith.truncf %47 : vector<8x7xf32> to vector<8x7xbf16>
    %cst_53 = arith.constant dense<0.000000e+00> : vector<8x64xf32>
    %95 = tpu.matmul %94, %93, %cst_53 {dimension_numbers = #tpu.dot_dimension_numbers<[1], [0], [0], [1], [0, 0, 1, 1], [], []>} : vector<8x7xbf16>, vector<7x64xbf16>, vector<8x64xf32> -> vector<8x64xf32>
    %96 = arith.mulf %11, %95 : vector<8x64xf32>
    %c0_54 = arith.constant 0 : index
    %c0_55 = arith.constant 0 : index
    %97 = vector.load %arg20[%c0_54, %c0_55] : memref<64x32xbf16, #tpu.memory_space<vmem>>, vector<64x32xbf16>
    %98 = arith.truncf %96 : vector<8x64xf32> to vector<8x64xbf16>
    %cst_56 = arith.constant dense<0.000000e+00> : vector<8x32xf32>
    %99 = tpu.matmul %98, %97, %cst_56 {dimension_numbers = #tpu.dot_dimension_numbers<[1], [0], [0], [1], [0, 0, 1, 1], [], []>} : vector<8x64xbf16>, vector<64x32xbf16>, vector<8x32xf32> -> vector<8x32xf32>
    %100 = arith.addf %92, %99 : vector<8x32xf32>
    %101 = arith.truncf %100 : vector<8x32xf32> to vector<8x32xbf16>
    %c0_57 = arith.constant 0 : index
    %c0_58 = arith.constant 0 : index
    %102 = vector.load %arg5[%c0_57, %c0_58] : memref<32x32xbf16, #tpu.memory_space<vmem>>, vector<32x32xbf16>
    %cst_59 = arith.constant dense<0.000000e+00> : vector<8x32xf32>
    %103 = tpu.matmul %101, %102, %cst_59 {dimension_numbers = #tpu.dot_dimension_numbers<[1], [0], [0], [1], [0, 0, 1, 1], [], []>} : vector<8x32xbf16>, vector<32x32xbf16>, vector<8x32xf32> -> vector<8x32xf32>
    %c0_60 = arith.constant 0 : index
    %c0_61 = arith.constant 0 : index
    %104 = vector.load %arg6[%c0_60, %c0_61] : memref<1x32xf32, #tpu.memory_space<vmem>>, vector<1x32xf32>
    %105 = vector.broadcast %104 : vector<1x32xf32> to vector<8x32xf32>
    %106 = arith.addf %103, %105 : vector<8x32xf32>
    %cst_62 = arith.constant 0.000000e+00 : f32
    %107 = vector.broadcast %cst_62 : f32 to vector<8x32xf32>
    %108 = arith.maximumf %106, %107 : vector<8x32xf32>
    %109 = arith.truncf %62 : vector<8x32xf32> to vector<8x32xbf16>
    %c0_63 = arith.constant 0 : index
    %c0_64 = arith.constant 0 : index
    %110 = vector.load %arg7[%c0_63, %c0_64] : memref<32x32xbf16, #tpu.memory_space<vmem>>, vector<32x32xbf16>
    %cst_65 = arith.constant dense<0.000000e+00> : vector<8x32xf32>
    %111 = tpu.matmul %109, %110, %cst_65 {dimension_numbers = #tpu.dot_dimension_numbers<[1], [0], [0], [1], [0, 0, 1, 1], [], []>} : vector<8x32xbf16>, vector<32x32xbf16>, vector<8x32xf32> -> vector<8x32xf32>
    %c0_66 = arith.constant 0 : index
    %c0_67 = arith.constant 0 : index
    %112 = vector.load %arg8[%c0_66, %c0_67] : memref<1x32xf32, #tpu.memory_space<vmem>>, vector<1x32xf32>
    %113 = vector.broadcast %112 : vector<1x32xf32> to vector<8x32xf32>
    %114 = arith.addf %111, %113 : vector<8x32xf32>
    %cst_68 = arith.constant 0.000000e+00 : f32
    %115 = vector.broadcast %cst_68 : f32 to vector<8x32xf32>
    %116 = arith.maximumf %114, %115 : vector<8x32xf32>
    %117 = arith.truncf %77 : vector<8x32xf32> to vector<8x32xbf16>
    %c0_69 = arith.constant 0 : index
    %c0_70 = arith.constant 0 : index
    %118 = vector.load %arg9[%c0_69, %c0_70] : memref<32x48xbf16, #tpu.memory_space<vmem>>, vector<32x48xbf16>
    %cst_71 = arith.constant dense<0.000000e+00> : vector<8x48xf32>
    %119 = tpu.matmul %117, %118, %cst_71 {dimension_numbers = #tpu.dot_dimension_numbers<[1], [0], [0], [1], [0, 0, 1, 1], [], []>} : vector<8x32xbf16>, vector<32x48xbf16>, vector<8x48xf32> -> vector<8x48xf32>
    %c0_72 = arith.constant 0 : index
    %c0_73 = arith.constant 0 : index
    %120 = vector.load %arg10[%c0_72, %c0_73] : memref<1x48xf32, #tpu.memory_space<vmem>>, vector<1x48xf32>
    %121 = vector.broadcast %120 : vector<1x48xf32> to vector<8x48xf32>
    %122 = arith.addf %119, %121 : vector<8x48xf32>
    %cst_74 = arith.constant 0.000000e+00 : f32
    %123 = vector.broadcast %cst_74 : f32 to vector<8x48xf32>
    %124 = arith.maximumf %122, %123 : vector<8x48xf32>
    %125 = arith.truncf %62 : vector<8x32xf32> to vector<8x32xbf16>
    %c0_75 = arith.constant 0 : index
    %c0_76 = arith.constant 0 : index
    %126 = vector.load %arg11[%c0_75, %c0_76] : memref<32x4xbf16, #tpu.memory_space<vmem>>, vector<32x4xbf16>
    %cst_77 = arith.constant dense<0.000000e+00> : vector<8x4xf32>
    %127 = tpu.matmul %125, %126, %cst_77 {dimension_numbers = #tpu.dot_dimension_numbers<[1], [0], [0], [1], [0, 0, 1, 1], [], []>} : vector<8x32xbf16>, vector<32x4xbf16>, vector<8x4xf32> -> vector<8x4xf32>
    %cst_78 = arith.constant dense<0xFF800000> : vector<8xf32>
    %128 = vector.multi_reduction <maximumf>, %127, %cst_78 [1] : vector<8x4xf32> to vector<8xf32>
    %129 = vector.shape_cast %128 : vector<8xf32> to vector<8x1xf32>
    %130 = vector.broadcast %129 : vector<8x1xf32> to vector<8x4xf32>
    %131 = arith.subf %127, %130 : vector<8x4xf32>
    %132 = math.exp %131 : vector<8x4xf32>
    %cst_79 = arith.constant dense<0.000000e+00> : vector<8xf32>
    %133 = vector.multi_reduction <add>, %132, %cst_79 [1] : vector<8x4xf32> to vector<8xf32>
    %134 = vector.shape_cast %133 : vector<8xf32> to vector<8x1xf32>
    %135 = tpu.reciprocal %134 {approx = true} : vector<8x1xf32> -> vector<8x1xf32>
    %136 = vector.broadcast %135 : vector<8x1xf32> to vector<8x4xf32>
    %137 = arith.mulf %132, %136 : vector<8x4xf32>
    %c0_80 = arith.constant 0 : index
    %c0_81 = arith.constant 0 : index
    %138 = vector.load %arg28[%c0_80, %c0_81] : memref<4x32xbf16, #tpu.memory_space<vmem>>, vector<4x32xbf16>
    %139 = arith.truncf %137 : vector<8x4xf32> to vector<8x4xbf16>
    %cst_82 = arith.constant dense<0.000000e+00> : vector<8x32xf32>
    %140 = tpu.matmul %139, %138, %cst_82 {dimension_numbers = #tpu.dot_dimension_numbers<[1], [0], [0], [1], [0, 0, 1, 1], [], []>} : vector<8x4xbf16>, vector<4x32xbf16>, vector<8x32xf32> -> vector<8x32xf32>
    %141 = arith.mulf %116, %140 : vector<8x32xf32>
    %c0_83 = arith.constant 0 : index
    %c0_84 = arith.constant 0 : index
    %142 = vector.load %arg29[%c0_83, %c0_84] : memref<32x16xbf16, #tpu.memory_space<vmem>>, vector<32x16xbf16>
    %143 = arith.truncf %141 : vector<8x32xf32> to vector<8x32xbf16>
    %cst_85 = arith.constant dense<0.000000e+00> : vector<8x16xf32>
    %144 = tpu.matmul %143, %142, %cst_85 {dimension_numbers = #tpu.dot_dimension_numbers<[1], [0], [0], [1], [0, 0, 1, 1], [], []>} : vector<8x32xbf16>, vector<32x16xbf16>, vector<8x16xf32> -> vector<8x16xf32>
    %c0_86 = arith.constant 0 : index
    %c0_87 = arith.constant 0 : index
    %145 = vector.load %arg30[%c0_86, %c0_87] : memref<4x32xbf16, #tpu.memory_space<vmem>>, vector<4x32xbf16>
    %146 = arith.truncf %137 : vector<8x4xf32> to vector<8x4xbf16>
    %cst_88 = arith.constant dense<0.000000e+00> : vector<8x32xf32>
    %147 = tpu.matmul %146, %145, %cst_88 {dimension_numbers = #tpu.dot_dimension_numbers<[1], [0], [0], [1], [0, 0, 1, 1], [], []>} : vector<8x4xbf16>, vector<4x32xbf16>, vector<8x32xf32> -> vector<8x32xf32>
    %148 = arith.mulf %108, %147 : vector<8x32xf32>
    %c0_89 = arith.constant 0 : index
    %c0_90 = arith.constant 0 : index
    %149 = vector.load %arg29[%c0_89, %c0_90] : memref<32x16xbf16, #tpu.memory_space<vmem>>, vector<32x16xbf16>
    %150 = arith.truncf %148 : vector<8x32xf32> to vector<8x32xbf16>
    %cst_91 = arith.constant dense<0.000000e+00> : vector<8x16xf32>
    %151 = tpu.matmul %150, %149, %cst_91 {dimension_numbers = #tpu.dot_dimension_numbers<[1], [0], [0], [1], [0, 0, 1, 1], [], []>} : vector<8x32xbf16>, vector<32x16xbf16>, vector<8x16xf32> -> vector<8x16xf32>
    %152 = arith.addf %144, %151 : vector<8x16xf32>
    %153 = arith.truncf %77 : vector<8x32xf32> to vector<8x32xbf16>
    %c0_92 = arith.constant 0 : index
    %c0_93 = arith.constant 0 : index
    %154 = vector.load %arg12[%c0_92, %c0_93] : memref<32x5xbf16, #tpu.memory_space<vmem>>, vector<32x5xbf16>
    %cst_94 = arith.constant dense<0.000000e+00> : vector<8x5xf32>
    %155 = tpu.matmul %153, %154, %cst_94 {dimension_numbers = #tpu.dot_dimension_numbers<[1], [0], [0], [1], [0, 0, 1, 1], [], []>} : vector<8x32xbf16>, vector<32x5xbf16>, vector<8x5xf32> -> vector<8x5xf32>
    %cst_95 = arith.constant dense<0xFF800000> : vector<8xf32>
    %156 = vector.multi_reduction <maximumf>, %155, %cst_95 [1] : vector<8x5xf32> to vector<8xf32>
    %157 = vector.shape_cast %156 : vector<8xf32> to vector<8x1xf32>
    %158 = vector.broadcast %157 : vector<8x1xf32> to vector<8x5xf32>
    %159 = arith.subf %155, %158 : vector<8x5xf32>
    %160 = math.exp %159 : vector<8x5xf32>
    %cst_96 = arith.constant dense<0.000000e+00> : vector<8xf32>
    %161 = vector.multi_reduction <add>, %160, %cst_96 [1] : vector<8x5xf32> to vector<8xf32>
    %162 = vector.shape_cast %161 : vector<8xf32> to vector<8x1xf32>
    %163 = tpu.reciprocal %162 {approx = true} : vector<8x1xf32> -> vector<8x1xf32>
    %164 = vector.broadcast %163 : vector<8x1xf32> to vector<8x5xf32>
    %165 = arith.mulf %160, %164 : vector<8x5xf32>
    %c0_97 = arith.constant 0 : index
    %c0_98 = arith.constant 0 : index
    %166 = vector.load %arg31[%c0_97, %c0_98] : memref<5x48xbf16, #tpu.memory_space<vmem>>, vector<5x48xbf16>
    %167 = arith.truncf %165 : vector<8x5xf32> to vector<8x5xbf16>
    %cst_99 = arith.constant dense<0.000000e+00> : vector<8x48xf32>
    %168 = tpu.matmul %167, %166, %cst_99 {dimension_numbers = #tpu.dot_dimension_numbers<[1], [0], [0], [1], [0, 0, 1, 1], [], []>} : vector<8x5xbf16>, vector<5x48xbf16>, vector<8x48xf32> -> vector<8x48xf32>
    %169 = arith.mulf %124, %168 : vector<8x48xf32>
    %c0_100 = arith.constant 0 : index
    %c0_101 = arith.constant 0 : index
    %170 = vector.load %arg32[%c0_100, %c0_101] : memref<48x16xbf16, #tpu.memory_space<vmem>>, vector<48x16xbf16>
    %171 = arith.truncf %169 : vector<8x48xf32> to vector<8x48xbf16>
    %cst_102 = arith.constant dense<0.000000e+00> : vector<8x16xf32>
    %172 = tpu.matmul %171, %170, %cst_102 {dimension_numbers = #tpu.dot_dimension_numbers<[1], [0], [0], [1], [0, 0, 1, 1], [], []>} : vector<8x48xbf16>, vector<48x16xbf16>, vector<8x16xf32> -> vector<8x16xf32>
    %c0_103 = arith.constant 0 : index
    %c0_104 = arith.constant 0 : index
    %173 = vector.load %arg33[%c0_103, %c0_104] : memref<5x32xbf16, #tpu.memory_space<vmem>>, vector<5x32xbf16>
    %174 = arith.truncf %165 : vector<8x5xf32> to vector<8x5xbf16>
    %cst_105 = arith.constant dense<0.000000e+00> : vector<8x32xf32>
    %175 = tpu.matmul %174, %173, %cst_105 {dimension_numbers = #tpu.dot_dimension_numbers<[1], [0], [0], [1], [0, 0, 1, 1], [], []>} : vector<8x5xbf16>, vector<5x32xbf16>, vector<8x32xf32> -> vector<8x32xf32>
    %176 = arith.mulf %108, %175 : vector<8x32xf32>
    %c0_106 = arith.constant 0 : index
    %c0_107 = arith.constant 0 : index
    %177 = vector.load %arg29[%c0_106, %c0_107] : memref<32x16xbf16, #tpu.memory_space<vmem>>, vector<32x16xbf16>
    %178 = arith.truncf %176 : vector<8x32xf32> to vector<8x32xbf16>
    %cst_108 = arith.constant dense<0.000000e+00> : vector<8x16xf32>
    %179 = tpu.matmul %178, %177, %cst_108 {dimension_numbers = #tpu.dot_dimension_numbers<[1], [0], [0], [1], [0, 0, 1, 1], [], []>} : vector<8x32xbf16>, vector<32x16xbf16>, vector<8x16xf32> -> vector<8x16xf32>
    %180 = arith.addf %172, %179 : vector<8x16xf32>
    %181 = arith.truncf %152 : vector<8x16xf32> to vector<8x16xbf16>
    %c0_109 = arith.constant 0 : index
    %c0_110 = arith.constant 0 : index
    %182 = vector.load %arg13[%c0_109, %c0_110] : memref<16x16xbf16, #tpu.memory_space<vmem>>, vector<16x16xbf16>
    %cst_111 = arith.constant dense<0.000000e+00> : vector<8x16xf32>
    %183 = tpu.matmul %181, %182, %cst_111 {dimension_numbers = #tpu.dot_dimension_numbers<[1], [0], [0], [1], [0, 0, 1, 1], [], []>} : vector<8x16xbf16>, vector<16x16xbf16>, vector<8x16xf32> -> vector<8x16xf32>
    %c0_112 = arith.constant 0 : index
    %c0_113 = arith.constant 0 : index
    %184 = vector.load %arg14[%c0_112, %c0_113] : memref<1x16xf32, #tpu.memory_space<vmem>>, vector<1x16xf32>
    %185 = vector.broadcast %184 : vector<1x16xf32> to vector<8x16xf32>
    %186 = arith.addf %183, %185 : vector<8x16xf32>
    %cst_114 = arith.constant 0.000000e+00 : f32
    %187 = vector.broadcast %cst_114 : f32 to vector<8x16xf32>
    %188 = arith.maximumf %186, %187 : vector<8x16xf32>
    %189 = arith.truncf %188 : vector<8x16xf32> to vector<8x16xbf16>
    %c0_115 = arith.constant 0 : index
    %c0_116 = arith.constant 0 : index
    %190 = vector.load %arg15[%c0_115, %c0_116] : memref<16x8xbf16, #tpu.memory_space<vmem>>, vector<16x8xbf16>
    %cst_117 = arith.constant dense<0.000000e+00> : vector<8x8xf32>
    %191 = tpu.matmul %189, %190, %cst_117 {dimension_numbers = #tpu.dot_dimension_numbers<[1], [0], [0], [1], [0, 0, 1, 1], [], []>} : vector<8x16xbf16>, vector<16x8xbf16>, vector<8x8xf32> -> vector<8x8xf32>
    %c0_118 = arith.constant 0 : index
    %c0_119 = arith.constant 0 : index
    %192 = vector.load %arg16[%c0_118, %c0_119] : memref<1x8xf32, #tpu.memory_space<vmem>>, vector<1x8xf32>
    %193 = vector.broadcast %192 : vector<1x8xf32> to vector<8x8xf32>
    %194 = arith.addf %191, %193 : vector<8x8xf32>
    %cst_120 = arith.constant 0.000000e+00 : f32
    %195 = vector.broadcast %cst_120 : f32 to vector<8x8xf32>
    %196 = arith.maximumf %194, %195 : vector<8x8xf32>
    %197 = arith.truncf %180 : vector<8x16xf32> to vector<8x16xbf16>
    %c0_121 = arith.constant 0 : index
    %c0_122 = arith.constant 0 : index
    %198 = vector.load %arg17[%c0_121, %c0_122] : memref<16x16xbf16, #tpu.memory_space<vmem>>, vector<16x16xbf16>
    %cst_123 = arith.constant dense<0.000000e+00> : vector<8x16xf32>
    %199 = tpu.matmul %197, %198, %cst_123 {dimension_numbers = #tpu.dot_dimension_numbers<[1], [0], [0], [1], [0, 0, 1, 1], [], []>} : vector<8x16xbf16>, vector<16x16xbf16>, vector<8x16xf32> -> vector<8x16xf32>
    %c0_124 = arith.constant 0 : index
    %c0_125 = arith.constant 0 : index
    %200 = vector.load %arg18[%c0_124, %c0_125] : memref<1x16xf32, #tpu.memory_space<vmem>>, vector<1x16xf32>
    %201 = vector.broadcast %200 : vector<1x16xf32> to vector<8x16xf32>
    %202 = arith.addf %199, %201 : vector<8x16xf32>
    %cst_126 = arith.constant 0.000000e+00 : f32
    %203 = vector.broadcast %cst_126 : f32 to vector<8x16xf32>
    %204 = arith.maximumf %202, %203 : vector<8x16xf32>
    %cst_127 = arith.constant 0.000000e+00 : f32
    %205 = vector.broadcast %cst_127 : f32 to vector<8x104xf32>
    %206 = tpu.concatenate %196, %204, %205 in 1 : vector<8x8xf32>, vector<8x16xf32>, vector<8x104xf32> -> vector<8x128xf32>
    %c0_128 = arith.constant 0 : index
    %c0_129 = arith.constant 0 : index
    %207 = vector.load %arg34[%c0_128, %c0_129] : memref<8x128xf32, #tpu.memory_space<vmem>>, vector<8x128xf32>
    tpu.vector_store %arg34[%c0_128, %c0_129], %206 {strides = array<i32>} : memref<8x128xf32, #tpu.memory_space<vmem>>, vector<8x128xf32>,
    return
  }
  func.func @transform_0(%arg0: i32) -> (i32, i32) {
    %c0_i32 = arith.constant 0 : i32
    %c0_i32_0 = arith.constant 0 : i32
    return %arg0, %c0_i32 : i32, i32
  }
  func.func @transform_1(%arg0: i32) -> (i32, i32) {
    %c0_i32 = arith.constant 0 : i32
    %c0_i32_0 = arith.constant 0 : i32
    %c0_i32_1 = arith.constant 0 : i32
    return %c0_i32, %c0_i32_0 : i32, i32
  }
  func.func @transform_2(%arg0: i32) -> (i32, i32) {
    %c0_i32 = arith.constant 0 : i32
    %c0_i32_0 = arith.constant 0 : i32
    %c0_i32_1 = arith.constant 0 : i32
    return %c0_i32, %c0_i32_0 : i32, i32
  }
  func.func @transform_3(%arg0: i32) -> (i32, i32) {
    %c0_i32 = arith.constant 0 : i32
    %c0_i32_0 = arith.constant 0 : i32
    %c0_i32_1 = arith.constant 0 : i32
    return %c0_i32, %c0_i32_0 : i32, i32
  }
  func.func @transform_4(%arg0: i32) -> (i32, i32) {
    %c0_i32 = arith.constant 0 : i32
    %c0_i32_0 = arith.constant 0 : i32
    %c0_i32_1 = arith.constant 0 : i32
    return %c0_i32, %c0_i32_0 : i32, i32
  }
  func.func @transform_5(%arg0: i32) -> (i32, i32) {
    %c0_i32 = arith.constant 0 : i32
    %c0_i32_0 = arith.constant 0 : i32
    %c0_i32_1 = arith.constant 0 : i32
    return %c0_i32, %c0_i32_0 : i32, i32
  }
  func.func @transform_6(%arg0: i32) -> (i32, i32) {
    %c0_i32 = arith.constant 0 : i32
    %c0_i32_0 = arith.constant 0 : i32
    %c0_i32_1 = arith.constant 0 : i32
    return %c0_i32, %c0_i32_0 : i32, i32
  }
  func.func @transform_7(%arg0: i32) -> (i32, i32) {
    %c0_i32 = arith.constant 0 : i32
    %c0_i32_0 = arith.constant 0 : i32
    %c0_i32_1 = arith.constant 0 : i32
    return %c0_i32, %c0_i32_0 : i32, i32
  }
  func.func @transform_8(%arg0: i32) -> (i32, i32) {
    %c0_i32 = arith.constant 0 : i32
    %c0_i32_0 = arith.constant 0 : i32
    %c0_i32_1 = arith.constant 0 : i32
    return %c0_i32, %c0_i32_0 : i32, i32
  }
  func.func @transform_9(%arg0: i32) -> (i32, i32) {
    %c0_i32 = arith.constant 0 : i32
    %c0_i32_0 = arith.constant 0 : i32
    %c0_i32_1 = arith.constant 0 : i32
    return %c0_i32, %c0_i32_0 : i32, i32
  }
  func.func @transform_10(%arg0: i32) -> (i32, i32) {
    %c0_i32 = arith.constant 0 : i32
    %c0_i32_0 = arith.constant 0 : i32
    %c0_i32_1 = arith.constant 0 : i32
    return %c0_i32, %c0_i32_0 : i32, i32
  }
  func.func @transform_11(%arg0: i32) -> (i32, i32) {
    %c0_i32 = arith.constant 0 : i32
    %c0_i32_0 = arith.constant 0 : i32
    %c0_i32_1 = arith.constant 0 : i32
    return %c0_i32, %c0_i32_0 : i32, i32
  }
  func.func @transform_12(%arg0: i32) -> (i32, i32) {
    %c0_i32 = arith.constant 0 : i32
    %c0_i32_0 = arith.constant 0 : i32
    %c0_i32_1 = arith.constant 0 : i32
    return %c0_i32, %c0_i32_0 : i32, i32
  }
  func.func @transform_13(%arg0: i32) -> (i32, i32) {
    %c0_i32 = arith.constant 0 : i32
    %c0_i32_0 = arith.constant 0 : i32
    %c0_i32_1 = arith.constant 0 : i32
    return %c0_i32, %c0_i32_0 : i32, i32
  }
  func.func @transform_14(%arg0: i32) -> (i32, i32) {
    %c0_i32 = arith.constant 0 : i32
    %c0_i32_0 = arith.constant 0 : i32
    %c0_i32_1 = arith.constant 0 : i32
    return %c0_i32, %c0_i32_0 : i32, i32
  }
  func.func @transform_15(%arg0: i32) -> (i32, i32) {
    %c0_i32 = arith.constant 0 : i32
    %c0_i32_0 = arith.constant 0 : i32
    %c0_i32_1 = arith.constant 0 : i32
    return %c0_i32, %c0_i32_0 : i32, i32
  }
  func.func @transform_16(%arg0: i32) -> (i32, i32) {
    %c0_i32 = arith.constant 0 : i32
    %c0_i32_0 = arith.constant 0 : i32
    %c0_i32_1 = arith.constant 0 : i32
    return %c0_i32, %c0_i32_0 : i32, i32
  }
  func.func @transform_17(%arg0: i32) -> (i32, i32) {
    %c0_i32 = arith.constant 0 : i32
    %c0_i32_0 = arith.constant 0 : i32
    %c0_i32_1 = arith.constant 0 : i32
    return %c0_i32, %c0_i32_0 : i32, i32
  }
  func.func @transform_18(%arg0: i32) -> (i32, i32) {
    %c0_i32 = arith.constant 0 : i32
    %c0_i32_0 = arith.constant 0 : i32
    %c0_i32_1 = arith.constant 0 : i32
    return %c0_i32, %c0_i32_0 : i32, i32
  }
  func.func @transform_19(%arg0: i32) -> (i32, i32) {
    %c0_i32 = arith.constant 0 : i32
    %c0_i32_0 = arith.constant 0 : i32
    %c0_i32_1 = arith.constant 0 : i32
    return %c0_i32, %c0_i32_0 : i32, i32
  }
  func.func @transform_20(%arg0: i32) -> (i32, i32) {
    %c0_i32 = arith.constant 0 : i32
    %c0_i32_0 = arith.constant 0 : i32
    %c0_i32_1 = arith.constant 0 : i32
    return %c0_i32, %c0_i32_0 : i32, i32
  }
  func.func @transform_21(%arg0: i32) -> (i32, i32) {
    %c0_i32 = arith.constant 0 : i32
    %c0_i32_0 = arith.constant 0 : i32
    %c0_i32_1 = arith.constant 0 : i32
    return %c0_i32, %c0_i32_0 : i32, i32
  }
  func.func @transform_22(%arg0: i32) -> (i32, i32) {
    %c0_i32 = arith.constant 0 : i32
    %c0_i32_0 = arith.constant 0 : i32
    %c0_i32_1 = arith.constant 0 : i32
    return %c0_i32, %c0_i32_0 : i32, i32
  }
  func.func @transform_23(%arg0: i32) -> (i32, i32) {
    %c0_i32 = arith.constant 0 : i32
    %c0_i32_0 = arith.constant 0 : i32
    %c0_i32_1 = arith.constant 0 : i32
    return %c0_i32, %c0_i32_0 : i32, i32
  }
  func.func @transform_24(%arg0: i32) -> (i32, i32) {
    %c0_i32 = arith.constant 0 : i32
    %c0_i32_0 = arith.constant 0 : i32
    %c0_i32_1 = arith.constant 0 : i32
    return %c0_i32, %c0_i32_0 : i32, i32
  }
  func.func @transform_25(%arg0: i32) -> (i32, i32) {
    %c0_i32 = arith.constant 0 : i32
    %c0_i32_0 = arith.constant 0 : i32
    %c0_i32_1 = arith.constant 0 : i32
    return %c0_i32, %c0_i32_0 : i32, i32
  }
  func.func @transform_26(%arg0: i32) -> (i32, i32) {
    %c0_i32 = arith.constant 0 : i32
    %c0_i32_0 = arith.constant 0 : i32
    %c0_i32_1 = arith.constant 0 : i32
    return %c0_i32, %c0_i32_0 : i32, i32
  }
  func.func @transform_27(%arg0: i32) -> (i32, i32) {
    %c0_i32 = arith.constant 0 : i32
    %c0_i32_0 = arith.constant 0 : i32
    %c0_i32_1 = arith.constant 0 : i32
    return %c0_i32, %c0_i32_0 : i32, i32
  }
  func.func @transform_28(%arg0: i32) -> (i32, i32) {
    %c0_i32 = arith.constant 0 : i32
    %c0_i32_0 = arith.constant 0 : i32
    %c0_i32_1 = arith.constant 0 : i32
    return %c0_i32, %c0_i32_0 : i32, i32
  }
  func.func @transform_29(%arg0: i32) -> (i32, i32) {
    %c0_i32 = arith.constant 0 : i32
    %c0_i32_0 = arith.constant 0 : i32
    %c0_i32_1 = arith.constant 0 : i32
    return %c0_i32, %c0_i32_0 : i32, i32
  }
  func.func @transform_30(%arg0: i32) -> (i32, i32) {
    %c0_i32 = arith.constant 0 : i32
    %c0_i32_0 = arith.constant 0 : i32
    %c0_i32_1 = arith.constant 0 : i32
    return %c0_i32, %c0_i32_0 : i32, i32
  }
  func.func @transform_31(%arg0: i32) -> (i32, i32) {
    %c0_i32 = arith.constant 0 : i32
    %c0_i32_0 = arith.constant 0 : i32
    %c0_i32_1 = arith.constant 0 : i32
    return %c0_i32, %c0_i32_0 : i32, i32
  }
  func.func @transform_32(%arg0: i32) -> (i32, i32) {
    %c0_i32 = arith.constant 0 : i32
    %c0_i32_0 = arith.constant 0 : i32
    %c0_i32_1 = arith.constant 0 : i32
    return %c0_i32, %c0_i32_0 : i32, i32
  }
  func.func @transform_33(%arg0: i32) -> (i32, i32) {
    %c0_i32 = arith.constant 0 : i32
    %c0_i32_0 = arith.constant 0 : i32
    return %arg0, %c0_i32 : i32, i32
  }
}

</mosaic_0001>

<llo_original>
// kernel: ple_forward.1
$region0: #{ple_forward.1}
  #allocation0 [shape = 'u32[]', space=smem, size = 0x4, offset = 0x4, fixed_abs, tag = 'smem constant byte address 0x4 - core index']
  #allocation1 [shape = 'u32[72,128]{1,0:T(1,128)}', space=vmem, size = 0x9000, scoped, tag = 'internal scratch']
  %s0 = inlined_call_operand.smem [shape: u32[34], index: -1, kind: input, shape index: {}]
  %s1 = sld [smem:[%s0]]
  %s2 = scalar_lea.smem %s0, 1
  %s3 = sld [smem:[%s2]]
  %s4 = scalar_lea.smem %s0, 2
  %s5 = sld [smem:[%s4]]
  %s6 = scalar_lea.smem %s0, 3
  %s7 = sld [smem:[%s6]]
  %s8 = scalar_lea.smem %s0, 4
  %s9 = sld [smem:[%s8]]
  %s10 = scalar_lea.smem %s0, 5
  %s11 = sld [smem:[%s10]]
  %s12 = scalar_lea.smem %s0, 6
  %s13 = sld [smem:[%s12]]
  %s14 = scalar_lea.smem %s0, 7
  %s15 = sld [smem:[%s14]]
  %s16 = scalar_lea.smem %s0, 8
  %s17 = sld [smem:[%s16]]
  %s18 = scalar_lea.smem %s0, 9
  %s19 = sld [smem:[%s18]]
  %s20 = scalar_lea.smem %s0, 10
  %s21 = sld [smem:[%s20]]
  %s22 = scalar_lea.smem %s0, 11
  %s23 = sld [smem:[%s22]]
  %s24 = scalar_lea.smem %s0, 12
  %s25 = sld [smem:[%s24]]
  %s26 = scalar_lea.smem %s0, 13
  %s27 = sld [smem:[%s26]]
  %s28 = scalar_lea.smem %s0, 14
  %s29 = sld [smem:[%s28]]
  %s30 = scalar_lea.smem %s0, 15
  %s31 = sld [smem:[%s30]]
  %s32 = scalar_lea.smem %s0, 16
  %s33 = sld [smem:[%s32]]
  %s34 = scalar_lea.smem %s0, 17
  %s35 = sld [smem:[%s34]]
  %s36 = scalar_lea.smem %s0, 18
  %s37 = sld [smem:[%s36]]
  %s38 = scalar_lea.smem %s0, 19
  %s39 = sld [smem:[%s38]]
  %s40 = scalar_lea.smem %s0, 20
  %s41 = sld [smem:[%s40]]
  %s42 = scalar_lea.smem %s0, 21
  %s43 = sld [smem:[%s42]]
  %s44 = scalar_lea.smem %s0, 22
  %s45 = sld [smem:[%s44]]
  %s46 = scalar_lea.smem %s0, 23
  %s47 = sld [smem:[%s46]]
  %s48 = scalar_lea.smem %s0, 24
  %s49 = sld [smem:[%s48]]
  %s50 = scalar_lea.smem %s0, 25
  %s51 = sld [smem:[%s50]]
  %s52 = scalar_lea.smem %s0, 26
  %s53 = sld [smem:[%s52]]
  %s54 = scalar_lea.smem %s0, 27
  %s55 = sld [smem:[%s54]]
  %s56 = scalar_lea.smem %s0, 28
  %s57 = sld [smem:[%s56]]
  %s58 = scalar_lea.smem %s0, 29
  %s59 = sld [smem:[%s58]]
  %s60 = scalar_lea.smem %s0, 30
  %s61 = sld [smem:[%s60]]
  %s62 = scalar_lea.smem %s0, 31
  %s63 = sld [smem:[%s62]]
  %s64 = scalar_lea.smem %s0, 32
  %s65 = sld [smem:[%s64]]
  %s66 = scalar_lea.smem %s0, 33
  %s67 = sld [smem:[%s66]]
  %s68 = sld [smem:[#allocation0]]
  $region142: #{ple_forward.1} parent=0
    _
  %s70 = ssub.s32 1, %s68
  %s71 = scalar_select 0, %s70, %s68
  // Predicated region
  $region2: #{ple_forward.1} parent=0 // pred_check
    _
  $region3: #{ple_forward.1} parent=0 // pred_check_branch
    %73 = sbr.rel (0) target = $region5
  $region4: #{ple_forward.1} parent=0 // pred_region
    _
  $region5: #{ple_forward.1} parent=0 // pred_fallthru
    _
  // Predicated region
  $region6: #{ple_forward.1} parent=0 // pred_check
    _
  $region7: #{ple_forward.1} parent=0 // pred_check_branch
    %75 = sbr.rel (0) target = $region9
  $region8: #{ple_forward.1} parent=0 // pred_region
    _
  $region9: #{ple_forward.1} parent=0 // pred_fallthru
    _
  // Predicated region
  $region10: #{ple_forward.1} parent=0 // pred_check
    _
  $region11: #{ple_forward.1} parent=0 // pred_check_branch
    %77 = sbr.rel (0) target = $region13
  $region12: #{ple_forward.1} parent=0 // pred_region
    _
  $region13: #{ple_forward.1} parent=0 // pred_fallthru
    _
  // Predicated region
  $region14: #{ple_forward.1} parent=0 // pred_check
    _
  $region15: #{ple_forward.1} parent=0 // pred_check_branch
    %79 = sbr.rel (0) target = $region17
  $region16: #{ple_forward.1} parent=0 // pred_region
    _
  $region17: #{ple_forward.1} parent=0 // pred_fallthru
    _
  // Predicated region
  $region18: #{ple_forward.1} parent=0 // pred_check
    _
  $region19: #{ple_forward.1} parent=0 // pred_check_branch
    %81 = sbr.rel (0) target = $region21
  $region20: #{ple_forward.1} parent=0 // pred_region
    _
  $region21: #{ple_forward.1} parent=0 // pred_fallthru
    _
  // Predicated region
  $region22: #{ple_forward.1} parent=0 // pred_check
    _
  $region23: #{ple_forward.1} parent=0 // pred_check_branch
    %83 = sbr.rel (0) target = $region25
  $region24: #{ple_forward.1} parent=0 // pred_region
    _
  $region25: #{ple_forward.1} parent=0 // pred_fallthru
    _
  // Predicated region
  $region26: #{ple_forward.1} parent=0 // pred_check
    _
  $region27: #{ple_forward.1} parent=0 // pred_check_branch
    %85 = sbr.rel (0) target = $region29
  $region28: #{ple_forward.1} parent=0 // pred_region
    _
  $region29: #{ple_forward.1} parent=0 // pred_fallthru
    _
  // Predicated region
  $region30: #{ple_forward.1} parent=0 // pred_check
    _
  $region31: #{ple_forward.1} parent=0 // pred_check_branch
    %87 = sbr.rel (0) target = $region33
  $region32: #{ple_forward.1} parent=0 // pred_region
    _
  $region33: #{ple_forward.1} parent=0 // pred_fallthru
    _
  // Predicated region
  $region34: #{ple_forward.1} parent=0 // pred_check
    _
  $region35: #{ple_forward.1} parent=0 // pred_check_branch
    %89 = sbr.rel (0) target = $region37
  $region36: #{ple_forward.1} parent=0 // pred_region
    _
  $region37: #{ple_forward.1} parent=0 // pred_fallthru
    _
  // Predicated region
  $region38: #{ple_forward.1} parent=0 // pred_check
    _
  $region39: #{ple_forward.1} parent=0 // pred_check_branch
    %91 = sbr.rel (0) target = $region41
  $region40: #{ple_forward.1} parent=0 // pred_region
    _
  $region41: #{ple_forward.1} parent=0 // pred_fallthru
    _
  // Predicated region
  $region42: #{ple_forward.1} parent=0 // pred_check
    _
  $region43: #{ple_forward.1} parent=0 // pred_check_branch
    %93 = sbr.rel (0) target = $region45
  $region44: #{ple_forward.1} parent=0 // pred_region
    _
  $region45: #{ple_forward.1} parent=0 // pred_fallthru
    _
  // Predicated region
  $region46: #{ple_forward.1} parent=0 // pred_check
    _
  $region47: #{ple_forward.1} parent=0 // pred_check_branch
    %95 = sbr.rel (0) target = $region49
  $region48: #{ple_forward.1} parent=0 // pred_region
    _
  $region49: #{ple_forward.1} parent=0 // pred_fallthru
    _
  // Predicated region
  $region50: #{ple_forward.1} parent=0 // pred_check
    _
  $region51: #{ple_forward.1} parent=0 // pred_check_branch
    %97 = sbr.rel (0) target = $region53
  $region52: #{ple_forward.1} parent=0 // pred_region
    _
  $region53: #{ple_forward.1} parent=0 // pred_fallthru
    _
  // Predicated region
  $region54: #{ple_forward.1} parent=0 // pred_check
    _
  $region55: #{ple_forward.1} parent=0 // pred_check_branch
    %99 = sbr.rel (0) target = $region57
  $region56: #{ple_forward.1} parent=0 // pred_region
    _
  $region57: #{ple_forward.1} parent=0 // pred_fallthru
    _
  // Predicated region
  $region58: #{ple_forward.1} parent=0 // pred_check
    _
  $region59: #{ple_forward.1} parent=0 // pred_check_branch
    %101 = sbr.rel (0) target = $region61
  $region60: #{ple_forward.1} parent=0 // pred_region
    _
  $region61: #{ple_forward.1} parent=0 // pred_fallthru
    _
  // Predicated region
  $region62: #{ple_forward.1} parent=0 // pred_check
    _
  $region63: #{ple_forward.1} parent=0 // pred_check_branch
    %103 = sbr.rel (0) target = $region65
  $region64: #{ple_forward.1} parent=0 // pred_region
    _
  $region65: #{ple_forward.1} parent=0 // pred_fallthru
    _
  // Predicated region
  $region66: #{ple_forward.1} parent=0 // pred_check
    _
  $region67: #{ple_forward.1} parent=0 // pred_check_branch
    %105 = sbr.rel (0) target = $region69
  $region68: #{ple_forward.1} parent=0 // pred_region
    _
  $region69: #{ple_forward.1} parent=0 // pred_fallthru
    _
  // Predicated region
  $region70: #{ple_forward.1} parent=0 // pred_check
    _
  $region71: #{ple_forward.1} parent=0 // pred_check_branch
    %107 = sbr.rel (0) target = $region73
  $region72: #{ple_forward.1} parent=0 // pred_region
    _
  $region73: #{ple_forward.1} parent=0 // pred_fallthru
    _
  // Predicated region
  $region74: #{ple_forward.1} parent=0 // pred_check
    _
  $region75: #{ple_forward.1} parent=0 // pred_check_branch
    %109 = sbr.rel (0) target = $region77
  $region76: #{ple_forward.1} parent=0 // pred_region
    _
  $region77: #{ple_forward.1} parent=0 // pred_fallthru
    _
  // Predicated region
  $region78: #{ple_forward.1} parent=0 // pred_check
    _
  $region79: #{ple_forward.1} parent=0 // pred_check_branch
    %111 = sbr.rel (0) target = $region81
  $region80: #{ple_forward.1} parent=0 // pred_region
    _
  $region81: #{ple_forward.1} parent=0 // pred_fallthru
    _
  // Predicated region
  $region82: #{ple_forward.1} parent=0 // pred_check
    _
  $region83: #{ple_forward.1} parent=0 // pred_check_branch
    %113 = sbr.rel (0) target = $region85
  $region84: #{ple_forward.1} parent=0 // pred_region
    _
  $region85: #{ple_forward.1} parent=0 // pred_fallthru
    _
  // Predicated region
  $region86: #{ple_forward.1} parent=0 // pred_check
    _
  $region87: #{ple_forward.1} parent=0 // pred_check_branch
    %115 = sbr.rel (0) target = $region89
  $region88: #{ple_forward.1} parent=0 // pred_region
    _
  $region89: #{ple_forward.1} parent=0 // pred_fallthru
    _
  // Predicated region
  $region90: #{ple_forward.1} parent=0 // pred_check
    _
  $region91: #{ple_forward.1} parent=0 // pred_check_branch
    %117 = sbr.rel (0) target = $region93
  $region92: #{ple_forward.1} parent=0 // pred_region
    _
  $region93: #{ple_forward.1} parent=0 // pred_fallthru
    _
  // Predicated region
  $region94: #{ple_forward.1} parent=0 // pred_check
    _
  $region95: #{ple_forward.1} parent=0 // pred_check_branch
    %119 = sbr.rel (0) target = $region97
  $region96: #{ple_forward.1} parent=0 // pred_region
    _
  $region97: #{ple_forward.1} parent=0 // pred_fallthru
    _
  // Predicated region
  $region98: #{ple_forward.1} parent=0 // pred_check
    _
  $region99: #{ple_forward.1} parent=0 // pred_check_branch
    %121 = sbr.rel (0) target = $region101
  $region100: #{ple_forward.1} parent=0 // pred_region
    _
  $region101: #{ple_forward.1} parent=0 // pred_fallthru
    _
  // Predicated region
  $region102: #{ple_forward.1} parent=0 // pred_check
    _
  $region103: #{ple_forward.1} parent=0 // pred_check_branch
    %123 = sbr.rel (0) target = $region105
  $region104: #{ple_forward.1} parent=0 // pred_region
    _
  $region105: #{ple_forward.1} parent=0 // pred_fallthru
    _
  // Predicated region
  $region106: #{ple_forward.1} parent=0 // pred_check
    _
  $region107: #{ple_forward.1} parent=0 // pred_check_branch
    %125 = sbr.rel (0) target = $region109
  $region108: #{ple_forward.1} parent=0 // pred_region
    _
  $region109: #{ple_forward.1} parent=0 // pred_fallthru
    _
  // Predicated region
  $region110: #{ple_forward.1} parent=0 // pred_check
    _
  $region111: #{ple_forward.1} parent=0 // pred_check_branch
    %127 = sbr.rel (0) target = $region113
  $region112: #{ple_forward.1} parent=0 // pred_region
    _
  $region113: #{ple_forward.1} parent=0 // pred_fallthru
    _
  // Predicated region
  $region114: #{ple_forward.1} parent=0 // pred_check
    _
  $region115: #{ple_forward.1} parent=0 // pred_check_branch
    %129 = sbr.rel (0) target = $region117
  $region116: #{ple_forward.1} parent=0 // pred_region
    _
  $region117: #{ple_forward.1} parent=0 // pred_fallthru
    _
  // Predicated region
  $region118: #{ple_forward.1} parent=0 // pred_check
    _
  $region119: #{ple_forward.1} parent=0 // pred_check_branch
    %131 = sbr.rel (0) target = $region121
  $region120: #{ple_forward.1} parent=0 // pred_region
    _
  $region121: #{ple_forward.1} parent=0 // pred_fallthru
    _
  // Predicated region
  $region122: #{ple_forward.1} parent=0 // pred_check
    _
  $region123: #{ple_forward.1} parent=0 // pred_check_branch
    %133 = sbr.rel (0) target = $region125
  $region124: #{ple_forward.1} parent=0 // pred_region
    _
  $region125: #{ple_forward.1} parent=0 // pred_fallthru
    _
  // Predicated region
  $region126: #{ple_forward.1} parent=0 // pred_check
    _
  $region127: #{ple_forward.1} parent=0 // pred_check_branch
    %135 = sbr.rel (0) target = $region129
  $region128: #{ple_forward.1} parent=0 // pred_region
    _
  $region129: #{ple_forward.1} parent=0 // pred_fallthru
    _
  // Predicated region
  $region130: #{ple_forward.1} parent=0 // pred_check
    _
  $region131: #{ple_forward.1} parent=0 // pred_check_branch
    %137 = sbr.rel (0) target = $region133
  $region132: #{ple_forward.1} parent=0 // pred_region
    _
  $region133: #{ple_forward.1} parent=0 // pred_fallthru
    _
  %v139 = vld [vmem:[%s1] sm:$0xff]
  %v140 = vpack.c.bf16 %v139, %v139
  %v141 = vld [vmem:[%s3] sm:$0xff]
  %v142 = vld [vmem:[%s3 + $0x8] sm:$0xff]
  %v143 = vld [vmem:[%s3 + $0x10] sm:$0xff]
  %v144 = vld [vmem:[%s3 + $0x18] sm:$0xff]
  %v145 = vld [vmem:[%s5] sm:$0x3]
  %v147 = vperm.slane %v145, 0
  %v148 = vperm.slane %v145, 1
  %v155 = vunpack.c.l.b16 %v141
  %v156 = vunpack.c.h.b16 %v141
  %v157 = vunpack.c.l.b16 %v142
  %v158 = vunpack.c.h.b16 %v142
  %v159 = vunpack.c.l.b16 %v143
  %v160 = vunpack.c.h.b16 %v143
  %v161 = vunpack.c.l.b16 %v144
  %v162 = vunpack.c.h.b16 %v144
  %v163 = vpack.c.b16 %v157, %v155
  %v164 = vpack.c.b16 %v158, %v156
  %v165 = vpack.c.b16 %v161, %v159
  %v166 = vpack.c.b16 %v162, %v160
  %vm171 = vcmask 261120
  %v173 = vsel %vm171, %v140, 0
  %175 = vmatpush.bf16.msra.mxu0 0
  %176 = vmatpush.bf16.msra.mxu0 0
  %177 = vmatpush.bf16.msra.mxu0 0
  %178 = vmatpush.bf16.msra.mxu0 0
  %179 = vmatpush.bf16.msra.mxu0 0
  %180 = vmatpush.bf16.msra.mxu0 0
  %181 = vmatpush.bf16.msra.mxu0 %v165
  %182 = vmatpush.bf16.msra.mxu0 %v163
  %183 = vmatmul.bf16.gmra.mxu0 %v173
  %v184 = vpop.f32.mrf.mxu0
  %v185 = vadd.f32 %v147, %v184
  %v186 = vpop.f32.mrf.mxu0
  %187 = vdwg.mxu0
  %188 = vmatpush.bf16.msra.mxu0 0
  %189 = vmatpush.bf16.msra.mxu0 0
  %190 = vmatpush.bf16.msra.mxu0 0
  %191 = vmatpush.bf16.msra.mxu0 0
  %192 = vmatpush.bf16.msra.mxu0 0
  %193 = vmatpush.bf16.msra.mxu0 0
  %194 = vmatpush.bf16.msra.mxu0 %v166
  %195 = vmatpush.bf16.msra.mxu0 %v164
  %196 = vmatmul.bf16.gmra.mxu0 %v173
  %v197 = vpop.f32.mrf.mxu0
  %v198 = vadd.f32 %v148, %v197
  %v199 = vpop.f32.mrf.mxu0
  %200 = vdwg.mxu0
  %v201 = vmax.f32 %v185, 0.0
  %v202 = vmax.f32 %v198, 0.0
  %v203 = vld [vmem:[%s7] sm:$0xf]
  %v204 = vld [vmem:[%s7 + $0x4] sm:$0xf]
  %v205 = vld [vmem:[%s7 + $0x8] sm:$0xf]
  %v206 = vld [vmem:[%s7 + $0xc] sm:$0xf]
  %v211 = vunpack.c.l.b16 %v203
  %v212 = vunpack.c.l.b16 %v204
  %v213 = vunpack.c.l.b16 %v205
  %v214 = vunpack.c.l.b16 %v206
  %v215 = vpack.c.b16 %v212, %v211
  %v216 = vpack.c.b16 %v214, %v213
  %219 = vmatpush.bf16.msra.mxu0 0
  %220 = vmatpush.bf16.msra.mxu0 0
  %221 = vmatpush.bf16.msra.mxu0 0
  %222 = vmatpush.bf16.msra.mxu0 0
  %223 = vmatpush.bf16.msra.mxu0 0
  %224 = vmatpush.bf16.msra.mxu0 0
  %225 = vmatpush.bf16.msra.mxu0 %v216
  %226 = vmatpush.bf16.msra.mxu0 %v215
  %227 = vmatmul.bf16.gmra.mxu0 %v173
  %v228 = vpop.f32.mrf.mxu0
  %v229 = vadd.f32 0.0, %v228
  %v230 = vpop.f32.mrf.mxu0
  %231 = vdwg.mxu0
  %vm232 = vcmask 31744
  %v233 = vsel %vm232, %v229, -inf
  %234 = vmax.xlane.f32.xlu0 %v233
  %v235 = vpop.xlane.xlu0 %234
  %v236 = vsub.f32 %v229, %v235
  %v237 = vmul.f32 %v236, 1.442695
  %v238 = vpow.pop %v237
  %v239 = vsel %vm232, %v238, 0.0
  %240 = vadd.xlane.f32.xlu0 %v239
  %v241 = vpop.xlane.xlu0 %240
  %v242 = vrcp.pop %v241
  %v243 = vmul.f32 %v238, %v242
  %vm244 = vcmask 72736
  %v245 = vsel %vm244, %v229, -inf
  %246 = vmax.xlane.f32.xlu0 %v245
  %v247 = vpop.xlane.xlu0 %246
  %v248 = vsub.f32 %v229, %v247
  %v249 = vmul.f32 %v248, 1.442695
  %v250 = vpow.pop %v249
  %252 = vrot.lane.b32.xlu0 %v250, 124
  %v253 = vpop.permute.xlu0 %252
  %vm255 = vcmask 39936
  %v256 = vsel %vm255, %v253, 0.0
  %257 = vadd.xlane.f32.xlu0 %v256
  %v258 = vpop.xlane.xlu0 %257
  %v259 = vrcp.pop %v258
  %v260 = vmul.f32 %v250, %v259
  %vm261 = vcmask 130120
  %v262 = vsel %vm261, %v229, -inf
  %263 = vmax.xlane.f32.xlu0 %v262
  %v264 = vpop.xlane.xlu0 %263
  %v265 = vsub.f32 %v229, %v264
  %v266 = vmul.f32 %v265, 1.442695
  %v267 = vpow.pop %v266
  %269 = vrot.lane.b32.xlu0 %v267, 119
  %v270 = vpop.permute.xlu0 %269
  %vm272 = vcmask 56320
  %v273 = vsel %vm272, %v270, 0.0
  %274 = vadd.xlane.f32.xlu0 %v273
  %v275 = vpop.xlane.xlu0 %274
  %v276 = vrcp.pop %v275
  %v277 = vmul.f32 %v267, %v276
  %v278 = vld [vmem:[%s37] sm:$0x3]
  %v279 = vpack.c.bf16 %v243, %v243
  %v281 = vsel %vm232, %v279, 0
  %vm283 = vcmask 1041408
  %v285 = vsel %vm283, %v278, 0
  %287 = vmatpush.bf16.msra.mxu0 0
  %288 = vmatpush.bf16.msra.mxu0 0
  %289 = vmatpush.bf16.msra.mxu0 0
  %290 = vmatpush.bf16.msra.mxu0 0
  %291 = vmatpush.bf16.msra.mxu0 0
  %292 = vmatpush.bf16.msra.mxu0 0
  %293 = vmatpush.bf16.msra.mxu0 0
  %294 = vmatpush.bf16.msra.mxu0 %v285
  %295 = vmatmul.bf16.gmra.mxu0 %v281
  %v296 = vpop.f32.mrf.mxu0
  %v297 = vadd.f32 0.0, %v296
  %v298 = vpop.f32.mrf.mxu0
  %299 = vdwg.mxu0
  %v300 = vmul.f32 %v201, %v297
  %v301 = vld [vmem:[%s39] sm:$0xf]
  %v302 = vld [vmem:[%s39 + $0x4] sm:$0xf]
  %v303 = vld [vmem:[%s39 + $0x8] sm:$0xf]
  %v304 = vld [vmem:[%s39 + $0xc] sm:$0xf]
  %v305 = vld [vmem:[%s39 + $0x10] sm:$0xf]
  %v306 = vld [vmem:[%s39 + $0x14] sm:$0xf]
  %v307 = vld [vmem:[%s39 + $0x18] sm:$0xf]
  %v308 = vld [vmem:[%s39 + $0x1c] sm:$0xf]
  %v309 = vpack.c.bf16 %v300, %v300
  %v310 = vld [vmem:[%s41] sm:$0x3]
  %v312 = vsel %vm283, %v310, 0
  %314 = vmatpush.bf16.msra.mxu0 0
  %315 = vmatpush.bf16.msra.mxu0 0
  %316 = vmatpush.bf16.msra.mxu0 0
  %317 = vmatpush.bf16.msra.mxu0 0
  %318 = vmatpush.bf16.msra.mxu0 0
  %319 = vmatpush.bf16.msra.mxu0 0
  %320 = vmatpush.bf16.msra.mxu0 0
  %321 = vmatpush.bf16.msra.mxu0 %v312
  %322 = vmatmul.bf16.gmra.mxu0 %v281
  %v323 = vpop.f32.mrf.mxu0
  %v324 = vadd.f32 0.0, %v323
  %v325 = vpop.f32.mrf.mxu0
  %326 = vdwg.mxu0
  %328 = vrot.lane.b32.xlu0 %v324, 32
  %v329 = vpop.permute.xlu0 %328
  %v331 = vmul.f32 %v202, %v329
  %v332 = vpack.c.bf16 %v331, %v331
  %334 = vrot.lane.b32.xlu0 %v332, 96
  %v335 = vpop.permute.xlu0 %334
  %v344 = vunpack.c.l.b16 %v301
  %v345 = vunpack.c.l.b16 %v302
  %v346 = vunpack.c.l.b16 %v303
  %v347 = vunpack.c.l.b16 %v304
  %v348 = vunpack.c.l.b16 %v305
  %v349 = vunpack.c.l.b16 %v306
  %v350 = vunpack.c.l.b16 %v307
  %v351 = vunpack.c.l.b16 %v308
  %v352 = vpack.c.b16 %v345, %v344
  %v353 = vpack.c.b16 %v347, %v346
  %v354 = vpack.c.b16 %v349, %v348
  %v355 = vpack.c.b16 %v351, %v350
  %vm360 = vcmask 523264
  %v362 = vsel %vm360, %v335, 0
  %364 = vmatpush.bf16.msra.mxu0 0
  %365 = vmatpush.bf16.msra.mxu0 0
  %366 = vmatpush.bf16.msra.mxu0 0
  %367 = vmatpush.bf16.msra.mxu0 0
  %368 = vmatpush.bf16.msra.mxu0 %v355
  %369 = vmatpush.bf16.msra.mxu0 %v354
  %370 = vmatpush.bf16.msra.mxu0 %v353
  %371 = vmatpush.bf16.msra.mxu0 %v352
  %372 = vmatmul.bf16.gmra.mxu0 %v362
  %v373 = vpop.f32.mrf.mxu0
  %v374 = vadd.f32 0.0, %v373
  %v375 = vpop.f32.mrf.mxu0
  %376 = vdwg.mxu0
  %v378 = vsel %vm360, %v309, 0
  %380 = vmatpush.bf16.msra.mxu0 0
  %381 = vmatpush.bf16.msra.mxu0 0
  %382 = vmatpush.bf16.msra.mxu0 0
  %383 = vmatpush.bf16.msra.mxu0 0
  %384 = vmatpush.bf16.msra.mxu0 %v355
  %385 = vmatpush.bf16.msra.mxu0 %v354
  %386 = vmatpush.bf16.msra.mxu0 %v353
  %387 = vmatpush.bf16.msra.mxu0 %v352
  %388 = vmatmul.bf16.gmra.mxu0 %v378
  %v389 = vpop.f32.mrf.mxu0
  %v390 = vadd.f32 %v374, %v389
  %v391 = vpop.f32.mrf.mxu0
  %392 = vdwg.mxu0
  %v393 = vld [vmem:[%s43] sm:$0x7]
  %v394 = vpack.c.bf16 %v260, %v260
  %396 = vrot.lane.b32.xlu0 %v394, 124
  %v397 = vpop.permute.xlu0 %396
  %v399 = vsel %vm255, %v397, 0
  %vm401 = vcmask 1042432
  %v402 = vsel %vm283, 4294967295, 65535
  %v403 = vsel %vm401, %v402, 0
  %v405 = vand.u32 %v393, %v403
  %407 = vmatpush.bf16.msra.mxu0 0
  %408 = vmatpush.bf16.msra.mxu0 0
  %409 = vmatpush.bf16.msra.mxu0 0
  %410 = vmatpush.bf16.msra.mxu0 0
  %411 = vmatpush.bf16.msra.mxu0 0
  %412 = vmatpush.bf16.msra.mxu0 0
  %413 = vmatpush.bf16.msra.mxu0 0
  %414 = vmatpush.bf16.msra.mxu0 %v405
  %415 = vmatmul.bf16.gmra.mxu0 %v399
  %v416 = vpop.f32.mrf.mxu0
  %v417 = vadd.f32 0.0, %v416
  %v418 = vpop.f32.mrf.mxu0
  %419 = vdwg.mxu0
  %421 = vrot.lane.b32.xlu0 %v417, 64
  %v422 = vpop.permute.xlu0 %421
  %v424 = vmul.f32 %v201, %v422
  %v425 = vmul.f32 %v202, %v422
  %v426 = vld [vmem:[%s45] sm:$0xf]
  %v427 = vld [vmem:[%s45 + $0x4] sm:$0xf]
  %v428 = vld [vmem:[%s45 + $0x8] sm:$0xf]
  %v429 = vld [vmem:[%s45 + $0xc] sm:$0xf]
  %v430 = vld [vmem:[%s45 + $0x10] sm:$0xf]
  %v431 = vld [vmem:[%s45 + $0x14] sm:$0xf]
  %v432 = vld [vmem:[%s45 + $0x18] sm:$0xf]
  %v433 = vld [vmem:[%s45 + $0x1c] sm:$0xf]
  %v434 = vld [vmem:[%s45 + $0x20] sm:$0xf]
  %v435 = vld [vmem:[%s45 + $0x24] sm:$0xf]
  %v436 = vld [vmem:[%s45 + $0x28] sm:$0xf]
  %v437 = vld [vmem:[%s45 + $0x2c] sm:$0xf]
  %v438 = vpack.c.bf16 %v424, %v424
  %v439 = vpack.c.bf16 %v425, %v425
  %v440 = vld [vmem:[%s47] sm:$0x7]
  %v442 = vand.u32 %v440, %v403
  %444 = vmatpush.bf16.msra.mxu0 0
  %445 = vmatpush.bf16.msra.mxu0 0
  %446 = vmatpush.bf16.msra.mxu0 0
  %447 = vmatpush.bf16.msra.mxu0 0
  %448 = vmatpush.bf16.msra.mxu0 0
  %449 = vmatpush.bf16.msra.mxu0 0
  %450 = vmatpush.bf16.msra.mxu0 0
  %451 = vmatpush.bf16.msra.mxu0 %v442
  %452 = vmatmul.bf16.gmra.mxu0 %v399
  %v453 = vpop.f32.mrf.mxu0
  %v454 = vadd.f32 0.0, %v453
  %v455 = vpop.f32.mrf.mxu0
  %456 = vdwg.mxu0
  %458 = vrot.lane.b32.xlu0 %v454, 32
  %v459 = vpop.permute.xlu0 %458
  %v461 = vmul.f32 %v202, %v459
  %v462 = vpack.c.bf16 %v461, %v461
  %464 = vrot.lane.b32.xlu0 %v462, 96
  %v465 = vpop.permute.xlu0 %464
  %v467 = vsel %vm360, %v465, 0
  %469 = vmatpush.bf16.msra.mxu0 0
  %470 = vmatpush.bf16.msra.mxu0 0
  %471 = vmatpush.bf16.msra.mxu0 0
  %472 = vmatpush.bf16.msra.mxu0 0
  %473 = vmatpush.bf16.msra.mxu0 %v355
  %474 = vmatpush.bf16.msra.mxu0 %v354
  %475 = vmatpush.bf16.msra.mxu0 %v353
  %476 = vmatpush.bf16.msra.mxu0 %v352
  %477 = vmatmul.bf16.gmra.mxu0 %v467
  %v478 = vpop.f32.mrf.mxu0
  %v479 = vadd.f32 0.0, %v478
  %v480 = vpop.f32.mrf.mxu0
  %481 = vdwg.mxu0
  %484 = vrot.lane.b32.xlu0 %v438, 64
  %v485 = vpop.permute.xlu0 %484
  %486 = vrot.lane.b32.xlu0 %v439, 64
  %v487 = vpop.permute.xlu0 %486
  %vm488 = vcmask 523264
  %v489 = vsel %vm488, %v485, %v487
  %v502 = vunpack.c.l.b16 %v426
  %v503 = vunpack.c.l.b16 %v427
  %v504 = vunpack.c.l.b16 %v428
  %v505 = vunpack.c.l.b16 %v429
  %v506 = vunpack.c.l.b16 %v430
  %v507 = vunpack.c.l.b16 %v431
  %v508 = vunpack.c.l.b16 %v432
  %v509 = vunpack.c.l.b16 %v433
  %v510 = vunpack.c.l.b16 %v434
  %v511 = vunpack.c.l.b16 %v435
  %v512 = vunpack.c.l.b16 %v436
  %v513 = vunpack.c.l.b16 %v437
  %v514 = vpack.c.b16 %v503, %v502
  %v515 = vpack.c.b16 %v505, %v504
  %v516 = vpack.c.b16 %v507, %v506
  %v517 = vpack.c.b16 %v509, %v508
  %v518 = vpack.c.b16 %v511, %v510
  %v519 = vpack.c.b16 %v513, %v512
  %vm526 = vcmask 785408
  %v528 = vsel %vm526, %v489, 0
  %530 = vmatpush.bf16.msra.mxu0 0
  %531 = vmatpush.bf16.msra.mxu0 0
  %532 = vmatpush.bf16.msra.mxu0 %v519
  %533 = vmatpush.bf16.msra.mxu0 %v518
  %534 = vmatpush.bf16.msra.mxu0 %v517
  %535 = vmatpush.bf16.msra.mxu0 %v516
  %536 = vmatpush.bf16.msra.mxu0 %v515
  %537 = vmatpush.bf16.msra.mxu0 %v514
  %538 = vmatmul.bf16.gmra.mxu0 %v528
  %v539 = vpop.f32.mrf.mxu0
  %v540 = vadd.f32 %v479, %v539
  %v541 = vpop.f32.mrf.mxu0
  %542 = vdwg.mxu0
  %v543 = vld [vmem:[%s49] sm:$0xf]
  %v544 = vpack.c.bf16 %v277, %v277
  %546 = vrot.lane.b32.xlu0 %v544, 119
  %v547 = vpop.permute.xlu0 %546
  %v549 = vsel %vm272, %v547, 0
  %vm551 = vcmask 1043456
  %v552 = vsel %vm401, 4294967295, 65535
  %v553 = vsel %vm551, %v552, 0
  %v555 = vand.u32 %v543, %v553
  %557 = vmatpush.bf16.msra.mxu0 0
  %558 = vmatpush.bf16.msra.mxu0 0
  %559 = vmatpush.bf16.msra.mxu0 0
  %560 = vmatpush.bf16.msra.mxu0 0
  %561 = vmatpush.bf16.msra.mxu0 0
  %562 = vmatpush.bf16.msra.mxu0 0
  %563 = vmatpush.bf16.msra.mxu0 0
  %564 = vmatpush.bf16.msra.mxu0 %v555
  %565 = vmatmul.bf16.gmra.mxu0 %v549
  %v566 = vpop.f32.mrf.mxu0
  %v567 = vadd.f32 0.0, %v566
  %v568 = vpop.f32.mrf.mxu0
  %569 = vdwg.mxu0
  %v570 = vmul.f32 %v201, %v567
  %v571 = vpack.c.bf16 %v570, %v570
  %v572 = vld [vmem:[%s51] sm:$0xf]
  %v574 = vand.u32 %v572, %v553
  %576 = vmatpush.bf16.msra.mxu0 0
  %577 = vmatpush.bf16.msra.mxu0 0
  %578 = vmatpush.bf16.msra.mxu0 0
  %579 = vmatpush.bf16.msra.mxu0 0
  %580 = vmatpush.bf16.msra.mxu0 0
  %581 = vmatpush.bf16.msra.mxu0 0
  %582 = vmatpush.bf16.msra.mxu0 0
  %583 = vmatpush.bf16.msra.mxu0 %v574
  %584 = vmatmul.bf16.gmra.mxu0 %v549
  %v585 = vpop.f32.mrf.mxu0
  %v586 = vadd.f32 0.0, %v585
  %v587 = vpop.f32.mrf.mxu0
  %588 = vdwg.mxu0
  %590 = vrot.lane.b32.xlu0 %v586, 64
  %v591 = vpop.permute.xlu0 %590
  %v593 = vmul.f32 %v201, %v591
  %v594 = vmul.f32 %v202, %v591
  %v595 = vpack.c.bf16 %v593, %v593
  %v596 = vpack.c.bf16 %v594, %v594
  %599 = vrot.lane.b32.xlu0 %v595, 64
  %v600 = vpop.permute.xlu0 %599
  %601 = vrot.lane.b32.xlu0 %v596, 64
  %v602 = vpop.permute.xlu0 %601
  %v603 = vsel %vm488, %v600, %v602
  %v605 = vsel %vm526, %v603, 0
  %607 = vmatpush.bf16.msra.mxu0 0
  %608 = vmatpush.bf16.msra.mxu0 0
  %609 = vmatpush.bf16.msra.mxu0 %v519
  %610 = vmatpush.bf16.msra.mxu0 %v518
  %611 = vmatpush.bf16.msra.mxu0 %v517
  %612 = vmatpush.bf16.msra.mxu0 %v516
  %613 = vmatpush.bf16.msra.mxu0 %v515
  %614 = vmatpush.bf16.msra.mxu0 %v514
  %615 = vmatmul.bf16.gmra.mxu0 %v605
  %v616 = vpop.f32.mrf.mxu0
  %v617 = vadd.f32 0.0, %v616
  %v618 = vpop.f32.mrf.mxu0
  %619 = vdwg.mxu0
  %v621 = vsel %vm360, %v571, 0
  %623 = vmatpush.bf16.msra.mxu0 0
  %624 = vmatpush.bf16.msra.mxu0 0
  %625 = vmatpush.bf16.msra.mxu0 0
  %626 = vmatpush.bf16.msra.mxu0 0
  %627 = vmatpush.bf16.msra.mxu0 %v355
  %628 = vmatpush.bf16.msra.mxu0 %v354
  %629 = vmatpush.bf16.msra.mxu0 %v353
  %630 = vmatpush.bf16.msra.mxu0 %v352
  %631 = vmatmul.bf16.gmra.mxu0 %v621
  %v632 = vpop.f32.mrf.mxu0
  %v633 = vadd.f32 %v617, %v632
  %v634 = vpop.f32.mrf.mxu0
  %635 = vdwg.mxu0
  %v636 = vld [vmem:[%s53] sm:$0xf]
  %v638 = vand.u32 %v636, %v553
  %640 = vmatpush.bf16.msra.mxu0 0
  %641 = vmatpush.bf16.msra.mxu0 0
  %642 = vmatpush.bf16.msra.mxu0 0
  %643 = vmatpush.bf16.msra.mxu0 0
  %644 = vmatpush.bf16.msra.mxu0 0
  %645 = vmatpush.bf16.msra.mxu0 0
  %646 = vmatpush.bf16.msra.mxu0 0
  %647 = vmatpush.bf16.msra.mxu0 %v638
  %648 = vmatmul.bf16.gmra.mxu0 %v549
  %v649 = vpop.f32.mrf.mxu0
  %v650 = vadd.f32 0.0, %v649
  %v651 = vpop.f32.mrf.mxu0
  %652 = vdwg.mxu0
  %654 = vrot.lane.b32.xlu0 %v650, 32
  %v655 = vpop.permute.xlu0 %654
  %v657 = vmul.f32 %v202, %v655
  %v658 = vpack.c.bf16 %v657, %v657
  %660 = vrot.lane.b32.xlu0 %v658, 96
  %v661 = vpop.permute.xlu0 %660
  %v663 = vsel %vm360, %v661, 0
  %665 = vmatpush.bf16.msra.mxu0 0
  %666 = vmatpush.bf16.msra.mxu0 0
  %667 = vmatpush.bf16.msra.mxu0 0
  %668 = vmatpush.bf16.msra.mxu0 0
  %669 = vmatpush.bf16.msra.mxu0 %v355
  %670 = vmatpush.bf16.msra.mxu0 %v354
  %671 = vmatpush.bf16.msra.mxu0 %v353
  %672 = vmatpush.bf16.msra.mxu0 %v352
  %673 = vmatmul.bf16.gmra.mxu0 %v663
  %v674 = vpop.f32.mrf.mxu0
  %v675 = vadd.f32 0.0, %v674
  %v676 = vpop.f32.mrf.mxu0
  %677 = vdwg.mxu0
  %v678 = vadd.f32 %v633, %v675
  %v679 = vpack.c.bf16 %v678, %v678
  %v680 = vld [vmem:[%s9] sm:$0xf]
  %v681 = vld [vmem:[%s9 + $0x4] sm:$0xf]
  %v682 = vld [vmem:[%s9 + $0x8] sm:$0xf]
  %v683 = vld [vmem:[%s9 + $0xc] sm:$0xf]
  %v684 = vld [vmem:[%s11] sm:$0x1]
  %v686 = vperm.slane %v684, 0
  %v692 = vunpack.c.l.b16 %v680
  %v693 = vunpack.c.l.b16 %v681
  %v694 = vunpack.c.l.b16 %v682
  %v695 = vunpack.c.l.b16 %v683
  %v696 = vpack.c.b16 %v693, %v692
  %v697 = vpack.c.b16 %v695, %v694
  %v701 = vsel %vm171, %v679, 0
  %703 = vmatpush.bf16.msra.mxu0 0
  %704 = vmatpush.bf16.msra.mxu0 0
  %705 = vmatpush.bf16.msra.mxu0 0
  %706 = vmatpush.bf16.msra.mxu0 0
  %707 = vmatpush.bf16.msra.mxu0 0
  %708 = vmatpush.bf16.msra.mxu0 0
  %709 = vmatpush.bf16.msra.mxu0 %v697
  %710 = vmatpush.bf16.msra.mxu0 %v696
  %711 = vmatmul.bf16.gmra.mxu0 %v701
  %v712 = vpop.f32.mrf.mxu0
  %v713 = vadd.f32 %v686, %v712
  %v714 = vpop.f32.mrf.mxu0
  %715 = vdwg.mxu0
  %v716 = vmax.f32 %v713, 0.0
  %v717 = vpack.c.bf16 %v390, %v390
  %v718 = vld [vmem:[%s13] sm:$0xf]
  %v719 = vld [vmem:[%s13 + $0x4] sm:$0xf]
  %v720 = vld [vmem:[%s13 + $0x8] sm:$0xf]
  %v721 = vld [vmem:[%s13 + $0xc] sm:$0xf]
  %v722 = vld [vmem:[%s15] sm:$0x1]
  %v724 = vperm.slane %v722, 0
  %v730 = vunpack.c.l.b16 %v718
  %v731 = vunpack.c.l.b16 %v719
  %v732 = vunpack.c.l.b16 %v720
  %v733 = vunpack.c.l.b16 %v721
  %v734 = vpack.c.b16 %v731, %v730
  %v735 = vpack.c.b16 %v733, %v732
  %v739 = vsel %vm171, %v717, 0
  %741 = vmatpush.bf16.msra.mxu0 0
  %742 = vmatpush.bf16.msra.mxu0 0
  %743 = vmatpush.bf16.msra.mxu0 0
  %744 = vmatpush.bf16.msra.mxu0 0
  %745 = vmatpush.bf16.msra.mxu0 0
  %746 = vmatpush.bf16.msra.mxu0 0
  %747 = vmatpush.bf16.msra.mxu0 %v735
  %748 = vmatpush.bf16.msra.mxu0 %v734
  %749 = vmatmul.bf16.gmra.mxu0 %v739
  %v750 = vpop.f32.mrf.mxu0
  %v751 = vadd.f32 %v724, %v750
  %v752 = vpop.f32.mrf.mxu0
  %753 = vdwg.mxu0
  %v754 = vmax.f32 %v751, 0.0
  %v755 = vpack.c.bf16 %v540, %v540
  %v756 = vld [vmem:[%s17] sm:$0xf]
  %v757 = vld [vmem:[%s17 + $0x4] sm:$0xf]
  %v758 = vld [vmem:[%s17 + $0x8] sm:$0xf]
  %v759 = vld [vmem:[%s17 + $0xc] sm:$0xf]
  %v760 = vld [vmem:[%s19] sm:$0x1]
  %v762 = vperm.slane %v760, 0
  %v768 = vunpack.c.l.b16 %v756
  %v769 = vunpack.c.l.b16 %v757
  %v770 = vunpack.c.l.b16 %v758
  %v771 = vunpack.c.l.b16 %v759
  %v772 = vpack.c.b16 %v769, %v768
  %v773 = vpack.c.b16 %v771, %v770
  %v777 = vsel %vm171, %v755, 0
  %779 = vmatpush.bf16.msra.mxu0 0
  %780 = vmatpush.bf16.msra.mxu0 0
  %781 = vmatpush.bf16.msra.mxu0 0
  %782 = vmatpush.bf16.msra.mxu0 0
  %783 = vmatpush.bf16.msra.mxu0 0
  %784 = vmatpush.bf16.msra.mxu0 0
  %785 = vmatpush.bf16.msra.mxu0 %v773
  %786 = vmatpush.bf16.msra.mxu0 %v772
  %787 = vmatmul.bf16.gmra.mxu0 %v777
  %v788 = vpop.f32.mrf.mxu0
  %v789 = vadd.f32 %v762, %v788
  %v790 = vpop.f32.mrf.mxu0
  %791 = vdwg.mxu0
  %v792 = vmax.f32 %v789, 0.0
  %v793 = vld [vmem:[%s21] sm:$0xf]
  %v794 = vld [vmem:[%s21 + $0x4] sm:$0xf]
  %v795 = vld [vmem:[%s21 + $0x8] sm:$0xf]
  %v796 = vld [vmem:[%s21 + $0xc] sm:$0xf]
  %v801 = vunpack.c.l.b16 %v793
  %v802 = vunpack.c.l.b16 %v794
  %v803 = vunpack.c.l.b16 %v795
  %v804 = vunpack.c.l.b16 %v796
  %v805 = vpack.c.b16 %v802, %v801
  %v806 = vpack.c.b16 %v804, %v803
  %809 = vmatpush.bf16.msra.mxu0 0
  %810 = vmatpush.bf16.msra.mxu0 0
  %811 = vmatpush.bf16.msra.mxu0 0
  %812 = vmatpush.bf16.msra.mxu0 0
  %813 = vmatpush.bf16.msra.mxu0 0
  %814 = vmatpush.bf16.msra.mxu0 0
  %815 = vmatpush.bf16.msra.mxu0 %v806
  %816 = vmatpush.bf16.msra.mxu0 %v805
  %817 = vmatmul.bf16.gmra.mxu0 %v739
  %v818 = vpop.f32.mrf.mxu0
  %v819 = vadd.f32 0.0, %v818
  %v820 = vpop.f32.mrf.mxu0
  %821 = vdwg.mxu0
  %v822 = vsel %vm232, %v819, -inf
  %823 = vmax.xlane.f32.xlu0 %v822
  %v824 = vpop.xlane.xlu0 %823
  %v825 = vsub.f32 %v819, %v824
  %v826 = vmul.f32 %v825, 1.442695
  %v827 = vpow.pop %v826
  %v828 = vsel %vm232, %v827, 0.0
  %829 = vadd.xlane.f32.xlu0 %v828
  %v830 = vpop.xlane.xlu0 %829
  %v831 = vrcp.pop %v830
  %v832 = vmul.f32 %v827, %v831
  %v833 = vld [vmem:[%s55] sm:$0x3]
  %v834 = vpack.c.bf16 %v832, %v832
  %v836 = vsel %vm232, %v834, 0
  %v839 = vsel %vm283, %v833, 0
  %841 = vmatpush.bf16.msra.mxu0 0
  %842 = vmatpush.bf16.msra.mxu0 0
  %843 = vmatpush.bf16.msra.mxu0 0
  %844 = vmatpush.bf16.msra.mxu0 0
  %845 = vmatpush.bf16.msra.mxu0 0
  %846 = vmatpush.bf16.msra.mxu0 0
  %847 = vmatpush.bf16.msra.mxu0 0
  %848 = vmatpush.bf16.msra.mxu0 %v839
  %849 = vmatmul.bf16.gmra.mxu0 %v836
  %v850 = vpop.f32.mrf.mxu0
  %v851 = vadd.f32 0.0, %v850
  %v852 = vpop.f32.mrf.mxu0
  %853 = vdwg.mxu0
  %v854 = vmul.f32 %v754, %v851
  %v855 = vld [vmem:[%s57] sm:$0xf]
  %v856 = vld [vmem:[%s57 + $0x4] sm:$0xf]
  %v857 = vld [vmem:[%s57 + $0x8] sm:$0xf]
  %v858 = vld [vmem:[%s57 + $0xc] sm:$0xf]
  %v859 = vpack.c.bf16 %v854, %v854
  %v860 = vld [vmem:[%s59] sm:$0x3]
  %v862 = vsel %vm283, %v860, 0
  %864 = vmatpush.bf16.msra.mxu0 0
  %865 = vmatpush.bf16.msra.mxu0 0
  %866 = vmatpush.bf16.msra.mxu0 0
  %867 = vmatpush.bf16.msra.mxu0 0
  %868 = vmatpush.bf16.msra.mxu0 0
  %869 = vmatpush.bf16.msra.mxu0 0
  %870 = vmatpush.bf16.msra.mxu0 0
  %871 = vmatpush.bf16.msra.mxu0 %v862
  %872 = vmatmul.bf16.gmra.mxu0 %v836
  %v873 = vpop.f32.mrf.mxu0
  %v874 = vadd.f32 0.0, %v873
  %v875 = vpop.f32.mrf.mxu0
  %876 = vdwg.mxu0
  %v877 = vmul.f32 %v716, %v874
  %v878 = vpack.c.bf16 %v877, %v877
  %v883 = vunpack.c.l.b16 %v855
  %v884 = vunpack.c.l.b16 %v856
  %v885 = vunpack.c.l.b16 %v857
  %v886 = vunpack.c.l.b16 %v858
  %v887 = vpack.c.b16 %v884, %v883
  %v888 = vpack.c.b16 %v886, %v885
  %v892 = vsel %vm171, %v878, 0
  %894 = vmatpush.bf16.msra.mxu0 0
  %895 = vmatpush.bf16.msra.mxu0 0
  %896 = vmatpush.bf16.msra.mxu0 0
  %897 = vmatpush.bf16.msra.mxu0 0
  %898 = vmatpush.bf16.msra.mxu0 0
  %899 = vmatpush.bf16.msra.mxu0 0
  %900 = vmatpush.bf16.msra.mxu0 %v888
  %901 = vmatpush.bf16.msra.mxu0 %v887
  %902 = vmatmul.bf16.gmra.mxu0 %v892
  %v903 = vpop.f32.mrf.mxu0
  %v904 = vadd.f32 0.0, %v903
  %v905 = vpop.f32.mrf.mxu0
  %906 = vdwg.mxu0
  %v908 = vsel %vm171, %v859, 0
  %910 = vmatpush.bf16.msra.mxu0 0
  %911 = vmatpush.bf16.msra.mxu0 0
  %912 = vmatpush.bf16.msra.mxu0 0
  %913 = vmatpush.bf16.msra.mxu0 0
  %914 = vmatpush.bf16.msra.mxu0 0
  %915 = vmatpush.bf16.msra.mxu0 0
  %916 = vmatpush.bf16.msra.mxu0 %v888
  %917 = vmatpush.bf16.msra.mxu0 %v887
  %918 = vmatmul.bf16.gmra.mxu0 %v908
  %v919 = vpop.f32.mrf.mxu0
  %v920 = vadd.f32 %v904, %v919
  %v921 = vpop.f32.mrf.mxu0
  %922 = vdwg.mxu0
  %v923 = vld [vmem:[%s23] sm:$0xf]
  %v924 = vld [vmem:[%s23 + $0x4] sm:$0xf]
  %v925 = vld [vmem:[%s23 + $0x8] sm:$0xf]
  %v926 = vld [vmem:[%s23 + $0xc] sm:$0xf]
  %v931 = vunpack.c.l.b16 %v923
  %v932 = vunpack.c.l.b16 %v924
  %v933 = vunpack.c.l.b16 %v925
  %v934 = vunpack.c.l.b16 %v926
  %v935 = vpack.c.b16 %v932, %v931
  %v936 = vpack.c.b16 %v934, %v933
  %939 = vmatpush.bf16.msra.mxu0 0
  %940 = vmatpush.bf16.msra.mxu0 0
  %941 = vmatpush.bf16.msra.mxu0 0
  %942 = vmatpush.bf16.msra.mxu0 0
  %943 = vmatpush.bf16.msra.mxu0 0
  %944 = vmatpush.bf16.msra.mxu0 0
  %945 = vmatpush.bf16.msra.mxu0 %v936
  %946 = vmatpush.bf16.msra.mxu0 %v935
  %947 = vmatmul.bf16.gmra.mxu0 %v777
  %v948 = vpop.f32.mrf.mxu0
  %v949 = vadd.f32 0.0, %v948
  %v950 = vpop.f32.mrf.mxu0
  %951 = vdwg.mxu0
  %v952 = vsel %vm255, %v949, -inf
  %953 = vmax.xlane.f32.xlu0 %v952
  %v954 = vpop.xlane.xlu0 %953
  %v955 = vsub.f32 %v949, %v954
  %v956 = vmul.f32 %v955, 1.442695
  %v957 = vpow.pop %v956
  %v958 = vsel %vm255, %v957, 0.0
  %959 = vadd.xlane.f32.xlu0 %v958
  %v960 = vpop.xlane.xlu0 %959
  %v961 = vrcp.pop %v960
  %v962 = vmul.f32 %v957, %v961
  %v963 = vld [vmem:[%s61] sm:$0x7]
  %v964 = vpack.c.bf16 %v962, %v962
  %v966 = vsel %vm255, %v964, 0
  %v969 = vand.u32 %v963, %v403
  %971 = vmatpush.bf16.msra.mxu0 0
  %972 = vmatpush.bf16.msra.mxu0 0
  %973 = vmatpush.bf16.msra.mxu0 0
  %974 = vmatpush.bf16.msra.mxu0 0
  %975 = vmatpush.bf16.msra.mxu0 0
  %976 = vmatpush.bf16.msra.mxu0 0
  %977 = vmatpush.bf16.msra.mxu0 0
  %978 = vmatpush.bf16.msra.mxu0 %v969
  %979 = vmatmul.bf16.gmra.mxu0 %v966
  %v980 = vpop.f32.mrf.mxu0
  %v981 = vadd.f32 0.0, %v980
  %v982 = vpop.f32.mrf.mxu0
  %983 = vdwg.mxu0
  %v984 = vmul.f32 %v792, %v981
  %v985 = vld [vmem:[%s63] sm:$0xf]
  %v986 = vld [vmem:[%s63 + $0x4] sm:$0xf]
  %v987 = vld [vmem:[%s63 + $0x8] sm:$0xf]
  %v988 = vld [vmem:[%s63 + $0xc] sm:$0xf]
  %v989 = vld [vmem:[%s63 + $0x10] sm:$0xf]
  %v990 = vld [vmem:[%s63 + $0x14] sm:$0xf]
  %v991 = vpack.c.bf16 %v984, %v984
  %v992 = vld [vmem:[%s65] sm:$0x7]
  %v994 = vand.u32 %v992, %v403
  %996 = vmatpush.bf16.msra.mxu0 0
  %997 = vmatpush.bf16.msra.mxu0 0
  %998 = vmatpush.bf16.msra.mxu0 0
  %999 = vmatpush.bf16.msra.mxu0 0
  %1000 = vmatpush.bf16.msra.mxu0 0
  %1001 = vmatpush.bf16.msra.mxu0 0
  %1002 = vmatpush.bf16.msra.mxu0 0
  %1003 = vmatpush.bf16.msra.mxu0 %v994
  %1004 = vmatmul.bf16.gmra.mxu0 %v966
  %v1005 = vpop.f32.mrf.mxu0
  %v1006 = vadd.f32 0.0, %v1005
  %v1007 = vpop.f32.mrf.mxu0
  %1008 = vdwg.mxu0
  %v1009 = vmul.f32 %v716, %v1006
  %v1010 = vpack.c.bf16 %v1009, %v1009
  %v1012 = vsel %vm171, %v1010, 0
  %1014 = vmatpush.bf16.msra.mxu0 0
  %1015 = vmatpush.bf16.msra.mxu0 0
  %1016 = vmatpush.bf16.msra.mxu0 0
  %1017 = vmatpush.bf16.msra.mxu0 0
  %1018 = vmatpush.bf16.msra.mxu0 0
  %1019 = vmatpush.bf16.msra.mxu0 0
  %1020 = vmatpush.bf16.msra.mxu0 %v888
  %1021 = vmatpush.bf16.msra.mxu0 %v887
  %1022 = vmatmul.bf16.gmra.mxu0 %v1012
  %v1023 = vpop.f32.mrf.mxu0
  %v1024 = vadd.f32 0.0, %v1023
  %v1025 = vpop.f32.mrf.mxu0
  %1026 = vdwg.mxu0
  %v1033 = vunpack.c.l.b16 %v985
  %v1034 = vunpack.c.l.b16 %v986
  %v1035 = vunpack.c.l.b16 %v987
  %v1036 = vunpack.c.l.b16 %v988
  %v1037 = vunpack.c.l.b16 %v989
  %v1038 = vunpack.c.l.b16 %v990
  %v1039 = vpack.c.b16 %v1034, %v1033
  %v1040 = vpack.c.b16 %v1036, %v1035
  %v1041 = vpack.c.b16 %v1038, %v1037
  %vm1045 = vcmask 392192
  %v1047 = vsel %vm1045, %v991, 0
  %1049 = vmatpush.bf16.msra.mxu0 0
  %1050 = vmatpush.bf16.msra.mxu0 0
  %1051 = vmatpush.bf16.msra.mxu0 0
  %1052 = vmatpush.bf16.msra.mxu0 0
  %1053 = vmatpush.bf16.msra.mxu0 0
  %1054 = vmatpush.bf16.msra.mxu0 %v1041
  %1055 = vmatpush.bf16.msra.mxu0 %v1040
  %1056 = vmatpush.bf16.msra.mxu0 %v1039
  %1057 = vmatmul.bf16.gmra.mxu0 %v1047
  %v1058 = vpop.f32.mrf.mxu0
  %v1059 = vadd.f32 %v1024, %v1058
  %v1060 = vpop.f32.mrf.mxu0
  %1061 = vdwg.mxu0
  %v1062 = vpack.c.bf16 %v920, %v920
  %v1063 = vld [vmem:[%s25] sm:$0xf]
  %v1064 = vld [vmem:[%s25 + $0x4] sm:$0xf]
  %v1065 = vld [vmem:[%s27] sm:$0x1]
  %v1067 = vperm.slane %v1065, 0
  %v1071 = vunpack.c.l.b16 %v1063
  %v1072 = vunpack.c.l.b16 %v1064
  %v1073 = vpack.c.b16 %v1072, %v1071
  %vm1075 = vcmask 130048
  %v1077 = vsel %vm1075, %v1062, 0
  %1079 = vmatpush.bf16.msra.mxu0 0
  %1080 = vmatpush.bf16.msra.mxu0 0
  %1081 = vmatpush.bf16.msra.mxu0 0
  %1082 = vmatpush.bf16.msra.mxu0 0
  %1083 = vmatpush.bf16.msra.mxu0 0
  %1084 = vmatpush.bf16.msra.mxu0 0
  %1085 = vmatpush.bf16.msra.mxu0 0
  %1086 = vmatpush.bf16.msra.mxu0 %v1073
  %1087 = vmatmul.bf16.gmra.mxu0 %v1077
  %v1088 = vpop.f32.mrf.mxu0
  %v1089 = vadd.f32 %v1067, %v1088
  %v1090 = vpop.f32.mrf.mxu0
  %1091 = vdwg.mxu0
  %v1092 = vmax.f32 %v1089, 0.0
  %v1093 = vpack.c.bf16 %v1092, %v1092
  %v1094 = vld [vmem:[%s29] sm:$0xf]
  %v1095 = vld [vmem:[%s29 + $0x4] sm:$0xf]
  %v1096 = vld [vmem:[%s31] sm:$0x1]
  %v1098 = vperm.slane %v1096, 0
  %v1102 = vunpack.c.l.b16 %v1094
  %v1103 = vunpack.c.l.b16 %v1095
  %v1104 = vpack.c.b16 %v1103, %v1102
  %v1107 = vsel %vm1075, %v1093, 0
  %1109 = vmatpush.bf16.msra.mxu0 0
  %1110 = vmatpush.bf16.msra.mxu0 0
  %1111 = vmatpush.bf16.msra.mxu0 0
  %1112 = vmatpush.bf16.msra.mxu0 0
  %1113 = vmatpush.bf16.msra.mxu0 0
  %1114 = vmatpush.bf16.msra.mxu0 0
  %1115 = vmatpush.bf16.msra.mxu0 0
  %1116 = vmatpush.bf16.msra.mxu0 %v1104
  %1117 = vmatmul.bf16.gmra.mxu0 %v1107
  %v1118 = vpop.f32.mrf.mxu0
  %v1119 = vadd.f32 %v1098, %v1118
  %v1120 = vpop.f32.mrf.mxu0
  %1121 = vdwg.mxu0
  %v1122 = vmax.f32 %v1119, 0.0
  %v1123 = vpack.c.bf16 %v1059, %v1059
  %v1124 = vld [vmem:[%s33] sm:$0xf]
  %v1125 = vld [vmem:[%s33 + $0x4] sm:$0xf]
  %v1126 = vld [vmem:[%s35] sm:$0x1]
  %v1128 = vperm.slane %v1126, 0
  %v1132 = vunpack.c.l.b16 %v1124
  %v1133 = vunpack.c.l.b16 %v1125
  %v1134 = vpack.c.b16 %v1133, %v1132
  %v1137 = vsel %vm1075, %v1123, 0
  %1139 = vmatpush.bf16.msra.mxu0 0
  %1140 = vmatpush.bf16.msra.mxu0 0
  %1141 = vmatpush.bf16.msra.mxu0 0
  %1142 = vmatpush.bf16.msra.mxu0 0
  %1143 = vmatpush.bf16.msra.mxu0 0
  %1144 = vmatpush.bf16.msra.mxu0 0
  %1145 = vmatpush.bf16.msra.mxu0 0
  %1146 = vmatpush.bf16.msra.mxu0 %v1134
  %1147 = vmatmul.bf16.gmra.mxu0 %v1137
  %v1148 = vpop.f32.mrf.mxu0
  %v1149 = vadd.f32 %v1128, %v1148
  %v1150 = vpop.f32.mrf.mxu0
  %1151 = vdwg.mxu0
  %v1152 = vmax.f32 %v1149, 0.0
  %1154 = vrot.lane.b32.xlu0 %v1152, 8
  %v1155 = vpop.permute.xlu0 %1154
  %vm1157 = vcmask 64512
  %v1158 = vsel %vm1157, %v1122, %v1155
  %vm1159 = vcmask 195584
  %v1160 = vsel %vm1159, %v1158, 0.0
  %1161 = vst [vmem:[%s67] sm:$0xff] %v1160
  // Predicated region
  $region134: #{ple_forward.1} parent=0 // pred_check
    _
  $region135: #{ple_forward.1} parent=0 // pred_check_branch
    %1163 = sbr.rel (0) target = $region137
  $region136: #{ple_forward.1} parent=0 // pred_region
    _
  $region137: #{ple_forward.1} parent=0 // pred_fallthru
    _
  // Predicated region
  $region138: #{ple_forward.1} parent=0 // pred_check
    _
  $region139: #{ple_forward.1} parent=0 // pred_check_branch
    %1165 = sbr.rel (0) target = $region141
  $region140: #{ple_forward.1} parent=0 // pred_region
    _
  $region141: #{ple_forward.1} parent=0 // pred_fallthru
    _

// kernel: ple_forward.1
$region0: #{ple_forward.1}
  #allocation0 [shape = 'u32[]', space=smem, size = 0x4, offset = 0x4, fixed_abs, tag = 'smem constant byte address 0x4 - core index']
  #allocation1 [shape = 'u32[72,128]{1,0:T(1,128)}', space=vmem, size = 0x9000, scoped, tag = 'internal scratch']
  %s0 = inlined_call_operand.smem [shape: u32[34], index: -1, kind: input, shape index: {}]
  %s1 = sld [smem:[%s0]]
  %s2 = scalar_lea.smem %s0, 1
  %s3 = sld [smem:[%s2]]
  %s4 = scalar_lea.smem %s0, 2
  %s5 = sld [smem:[%s4]]
  %s6 = scalar_lea.smem %s0, 3
  %s7 = sld [smem:[%s6]]
  %s8 = scalar_lea.smem %s0, 4
  %s9 = sld [smem:[%s8]]
  %s10 = scalar_lea.smem %s0, 5
  %s11 = sld [smem:[%s10]]
  %s12 = scalar_lea.smem %s0, 6
  %s13 = sld [smem:[%s12]]
  %s14 = scalar_lea.smem %s0, 7
  %s15 = sld [smem:[%s14]]
  %s16 = scalar_lea.smem %s0, 8
  %s17 = sld [smem:[%s16]]
  %s18 = scalar_lea.smem %s0, 9
  %s19 = sld [smem:[%s18]]
  %s20 = scalar_lea.smem %s0, 10
  %s21 = sld [smem:[%s20]]
  %s22 = scalar_lea.smem %s0, 11
  %s23 = sld [smem:[%s22]]
  %s24 = scalar_lea.smem %s0, 12
  %s25 = sld [smem:[%s24]]
  %s26 = scalar_lea.smem %s0, 13
  %s27 = sld [smem:[%s26]]
  %s28 = scalar_lea.smem %s0, 14
  %s29 = sld [smem:[%s28]]
  %s30 = scalar_lea.smem %s0, 15
  %s31 = sld [smem:[%s30]]
  %s32 = scalar_lea.smem %s0, 16
  %s33 = sld [smem:[%s32]]
  %s34 = scalar_lea.smem %s0, 17
  %s35 = sld [smem:[%s34]]
  %s36 = scalar_lea.smem %s0, 18
  %s37 = sld [smem:[%s36]]
  %s38 = scalar_lea.smem %s0, 19
  %s39 = sld [smem:[%s38]]
  %s40 = scalar_lea.smem %s0, 20
  %s41 = sld [smem:[%s40]]
  %s42 = scalar_lea.smem %s0, 21
  %s43 = sld [smem:[%s42]]
  %s44 = scalar_lea.smem %s0, 22
  %s45 = sld [smem:[%s44]]
  %s46 = scalar_lea.smem %s0, 23
  %s47 = sld [smem:[%s46]]
  %s48 = scalar_lea.smem %s0, 24
  %s49 = sld [smem:[%s48]]
  %s50 = scalar_lea.smem %s0, 25
  %s51 = sld [smem:[%s50]]
  %s52 = scalar_lea.smem %s0, 26
  %s53 = sld [smem:[%s52]]
  %s54 = scalar_lea.smem %s0, 27
  %s55 = sld [smem:[%s54]]
  %s56 = scalar_lea.smem %s0, 28
  %s57 = sld [smem:[%s56]]
  %s58 = scalar_lea.smem %s0, 29
  %s59 = sld [smem:[%s58]]
  %s60 = scalar_lea.smem %s0, 30
  %s61 = sld [smem:[%s60]]
  %s62 = scalar_lea.smem %s0, 31
  %s63 = sld [smem:[%s62]]
  %s64 = scalar_lea.smem %s0, 32
  %s65 = sld [smem:[%s64]]
  %s66 = scalar_lea.smem %s0, 33
  %s67 = sld [smem:[%s66]]
  %s68 = sld [smem:[#allocation0]]
  $region142: #{ple_forward.1} parent=0
    _
  %s70 = ssub.s32 1, %s68
  %s71 = scalar_select 0, %s70, %s68
  // Predicated region
  $region2: #{ple_forward.1} parent=0 // pred_check
    _
  $region3: #{ple_forward.1} parent=0 // pred_check_branch
    %73 = sbr.rel (0) target = $region5
  $region4: #{ple_forward.1} parent=0 // pred_region
    _
  $region5: #{ple_forward.1} parent=0 // pred_fallthru
    _
  // Predicated region
  $region6: #{ple_forward.1} parent=0 // pred_check
    _
  $region7: #{ple_forward.1} parent=0 // pred_check_branch
    %75 = sbr.rel (0) target = $region9
  $region8: #{ple_forward.1} parent=0 // pred_region
    _
  $region9: #{ple_forward.1} parent=0 // pred_fallthru
    _
  // Predicated region
  $region10: #{ple_forward.1} parent=0 // pred_check
    _
  $region11: #{ple_forward.1} parent=0 // pred_check_branch
    %77 = sbr.rel (0) target = $region13
  $region12: #{ple_forward.1} parent=0 // pred_region
    _
  $region13: #{ple_forward.1} parent=0 // pred_fallthru
    _
  // Predicated region
  $region14: #{ple_forward.1} parent=0 // pred_check
    _
  $region15: #{ple_forward.1} parent=0 // pred_check_branch
    %79 = sbr.rel (0) target = $region17
  $region16: #{ple_forward.1} parent=0 // pred_region
    _
  $region17: #{ple_forward.1} parent=0 // pred_fallthru
    _
  // Predicated region
  $region18: #{ple_forward.1} parent=0 // pred_check
    _
  $region19: #{ple_forward.1} parent=0 // pred_check_branch
    %81 = sbr.rel (0) target = $region21
  $region20: #{ple_forward.1} parent=0 // pred_region
    _
  $region21: #{ple_forward.1} parent=0 // pred_fallthru
    _
  // Predicated region
  $region22: #{ple_forward.1} parent=0 // pred_check
    _
  $region23: #{ple_forward.1} parent=0 // pred_check_branch
    %83 = sbr.rel (0) target = $region25
  $region24: #{ple_forward.1} parent=0 // pred_region
    _
  $region25: #{ple_forward.1} parent=0 // pred_fallthru
    _
  // Predicated region
  $region26: #{ple_forward.1} parent=0 // pred_check
    _
  $region27: #{ple_forward.1} parent=0 // pred_check_branch
    %85 = sbr.rel (0) target = $region29
  $region28: #{ple_forward.1} parent=0 // pred_region
    _
  $region29: #{ple_forward.1} parent=0 // pred_fallthru
    _
  // Predicated region
  $region30: #{ple_forward.1} parent=0 // pred_check
    _
  $region31: #{ple_forward.1} parent=0 // pred_check_branch
    %87 = sbr.rel (0) target = $region33
  $region32: #{ple_forward.1} parent=0 // pred_region
    _
  $region33: #{ple_forward.1} parent=0 // pred_fallthru
    _
  // Predicated region
  $region34: #{ple_forward.1} parent=0 // pred_check
    _
  $region35: #{ple_forward.1} parent=0 // pred_check_branch
    %89 = sbr.rel (0) target = $region37
  $region36: #{ple_forward.1} parent=0 // pred_region
    _
  $region37: #{ple_forward.1} parent=0 // pred_fallthru
    _
  // Predicated region
  $region38: #{ple_forward.1} parent=0 // pred_check
    _
  $region39: #{ple_forward.1} parent=0 // pred_check_branch
    %91 = sbr.rel (0) target = $region41
  $region40: #{ple_forward.1} parent=0 // pred_region
    _
  $region41: #{ple_forward.1} parent=0 // pred_fallthru
    _
  // Predicated region
  $region42: #{ple_forward.1} parent=0 // pred_check
    _
  $region43: #{ple_forward.1} parent=0 // pred_check_branch
    %93 = sbr.rel (0) target = $region45
  $region44: #{ple_forward.1} parent=0 // pred_region
    _
  $region45: #{ple_forward.1} parent=0 // pred_fallthru
    _
  // Predicated region
  $region46: #{ple_forward.1} parent=0 // pred_check
    _
  $region47: #{ple_forward.1} parent=0 // pred_check_branch
    %95 = sbr.rel (0) target = $region49
  $region48: #{ple_forward.1} parent=0 // pred_region
    _
  $region49: #{ple_forward.1} parent=0 // pred_fallthru
    _
  // Predicated region
  $region50: #{ple_forward.1} parent=0 // pred_check
    _
  $region51: #{ple_forward.1} parent=0 // pred_check_branch
    %97 = sbr.rel (0) target = $region53
  $region52: #{ple_forward.1} parent=0 // pred_region
    _
  $region53: #{ple_forward.1} parent=0 // pred_fallthru
    _
  // Predicated region
  $region54: #{ple_forward.1} parent=0 // pred_check
    _
  $region55: #{ple_forward.1} parent=0 // pred_check_branch
    %99 = sbr.rel (0) target = $region57
  $region56: #{ple_forward.1} parent=0 // pred_region
    _
  $region57: #{ple_forward.1} parent=0 // pred_fallthru
    _
  // Predicated region
  $region58: #{ple_forward.1} parent=0 // pred_check
    _
  $region59: #{ple_forward.1} parent=0 // pred_check_branch
    %101 = sbr.rel (0) target = $region61
  $region60: #{ple_forward.1} parent=0 // pred_region
    _
  $region61: #{ple_forward.1} parent=0 // pred_fallthru
    _
  // Predicated region
  $region62: #{ple_forward.1} parent=0 // pred_check
    _
  $region63: #{ple_forward.1} parent=0 // pred_check_branch
    %103 = sbr.rel (0) target = $region65
  $region64: #{ple_forward.1} parent=0 // pred_region
    _
  $region65: #{ple_forward.1} parent=0 // pred_fallthru
    _
  // Predicated region
  $region66: #{ple_forward.1} parent=0 // pred_check
    _
  $region67: #{ple_forward.1} parent=0 // pred_check_branch
    %105 = sbr.rel (0) target = $region69
  $region68: #{ple_forward.1} parent=0 // pred_region
    _
  $region69: #{ple_forward.1} parent=0 // pred_fallthru
    _
  // Predicated region
  $region70: #{ple_forward.1} parent=0 // pred_check
    _
  $region71: #{ple_forward.1} parent=0 // pred_check_branch
    %107 = sbr.rel (0) target = $region73
  $region72: #{ple_forward.1} parent=0 // pred_region
    _
  $region73: #{ple_forward.1} parent=0 // pred_fallthru
    _
  // Predicated region
  $region74: #{ple_forward.1} parent=0 // pred_check
    _
  $region75: #{ple_forward.1} parent=0 // pred_check_branch
    %109 = sbr.rel (0) target = $region77
  $region76: #{ple_forward.1} parent=0 // pred_region
    _
  $region77: #{ple_forward.1} parent=0 // pred_fallthru
    _
  // Predicated region
  $region78: #{ple_forward.1} parent=0 // pred_check
    _
  $region79: #{ple_forward.1} parent=0 // pred_check_branch
    %111 = sbr.rel (0) target = $region81
  $region80: #{ple_forward.1} parent=0 // pred_region
    _
  $region81: #{ple_forward.1} parent=0 // pred_fallthru
    _
  // Predicated region
  $region82: #{ple_forward.1} parent=0 // pred_check
    _
  $region83: #{ple_forward.1} parent=0 // pred_check_branch
    %113 = sbr.rel (0) target = $region85
  $region84: #{ple_forward.1} parent=0 // pred_region
    _
  $region85: #{ple_forward.1} parent=0 // pred_fallthru
    _
  // Predicated region
  $region86: #{ple_forward.1} parent=0 // pred_check
    _
  $region87: #{ple_forward.1} parent=0 // pred_check_branch
    %115 = sbr.rel (0) target = $region89
  $region88: #{ple_forward.1} parent=0 // pred_region
    _
  $region89: #{ple_forward.1} parent=0 // pred_fallthru
    _
  // Predicated region
  $region90: #{ple_forward.1} parent=0 // pred_check
    _
  $region91: #{ple_forward.1} parent=0 // pred_check_branch
    %117 = sbr.rel (0) target = $region93
  $region92: #{ple_forward.1} parent=0 // pred_region
    _
  $region93: #{ple_forward.1} parent=0 // pred_fallthru
    _
  // Predicated region
  $region94: #{ple_forward.1} parent=0 // pred_check
    _
  $region95: #{ple_forward.1} parent=0 // pred_check_branch
    %119 = sbr.rel (0) target = $region97
  $region96: #{ple_forward.1} parent=0 // pred_region
    _
  $region97: #{ple_forward.1} parent=0 // pred_fallthru
    _
  // Predicated region
  $region98: #{ple_forward.1} parent=0 // pred_check
    _
  $region99: #{ple_forward.1} parent=0 // pred_check_branch
    %121 = sbr.rel (0) target = $region101
  $region100: #{ple_forward.1} parent=0 // pred_region
    _
  $region101: #{ple_forward.1} parent=0 // pred_fallthru
    _
  // Predicated region
  $region102: #{ple_forward.1} parent=0 // pred_check
    _
  $region103: #{ple_forward.1} parent=0 // pred_check_branch
    %123 = sbr.rel (0) target = $region105
  $region104: #{ple_forward.1} parent=0 // pred_region
    _
  $region105: #{ple_forward.1} parent=0 // pred_fallthru
    _
  // Predicated region
  $region106: #{ple_forward.1} parent=0 // pred_check
    _
  $region107: #{ple_forward.1} parent=0 // pred_check_branch
    %125 = sbr.rel (0) target = $region109
  $region108: #{ple_forward.1} parent=0 // pred_region
    _
  $region109: #{ple_forward.1} parent=0 // pred_fallthru
    _
  // Predicated region
  $region110: #{ple_forward.1} parent=0 // pred_check
    _
  $region111: #{ple_forward.1} parent=0 // pred_check_branch
    %127 = sbr.rel (0) target = $region113
  $region112: #{ple_forward.1} parent=0 // pred_region
    _
  $region113: #{ple_forward.1} parent=0 // pred_fallthru
    _
  // Predicated region
  $region114: #{ple_forward.1} parent=0 // pred_check
    _
  $region115: #{ple_forward.1} parent=0 // pred_check_branch
    %129 = sbr.rel (0) target = $region117
  $region116: #{ple_forward.1} parent=0 // pred_region
    _
  $region117: #{ple_forward.1} parent=0 // pred_fallthru
    _
  // Predicated region
  $region118: #{ple_forward.1} parent=0 // pred_check
    _
  $region119: #{ple_forward.1} parent=0 // pred_check_branch
    %131 = sbr.rel (0) target = $region121
  $region120: #{ple_forward.1} parent=0 // pred_region
    _
  $region121: #{ple_forward.1} parent=0 // pred_fallthru
    _
  // Predicated region
  $region122: #{ple_forward.1} parent=0 // pred_check
    _
  $region123: #{ple_forward.1} parent=0 // pred_check_branch
    %133 = sbr.rel (0) target = $region125
  $region124: #{ple_forward.1} parent=0 // pred_region
    _
  $region125: #{ple_forward.1} parent=0 // pred_fallthru
    _
  // Predicated region
  $region126: #{ple_forward.1} parent=0 // pred_check
    _
  $region127: #{ple_forward.1} parent=0 // pred_check_branch
    %135 = sbr.rel (0) target = $region129
  $region128: #{ple_forward.1} parent=0 // pred_region
    _
  $region129: #{ple_forward.1} parent=0 // pred_fallthru
    _
  // Predicated region
  $region130: #{ple_forward.1} parent=0 // pred_check
    _
  $region131: #{ple_forward.1} parent=0 // pred_check_branch
    %137 = sbr.rel (0) target = $region133
  $region132: #{ple_forward.1} parent=0 // pred_region
    _
  $region133: #{ple_forward.1} parent=0 // pred_fallthru
    _
  %v139 = vld [vmem:[%s1] sm:$0xff]
  %v140 = vpack.c.bf16 %v139, %v139
  %v141 = vld [vmem:[%s3] sm:$0xff]
  %v142 = vld [vmem:[%s3 + $0x8] sm:$0xff]
  %v143 = vld [vmem:[%s3 + $0x10] sm:$0xff]
  %v144 = vld [vmem:[%s3 + $0x18] sm:$0xff]
  %v145 = vld [vmem:[%s5] sm:$0x3]
  %v147 = vperm.slane %v145, 0
  %v148 = vperm.slane %v145, 1
  %v155 = vunpack.c.l.b16 %v141
  %v156 = vunpack.c.h.b16 %v141
  %v157 = vunpack.c.l.b16 %v142
  %v158 = vunpack.c.h.b16 %v142
  %v159 = vunpack.c.l.b16 %v143
  %v160 = vunpack.c.h.b16 %v143
  %v161 = vunpack.c.l.b16 %v144
  %v162 = vunpack.c.h.b16 %v144
  %v163 = vpack.c.b16 %v157, %v155
  %v164 = vpack.c.b16 %v158, %v156
  %v165 = vpack.c.b16 %v161, %v159
  %v166 = vpack.c.b16 %v162, %v160
  %vm171 = vcmask 261120
  %v173 = vsel %vm171, %v140, 0
  %175 = vmatpush.bf16.msra.mxu0 0
  %176 = vmatpush.bf16.msra.mxu0 0
  %177 = vmatpush.bf16.msra.mxu0 0
  %178 = vmatpush.bf16.msra.mxu0 0
  %179 = vmatpush.bf16.msra.mxu0 0
  %180 = vmatpush.bf16.msra.mxu0 0
  %181 = vmatpush.bf16.msra.mxu0 %v165
  %182 = vmatpush.bf16.msra.mxu0 %v163
  %183 = vmatmul.bf16.gmra.mxu0 %v173
  %v184 = vpop.f32.mrf.mxu0
  %v185 = vadd.f32 %v147, %v184
  %v186 = vpop.f32.mrf.mxu0
  %187 = vdwg.mxu0
  %188 = vmatpush.bf16.msra.mxu0 0
  %189 = vmatpush.bf16.msra.mxu0 0
  %190 = vmatpush.bf16.msra.mxu0 0
  %191 = vmatpush.bf16.msra.mxu0 0
  %192 = vmatpush.bf16.msra.mxu0 0
  %193 = vmatpush.bf16.msra.mxu0 0
  %194 = vmatpush.bf16.msra.mxu0 %v166
  %195 = vmatpush.bf16.msra.mxu0 %v164
  %196 = vmatmul.bf16.gmra.mxu0 %v173
  %v197 = vpop.f32.mrf.mxu0
  %v198 = vadd.f32 %v148, %v197
  %v199 = vpop.f32.mrf.mxu0
  %200 = vdwg.mxu0
  %v201 = vmax.f32 %v185, 0.0
  %v202 = vmax.f32 %v198, 0.0
  %v203 = vld [vmem:[%s7] sm:$0xf]
  %v204 = vld [vmem:[%s7 + $0x4] sm:$0xf]
  %v205 = vld [vmem:[%s7 + $0x8] sm:$0xf]
  %v206 = vld [vmem:[%s7 + $0xc] sm:$0xf]
  %v211 = vunpack.c.l.b16 %v203
  %v212 = vunpack.c.l.b16 %v204
  %v213 = vunpack.c.l.b16 %v205
  %v214 = vunpack.c.l.b16 %v206
  %v215 = vpack.c.b16 %v212, %v211
  %v216 = vpack.c.b16 %v214, %v213
  %219 = vmatpush.bf16.msra.mxu0 0
  %220 = vmatpush.bf16.msra.mxu0 0
  %221 = vmatpush.bf16.msra.mxu0 0
  %222 = vmatpush.bf16.msra.mxu0 0
  %223 = vmatpush.bf16.msra.mxu0 0
  %224 = vmatpush.bf16.msra.mxu0 0
  %225 = vmatpush.bf16.msra.mxu0 %v216
  %226 = vmatpush.bf16.msra.mxu0 %v215
  %227 = vmatmul.bf16.gmra.mxu0 %v173
  %v228 = vpop.f32.mrf.mxu0
  %v229 = vadd.f32 0.0, %v228
  %v230 = vpop.f32.mrf.mxu0
  %231 = vdwg.mxu0
  %vm232 = vcmask 31744
  %v233 = vsel %vm232, %v229, -inf
  %234 = vmax.xlane.f32.xlu0 %v233
  %v235 = vpop.xlane.xlu0 %234
  %v236 = vsub.f32 %v229, %v235
  %v237 = vmul.f32 %v236, 1.442695
  %v238 = vpow.pop %v237
  %v239 = vsel %vm232, %v238, 0.0
  %240 = vadd.xlane.f32.xlu0 %v239
  %v241 = vpop.xlane.xlu0 %240
  %v242 = vrcp.pop %v241
  %v243 = vmul.f32 %v238, %v242
  %vm244 = vcmask 72736
  %v245 = vsel %vm244, %v229, -inf
  %246 = vmax.xlane.f32.xlu0 %v245
  %v247 = vpop.xlane.xlu0 %246
  %v248 = vsub.f32 %v229, %v247
  %v249 = vmul.f32 %v248, 1.442695
  %v250 = vpow.pop %v249
  %252 = vrot.lane.b32.xlu0 %v250, 124
  %v253 = vpop.permute.xlu0 %252
  %vm255 = vcmask 39936
  %v256 = vsel %vm255, %v253, 0.0
  %257 = vadd.xlane.f32.xlu0 %v256
  %v258 = vpop.xlane.xlu0 %257
  %v259 = vrcp.pop %v258
  %v260 = vmul.f32 %v250, %v259
  %vm261 = vcmask 130120
  %v262 = vsel %vm261, %v229, -inf
  %263 = vmax.xlane.f32.xlu0 %v262
  %v264 = vpop.xlane.xlu0 %263
  %v265 = vsub.f32 %v229, %v264
  %v266 = vmul.f32 %v265, 1.442695
  %v267 = vpow.pop %v266
  %269 = vrot.lane.b32.xlu0 %v267, 119
  %v270 = vpop.permute.xlu0 %269
  %vm272 = vcmask 56320
  %v273 = vsel %vm272, %v270, 0.0
  %274 = vadd.xlane.f32.xlu0 %v273
  %v275 = vpop.xlane.xlu0 %274
  %v276 = vrcp.pop %v275
  %v277 = vmul.f32 %v267, %v276
  %v278 = vld [vmem:[%s37] sm:$0x3]
  %v279 = vpack.c.bf16 %v243, %v243
  %v281 = vsel %vm232, %v279, 0
  %vm283 = vcmask 1041408
  %v285 = vsel %vm283, %v278, 0
  %287 = vmatpush.bf16.msra.mxu0 0
  %288 = vmatpush.bf16.msra.mxu0 0
  %289 = vmatpush.bf16.msra.mxu0 0
  %290 = vmatpush.bf16.msra.mxu0 0
  %291 = vmatpush.bf16.msra.mxu0 0
  %292 = vmatpush.bf16.msra.mxu0 0
  %293 = vmatpush.bf16.msra.mxu0 0
  %294 = vmatpush.bf16.msra.mxu0 %v285
  %295 = vmatmul.bf16.gmra.mxu0 %v281
  %v296 = vpop.f32.mrf.mxu0
  %v297 = vadd.f32 0.0, %v296
  %v298 = vpop.f32.mrf.mxu0
  %299 = vdwg.mxu0
  %v300 = vmul.f32 %v201, %v297
  %v301 = vld [vmem:[%s39] sm:$0xf]
  %v302 = vld [vmem:[%s39 + $0x4] sm:$0xf]
  %v303 = vld [vmem:[%s39 + $0x8] sm:$0xf]
  %v304 = vld [vmem:[%s39 + $0xc] sm:$0xf]
  %v305 = vld [vmem:[%s39 + $0x10] sm:$0xf]
  %v306 = vld [vmem:[%s39 + $0x14] sm:$0xf]
  %v307 = vld [vmem:[%s39 + $0x18] sm:$0xf]
  %v308 = vld [vmem:[%s39 + $0x1c] sm:$0xf]
  %v309 = vpack.c.bf16 %v300, %v300
  %v310 = vld [vmem:[%s41] sm:$0x3]
  %v312 = vsel %vm283, %v310, 0
  %314 = vmatpush.bf16.msra.mxu0 0
  %315 = vmatpush.bf16.msra.mxu0 0
  %316 = vmatpush.bf16.msra.mxu0 0
  %317 = vmatpush.bf16.msra.mxu0 0
  %318 = vmatpush.bf16.msra.mxu0 0
  %319 = vmatpush.bf16.msra.mxu0 0
  %320 = vmatpush.bf16.msra.mxu0 0
  %321 = vmatpush.bf16.msra.mxu0 %v312
  %322 = vmatmul.bf16.gmra.mxu0 %v281
  %v323 = vpop.f32.mrf.mxu0
  %v324 = vadd.f32 0.0, %v323
  %v325 = vpop.f32.mrf.mxu0
  %326 = vdwg.mxu0
  %328 = vrot.lane.b32.xlu0 %v324, 32
  %v329 = vpop.permute.xlu0 %328
  %v331 = vmul.f32 %v202, %v329
  %v332 = vpack.c.bf16 %v331, %v331
  %334 = vrot.lane.b32.xlu0 %v332, 96
  %v335 = vpop.permute.xlu0 %334
  %v344 = vunpack.c.l.b16 %v301
  %v345 = vunpack.c.l.b16 %v302
  %v346 = vunpack.c.l.b16 %v303
  %v347 = vunpack.c.l.b16 %v304
  %v348 = vunpack.c.l.b16 %v305
  %v349 = vunpack.c.l.b16 %v306
  %v350 = vunpack.c.l.b16 %v307
  %v351 = vunpack.c.l.b16 %v308
  %v352 = vpack.c.b16 %v345, %v344
  %v353 = vpack.c.b16 %v347, %v346
  %v354 = vpack.c.b16 %v349, %v348
  %v355 = vpack.c.b16 %v351, %v350
  %vm360 = vcmask 523264
  %v362 = vsel %vm360, %v335, 0
  %364 = vmatpush.bf16.msra.mxu0 0
  %365 = vmatpush.bf16.msra.mxu0 0
  %366 = vmatpush.bf16.msra.mxu0 0
  %367 = vmatpush.bf16.msra.mxu0 0
  %368 = vmatpush.bf16.msra.mxu0 %v355
  %369 = vmatpush.bf16.msra.mxu0 %v354
  %370 = vmatpush.bf16.msra.mxu0 %v353
  %371 = vmatpush.bf16.msra.mxu0 %v352
  %372 = vmatmul.bf16.gmra.mxu0 %v362
  %v373 = vpop.f32.mrf.mxu0
  %v374 = vadd.f32 0.0, %v373
  %v375 = vpop.f32.mrf.mxu0
  %376 = vdwg.mxu0
  %v378 = vsel %vm360, %v309, 0
  %380 = vmatpush.bf16.msra.mxu0 0
  %381 = vmatpush.bf16.msra.mxu0 0
  %382 = vmatpush.bf16.msra.mxu0 0
  %383 = vmatpush.bf16.msra.mxu0 0
  %384 = vmatpush.bf16.msra.mxu0 %v355
  %385 = vmatpush.bf16.msra.mxu0 %v354
  %386 = vmatpush.bf16.msra.mxu0 %v353
  %387 = vmatpush.bf16.msra.mxu0 %v352
  %388 = vmatmul.bf16.gmra.mxu0 %v378
  %v389 = vpop.f32.mrf.mxu0
  %v390 = vadd.f32 %v374, %v389
  %v391 = vpop.f32.mrf.mxu0
  %392 = vdwg.mxu0
  %v393 = vld [vmem:[%s43] sm:$0x7]
  %v394 = vpack.c.bf16 %v260, %v260
  %396 = vrot.lane.b32.xlu0 %v394, 124
  %v397 = vpop.permute.xlu0 %396
  %v399 = vsel %vm255, %v397, 0
  %vm401 = vcmask 1042432
  %v402 = vsel %vm283, 4294967295, 65535
  %v403 = vsel %vm401, %v402, 0
  %v405 = vand.u32 %v393, %v403
  %407 = vmatpush.bf16.msra.mxu0 0
  %408 = vmatpush.bf16.msra.mxu0 0
  %409 = vmatpush.bf16.msra.mxu0 0
  %410 = vmatpush.bf16.msra.mxu0 0
  %411 = vmatpush.bf16.msra.mxu0 0
  %412 = vmatpush.bf16.msra.mxu0 0
  %413 = vmatpush.bf16.msra.mxu0 0
  %414 = vmatpush.bf16.msra.mxu0 %v405
  %415 = vmatmul.bf16.gmra.mxu0 %v399
  %v416 = vpop.f32.mrf.mxu0
  %v417 = vadd.f32 0.0, %v416
  %v418 = vpop.f32.mrf.mxu0
  %419 = vdwg.mxu0
  %421 = vrot.lane.b32.xlu0 %v417, 64
  %v422 = vpop.permute.xlu0 %421
  %v424 = vmul.f32 %v201, %v422
  %v425 = vmul.f32 %v202, %v422
  %v426 = vld [vmem:[%s45] sm:$0xf]
  %v427 = vld [vmem:[%s45 + $0x4] sm:$0xf]
  %v428 = vld [vmem:[%s45 + $0x8] sm:$0xf]
  %v429 = vld [vmem:[%s45 + $0xc] sm:$0xf]
  %v430 = vld [vmem:[%s45 + $0x10] sm:$0xf]
  %v431 = vld [vmem:[%s45 + $0x14] sm:$0xf]
  %v432 = vld [vmem:[%s45 + $0x18] sm:$0xf]
  %v433 = vld [vmem:[%s45 + $0x1c] sm:$0xf]
  %v434 = vld [vmem:[%s45 + $0x20] sm:$0xf]
  %v435 = vld [vmem:[%s45 + $0x24] sm:$0xf]
  %v436 = vld [vmem:[%s45 + $0x28] sm:$0xf]
  %v437 = vld [vmem:[%s45 + $0x2c] sm:$0xf]
  %v438 = vpack.c.bf16 %v424, %v424
  %v439 = vpack.c.bf16 %v425, %v425
  %v440 = vld [vmem:[%s47] sm:$0x7]
  %v442 = vand.u32 %v440, %v403
  %444 = vmatpush.bf16.msra.mxu0 0
  %445 = vmatpush.bf16.msra.mxu0 0
  %446 = vmatpush.bf16.msra.mxu0 0
  %447 = vmatpush.bf16.msra.mxu0 0
  %448 = vmatpush.bf16.msra.mxu0 0
  %449 = vmatpush.bf16.msra.mxu0 0
  %450 = vmatpush.bf16.msra.mxu0 0
  %451 = vmatpush.bf16.msra.mxu0 %v442
  %452 = vmatmul.bf16.gmra.mxu0 %v399
  %v453 = vpop.f32.mrf.mxu0
  %v454 = vadd.f32 0.0, %v453
  %v455 = vpop.f32.mrf.mxu0
  %456 = vdwg.mxu0
  %458 = vrot.lane.b32.xlu0 %v454, 32
  %v459 = vpop.permute.xlu0 %458
  %v461 = vmul.f32 %v202, %v459
  %v462 = vpack.c.bf16 %v461, %v461
  %464 = vrot.lane.b32.xlu0 %v462, 96
  %v465 = vpop.permute.xlu0 %464
  %v467 = vsel %vm360, %v465, 0
  %469 = vmatpush.bf16.msra.mxu0 0
  %470 = vmatpush.bf16.msra.mxu0 0
  %471 = vmatpush.bf16.msra.mxu0 0
  %472 = vmatpush.bf16.msra.mxu0 0
  %473 = vmatpush.bf16.msra.mxu0 %v355
  %474 = vmatpush.bf16.msra.mxu0 %v354
  %475 = vmatpush.bf16.msra.mxu0 %v353
  %476 = vmatpush.bf16.msra.mxu0 %v352
  %477 = vmatmul.bf16.gmra.mxu0 %v467
  %v478 = vpop.f32.mrf.mxu0
  %v479 = vadd.f32 0.0, %v478
  %v480 = vpop.f32.mrf.mxu0
  %481 = vdwg.mxu0
  %484 = vrot.lane.b32.xlu0 %v438, 64
  %v485 = vpop.permute.xlu0 %484
  %486 = vrot.lane.b32.xlu0 %v439, 64
  %v487 = vpop.permute.xlu0 %486
  %vm488 = vcmask 523264
  %v489 = vsel %vm488, %v485, %v487
  %v502 = vunpack.c.l.b16 %v426
  %v503 = vunpack.c.l.b16 %v427
  %v504 = vunpack.c.l.b16 %v428
  %v505 = vunpack.c.l.b16 %v429
  %v506 = vunpack.c.l.b16 %v430
  %v507 = vunpack.c.l.b16 %v431
  %v508 = vunpack.c.l.b16 %v432
  %v509 = vunpack.c.l.b16 %v433
  %v510 = vunpack.c.l.b16 %v434
  %v511 = vunpack.c.l.b16 %v435
  %v512 = vunpack.c.l.b16 %v436
  %v513 = vunpack.c.l.b16 %v437
  %v514 = vpack.c.b16 %v503, %v502
  %v515 = vpack.c.b16 %v505, %v504
  %v516 = vpack.c.b16 %v507, %v506
  %v517 = vpack.c.b16 %v509, %v508
  %v518 = vpack.c.b16 %v511, %v510
  %v519 = vpack.c.b16 %v513, %v512
  %vm526 = vcmask 785408
  %v528 = vsel %vm526, %v489, 0
  %530 = vmatpush.bf16.msra.mxu0 0
  %531 = vmatpush.bf16.msra.mxu0 0
  %532 = vmatpush.bf16.msra.mxu0 %v519
  %533 = vmatpush.bf16.msra.mxu0 %v518
  %534 = vmatpush.bf16.msra.mxu0 %v517
  %535 = vmatpush.bf16.msra.mxu0 %v516
  %536 = vmatpush.bf16.msra.mxu0 %v515
  %537 = vmatpush.bf16.msra.mxu0 %v514
  %538 = vmatmul.bf16.gmra.mxu0 %v528
  %v539 = vpop.f32.mrf.mxu0
  %v540 = vadd.f32 %v479, %v539
  %v541 = vpop.f32.mrf.mxu0
  %542 = vdwg.mxu0
  %v543 = vld [vmem:[%s49] sm:$0xf]
  %v544 = vpack.c.bf16 %v277, %v277
  %546 = vrot.lane.b32.xlu0 %v544, 119
  %v547 = vpop.permute.xlu0 %546
  %v549 = vsel %vm272, %v547, 0
  %vm551 = vcmask 1043456
  %v552 = vsel %vm401, 4294967295, 65535
  %v553 = vsel %vm551, %v552, 0
  %v555 = vand.u32 %v543, %v553
  %557 = vmatpush.bf16.msra.mxu0 0
  %558 = vmatpush.bf16.msra.mxu0 0
  %559 = vmatpush.bf16.msra.mxu0 0
  %560 = vmatpush.bf16.msra.mxu0 0
  %561 = vmatpush.bf16.msra.mxu0 0
  %562 = vmatpush.bf16.msra.mxu0 0
  %563 = vmatpush.bf16.msra.mxu0 0
  %564 = vmatpush.bf16.msra.mxu0 %v555
  %565 = vmatmul.bf16.gmra.mxu0 %v549
  %v566 = vpop.f32.mrf.mxu0
  %v567 = vadd.f32 0.0, %v566
  %v568 = vpop.f32.mrf.mxu0
  %569 = vdwg.mxu0
  %v570 = vmul.f32 %v201, %v567
  %v571 = vpack.c.bf16 %v570, %v570
  %v572 = vld [vmem:[%s51] sm:$0xf]
  %v574 = vand.u32 %v572, %v553
  %576 = vmatpush.bf16.msra.mxu0 0
  %577 = vmatpush.bf16.msra.mxu0 0
  %578 = vmatpush.bf16.msra.mxu0 0
  %579 = vmatpush.bf16.msra.mxu0 0
  %580 = vmatpush.bf16.msra.mxu0 0
  %581 = vmatpush.bf16.msra.mxu0 0
  %582 = vmatpush.bf16.msra.mxu0 0
  %583 = vmatpush.bf16.msra.mxu0 %v574
  %584 = vmatmul.bf16.gmra.mxu0 %v549
  %v585 = vpop.f32.mrf.mxu0
  %v586 = vadd.f32 0.0, %v585
  %v587 = vpop.f32.mrf.mxu0
  %588 = vdwg.mxu0
  %590 = vrot.lane.b32.xlu0 %v586, 64
  %v591 = vpop.permute.xlu0 %590
  %v593 = vmul.f32 %v201, %v591
  %v594 = vmul.f32 %v202, %v591
  %v595 = vpack.c.bf16 %v593, %v593
  %v596 = vpack.c.bf16 %v594, %v594
  %599 = vrot.lane.b32.xlu0 %v595, 64
  %v600 = vpop.permute.xlu0 %599
  %601 = vrot.lane.b32.xlu0 %v596, 64
  %v602 = vpop.permute.xlu0 %601
  %v603 = vsel %vm488, %v600, %v602
  %v605 = vsel %vm526, %v603, 0
  %607 = vmatpush.bf16.msra.mxu0 0
  %608 = vmatpush.bf16.msra.mxu0 0
  %609 = vmatpush.bf16.msra.mxu0 %v519
  %610 = vmatpush.bf16.msra.mxu0 %v518
  %611 = vmatpush.bf16.msra.mxu0 %v517
  %612 = vmatpush.bf16.msra.mxu0 %v516
  %613 = vmatpush.bf16.msra.mxu0 %v515
  %614 = vmatpush.bf16.msra.mxu0 %v514
  %615 = vmatmul.bf16.gmra.mxu0 %v605
  %v616 = vpop.f32.mrf.mxu0
  %v617 = vadd.f32 0.0, %v616
  %v618 = vpop.f32.mrf.mxu0
  %619 = vdwg.mxu0
  %v621 = vsel %vm360, %v571, 0
  %623 = vmatpush.bf16.msra.mxu0 0
  %624 = vmatpush.bf16.msra.mxu0 0
  %625 = vmatpush.bf16.msra.mxu0 0
  %626 = vmatpush.bf16.msra.mxu0 0
  %627 = vmatpush.bf16.msra.mxu0 %v355
  %628 = vmatpush.bf16.msra.mxu0 %v354
  %629 = vmatpush.bf16.msra.mxu0 %v353
  %630 = vmatpush.bf16.msra.mxu0 %v352
  %631 = vmatmul.bf16.gmra.mxu0 %v621
  %v632 = vpop.f32.mrf.mxu0
  %v633 = vadd.f32 %v617, %v632
  %v634 = vpop.f32.mrf.mxu0
  %635 = vdwg.mxu0
  %v636 = vld [vmem:[%s53] sm:$0xf]
  %v638 = vand.u32 %v636, %v553
  %640 = vmatpush.bf16.msra.mxu0 0
  %641 = vmatpush.bf16.msra.mxu0 0
  %642 = vmatpush.bf16.msra.mxu0 0
  %643 = vmatpush.bf16.msra.mxu0 0
  %644 = vmatpush.bf16.msra.mxu0 0
  %645 = vmatpush.bf16.msra.mxu0 0
  %646 = vmatpush.bf16.msra.mxu0 0
  %647 = vmatpush.bf16.msra.mxu0 %v638
  %648 = vmatmul.bf16.gmra.mxu0 %v549
  %v649 = vpop.f32.mrf.mxu0
  %v650 = vadd.f32 0.0, %v649
  %v651 = vpop.f32.mrf.mxu0
  %652 = vdwg.mxu0
  %654 = vrot.lane.b32.xlu0 %v650, 32
  %v655 = vpop.permute.xlu0 %654
  %v657 = vmul.f32 %v202, %v655
  %v658 = vpack.c.bf16 %v657, %v657
  %660 = vrot.lane.b32.xlu0 %v658, 96
  %v661 = vpop.permute.xlu0 %660
  %v663 = vsel %vm360, %v661, 0
  %665 = vmatpush.bf16.msra.mxu0 0
  %666 = vmatpush.bf16.msra.mxu0 0
  %667 = vmatpush.bf16.msra.mxu0 0
  %668 = vmatpush.bf16.msra.mxu0 0
  %669 = vmatpush.bf16.msra.mxu0 %v355
  %670 = vmatpush.bf16.msra.mxu0 %v354
  %671 = vmatpush.bf16.msra.mxu0 %v353
  %672 = vmatpush.bf16.msra.mxu0 %v352
  %673 = vmatmul.bf16.gmra.mxu0 %v663
  %v674 = vpop.f32.mrf.mxu0
  %v675 = vadd.f32 0.0, %v674
  %v676 = vpop.f32.mrf.mxu0
  %677 = vdwg.mxu0
  %v678 = vadd.f32 %v633, %v675
  %v679 = vpack.c.bf16 %v678, %v678
  %v680 = vld [vmem:[%s9] sm:$0xf]
  %v681 = vld [vmem:[%s9 + $0x4] sm:$0xf]
  %v682 = vld [vmem:[%s9 + $0x8] sm:$0xf]
  %v683 = vld [vmem:[%s9 + $0xc] sm:$0xf]
  %v684 = vld [vmem:[%s11] sm:$0x1]
  %v686 = vperm.slane %v684, 0
  %v692 = vunpack.c.l.b16 %v680
  %v693 = vunpack.c.l.b16 %v681
  %v694 = vunpack.c.l.b16 %v682
  %v695 = vunpack.c.l.b16 %v683
  %v696 = vpack.c.b16 %v693, %v692
  %v697 = vpack.c.b16 %v695, %v694
  %v701 = vsel %vm171, %v679, 0
  %703 = vmatpush.bf16.msra.mxu0 0
  %704 = vmatpush.bf16.msra.mxu0 0
  %705 = vmatpush.bf16.msra.mxu0 0
  %706 = vmatpush.bf16.msra.mxu0 0
  %707 = vmatpush.bf16.msra.mxu0 0
  %708 = vmatpush.bf16.msra.mxu0 0
  %709 = vmatpush.bf16.msra.mxu0 %v697
  %710 = vmatpush.bf16.msra.mxu0 %v696
  %711 = vmatmul.bf16.gmra.mxu0 %v701
  %v712 = vpop.f32.mrf.mxu0
  %v713 = vadd.f32 %v686, %v712
  %v714 = vpop.f32.mrf.mxu0
  %715 = vdwg.mxu0
  %v716 = vmax.f32 %v713, 0.0
  %v717 = vpack.c.bf16 %v390, %v390
  %v718 = vld [vmem:[%s13] sm:$0xf]
  %v719 = vld [vmem:[%s13 + $0x4] sm:$0xf]
  %v720 = vld [vmem:[%s13 + $0x8] sm:$0xf]
  %v721 = vld [vmem:[%s13 + $0xc] sm:$0xf]
  %v722 = vld [vmem:[%s15] sm:$0x1]
  %v724 = vperm.slane %v722, 0
  %v730 = vunpack.c.l.b16 %v718
  %v731 = vunpack.c.l.b16 %v719
  %v732 = vunpack.c.l.b16 %v720
  %v733 = vunpack.c.l.b16 %v721
  %v734 = vpack.c.b16 %v731, %v730
  %v735 = vpack.c.b16 %v733, %v732
  %v739 = vsel %vm171, %v717, 0
  %741 = vmatpush.bf16.msra.mxu0 0
  %742 = vmatpush.bf16.msra.mxu0 0
  %743 = vmatpush.bf16.msra.mxu0 0
  %744 = vmatpush.bf16.msra.mxu0 0
  %745 = vmatpush.bf16.msra.mxu0 0
  %746 = vmatpush.bf16.msra.mxu0 0
  %747 = vmatpush.bf16.msra.mxu0 %v735
  %748 = vmatpush.bf16.msra.mxu0 %v734
  %749 = vmatmul.bf16.gmra.mxu0 %v739
  %v750 = vpop.f32.mrf.mxu0
  %v751 = vadd.f32 %v724, %v750
  %v752 = vpop.f32.mrf.mxu0
  %753 = vdwg.mxu0
  %v754 = vmax.f32 %v751, 0.0
  %v755 = vpack.c.bf16 %v540, %v540
  %v756 = vld [vmem:[%s17] sm:$0xf]
  %v757 = vld [vmem:[%s17 + $0x4] sm:$0xf]
  %v758 = vld [vmem:[%s17 + $0x8] sm:$0xf]
  %v759 = vld [vmem:[%s17 + $0xc] sm:$0xf]
  %v760 = vld [vmem:[%s19] sm:$0x1]
  %v762 = vperm.slane %v760, 0
  %v768 = vunpack.c.l.b16 %v756
  %v769 = vunpack.c.l.b16 %v757
  %v770 = vunpack.c.l.b16 %v758
  %v771 = vunpack.c.l.b16 %v759
  %v772 = vpack.c.b16 %v769, %v768
  %v773 = vpack.c.b16 %v771, %v770
  %v777 = vsel %vm171, %v755, 0
  %779 = vmatpush.bf16.msra.mxu0 0
  %780 = vmatpush.bf16.msra.mxu0 0
  %781 = vmatpush.bf16.msra.mxu0 0
  %782 = vmatpush.bf16.msra.mxu0 0
  %783 = vmatpush.bf16.msra.mxu0 0
  %784 = vmatpush.bf16.msra.mxu0 0
  %785 = vmatpush.bf16.msra.mxu0 %v773
  %786 = vmatpush.bf16.msra.mxu0 %v772
  %787 = vmatmul.bf16.gmra.mxu0 %v777
  %v788 = vpop.f32.mrf.mxu0
  %v789 = vadd.f32 %v762, %v788
  %v790 = vpop.f32.mrf.mxu0
  %791 = vdwg.mxu0
  %v792 = vmax.f32 %v789, 0.0
  %v793 = vld [vmem:[%s21] sm:$0xf]
  %v794 = vld [vmem:[%s21 + $0x4] sm:$0xf]
  %v795 = vld [vmem:[%s21 + $0x8] sm:$0xf]
  %v796 = vld [vmem:[%s21 + $0xc] sm:$0xf]
  %v801 = vunpack.c.l.b16 %v793
  %v802 = vunpack.c.l.b16 %v794
  %v803 = vunpack.c.l.b16 %v795
  %v804 = vunpack.c.l.b16 %v796
  %v805 = vpack.c.b16 %v802, %v801
  %v806 = vpack.c.b16 %v804, %v803
  %809 = vmatpush.bf16.msra.mxu0 0
  %810 = vmatpush.bf16.msra.mxu0 0
  %811 = vmatpush.bf16.msra.mxu0 0
  %812 = vmatpush.bf16.msra.mxu0 0
  %813 = vmatpush.bf16.msra.mxu0 0
  %814 = vmatpush.bf16.msra.mxu0 0
  %815 = vmatpush.bf16.msra.mxu0 %v806
  %816 = vmatpush.bf16.msra.mxu0 %v805
  %817 = vmatmul.bf16.gmra.mxu0 %v739
  %v818 = vpop.f32.mrf.mxu0
  %v819 = vadd.f32 0.0, %v818
  %v820 = vpop.f32.mrf.mxu0
  %821 = vdwg.mxu0
  %v822 = vsel %vm232, %v819, -inf
  %823 = vmax.xlane.f32.xlu0 %v822
  %v824 = vpop.xlane.xlu0 %823
  %v825 = vsub.f32 %v819, %v824
  %v826 = vmul.f32 %v825, 1.442695
  %v827 = vpow.pop %v826
  %v828 = vsel %vm232, %v827, 0.0
  %829 = vadd.xlane.f32.xlu0 %v828
  %v830 = vpop.xlane.xlu0 %829
  %v831 = vrcp.pop %v830
  %v832 = vmul.f32 %v827, %v831
  %v833 = vld [vmem:[%s55] sm:$0x3]
  %v834 = vpack.c.bf16 %v832, %v832
  %v836 = vsel %vm232, %v834, 0
  %v839 = vsel %vm283, %v833, 0
  %841 = vmatpush.bf16.msra.mxu0 0
  %842 = vmatpush.bf16.msra.mxu0 0
  %843 = vmatpush.bf16.msra.mxu0 0
  %844 = vmatpush.bf16.msra.mxu0 0
  %845 = vmatpush.bf16.msra.mxu0 0
  %846 = vmatpush.bf16.msra.mxu0 0
  %847 = vmatpush.bf16.msra.mxu0 0
  %848 = vmatpush.bf16.msra.mxu0 %v839
  %849 = vmatmul.bf16.gmra.mxu0 %v836
  %v850 = vpop.f32.mrf.mxu0
  %v851 = vadd.f32 0.0, %v850
  %v852 = vpop.f32.mrf.mxu0
  %853 = vdwg.mxu0
  %v854 = vmul.f32 %v754, %v851
  %v855 = vld [vmem:[%s57] sm:$0xf]
  %v856 = vld [vmem:[%s57 + $0x4] sm:$0xf]
  %v857 = vld [vmem:[%s57 + $0x8] sm:$0xf]
  %v858 = vld [vmem:[%s57 + $0xc] sm:$0xf]
  %v859 = vpack.c.bf16 %v854, %v854
  %v860 = vld [vmem:[%s59] sm:$0x3]
  %v862 = vsel %vm283, %v860, 0
  %864 = vmatpush.bf16.msra.mxu0 0
  %865 = vmatpush.bf16.msra.mxu0 0
  %866 = vmatpush.bf16.msra.mxu0 0
  %867 = vmatpush.bf16.msra.mxu0 0
  %868 = vmatpush.bf16.msra.mxu0 0
  %869 = vmatpush.bf16.msra.mxu0 0
  %870 = vmatpush.bf16.msra.mxu0 0
  %871 = vmatpush.bf16.msra.mxu0 %v862
  %872 = vmatmul.bf16.gmra.mxu0 %v836
  %v873 = vpop.f32.mrf.mxu0
  %v874 = vadd.f32 0.0, %v873
  %v875 = vpop.f32.mrf.mxu0
  %876 = vdwg.mxu0
  %v877 = vmul.f32 %v716, %v874
  %v878 = vpack.c.bf16 %v877, %v877
  %v883 = vunpack.c.l.b16 %v855
  %v884 = vunpack.c.l.b16 %v856
  %v885 = vunpack.c.l.b16 %v857
  %v886 = vunpack.c.l.b16 %v858
  %v887 = vpack.c.b16 %v884, %v883
  %v888 = vpack.c.b16 %v886, %v885
  %v892 = vsel %vm171, %v878, 0
  %894 = vmatpush.bf16.msra.mxu0 0
  %895 = vmatpush.bf16.msra.mxu0 0
  %896 = vmatpush.bf16.msra.mxu0 0
  %897 = vmatpush.bf16.msra.mxu0 0
  %898 = vmatpush.bf16.msra.mxu0 0
  %899 = vmatpush.bf16.msra.mxu0 0
  %900 = vmatpush.bf16.msra.mxu0 %v888
  %901 = vmatpush.bf16.msra.mxu0 %v887
  %902 = vmatmul.bf16.gmra.mxu0 %v892
  %v903 = vpop.f32.mrf.mxu0
  %v904 = vadd.f32 0.0, %v903
  %v905 = vpop.f32.mrf.mxu0
  %906 = vdwg.mxu0
  %v908 = vsel %vm171, %v859, 0
  %910 = vmatpush.bf16.msra.mxu0 0
  %911 = vmatpush.bf16.msra.mxu0 0
  %912 = vmatpush.bf16.msra.mxu0 0
  %913 = vmatpush.bf16.msra.mxu0 0
  %914 = vmatpush.bf16.msra.mxu0 0
  %915 = vmatpush.bf16.msra.mxu0 0
  %916 = vmatpush.bf16.msra.mxu0 %v888
  %917 = vmatpush.bf16.msra.mxu0 %v887
  %918 = vmatmul.bf16.gmra.mxu0 %v908
  %v919 = vpop.f32.mrf.mxu0
  %v920 = vadd.f32 %v904, %v919
  %v921 = vpop.f32.mrf.mxu0
  %922 = vdwg.mxu0
  %v923 = vld [vmem:[%s23] sm:$0xf]
  %v924 = vld [vmem:[%s23 + $0x4] sm:$0xf]
  %v925 = vld [vmem:[%s23 + $0x8] sm:$0xf]
  %v926 = vld [vmem:[%s23 + $0xc] sm:$0xf]
  %v931 = vunpack.c.l.b16 %v923
  %v932 = vunpack.c.l.b16 %v924
  %v933 = vunpack.c.l.b16 %v925
  %v934 = vunpack.c.l.b16 %v926
  %v935 = vpack.c.b16 %v932, %v931
  %v936 = vpack.c.b16 %v934, %v933
  %939 = vmatpush.bf16.msra.mxu0 0
  %940 = vmatpush.bf16.msra.mxu0 0
  %941 = vmatpush.bf16.msra.mxu0 0
  %942 = vmatpush.bf16.msra.mxu0 0
  %943 = vmatpush.bf16.msra.mxu0 0
  %944 = vmatpush.bf16.msra.mxu0 0
  %945 = vmatpush.bf16.msra.mxu0 %v936
  %946 = vmatpush.bf16.msra.mxu0 %v935
  %947 = vmatmul.bf16.gmra.mxu0 %v777
  %v948 = vpop.f32.mrf.mxu0
  %v949 = vadd.f32 0.0, %v948
  %v950 = vpop.f32.mrf.mxu0
  %951 = vdwg.mxu0
  %v952 = vsel %vm255, %v949, -inf
  %953 = vmax.xlane.f32.xlu0 %v952
  %v954 = vpop.xlane.xlu0 %953
  %v955 = vsub.f32 %v949, %v954
  %v956 = vmul.f32 %v955, 1.442695
  %v957 = vpow.pop %v956
  %v958 = vsel %vm255, %v957, 0.0
  %959 = vadd.xlane.f32.xlu0 %v958
  %v960 = vpop.xlane.xlu0 %959
  %v961 = vrcp.pop %v960
  %v962 = vmul.f32 %v957, %v961
  %v963 = vld [vmem:[%s61] sm:$0x7]
  %v964 = vpack.c.bf16 %v962, %v962
  %v966 = vsel %vm255, %v964, 0
  %v969 = vand.u32 %v963, %v403
  %971 = vmatpush.bf16.msra.mxu0 0
  %972 = vmatpush.bf16.msra.mxu0 0
  %973 = vmatpush.bf16.msra.mxu0 0
  %974 = vmatpush.bf16.msra.mxu0 0
  %975 = vmatpush.bf16.msra.mxu0 0
  %976 = vmatpush.bf16.msra.mxu0 0
  %977 = vmatpush.bf16.msra.mxu0 0
  %978 = vmatpush.bf16.msra.mxu0 %v969
  %979 = vmatmul.bf16.gmra.mxu0 %v966
  %v980 = vpop.f32.mrf.mxu0
  %v981 = vadd.f32 0.0, %v980
  %v982 = vpop.f32.mrf.mxu0
  %983 = vdwg.mxu0
  %v984 = vmul.f32 %v792, %v981
  %v985 = vld [vmem:[%s63] sm:$0xf]
  %v986 = vld [vmem:[%s63 + $0x4] sm:$0xf]
  %v987 = vld [vmem:[%s63 + $0x8] sm:$0xf]
  %v988 = vld [vmem:[%s63 + $0xc] sm:$0xf]
  %v989 = vld [vmem:[%s63 + $0x10] sm:$0xf]
  %v990 = vld [vmem:[%s63 + $0x14] sm:$0xf]
  %v991 = vpack.c.bf16 %v984, %v984
  %v992 = vld [vmem:[%s65] sm:$0x7]
  %v994 = vand.u32 %v992, %v403
  %996 = vmatpush.bf16.msra.mxu0 0
  %997 = vmatpush.bf16.msra.mxu0 0
  %998 = vmatpush.bf16.msra.mxu0 0
  %999 = vmatpush.bf16.msra.mxu0 0
  %1000 = vmatpush.bf16.msra.mxu0 0
  %1001 = vmatpush.bf16.msra.mxu0 0
  %1002 = vmatpush.bf16.msra.mxu0 0
  %1003 = vmatpush.bf16.msra.mxu0 %v994
  %1004 = vmatmul.bf16.gmra.mxu0 %v966
  %v1005 = vpop.f32.mrf.mxu0
  %v1006 = vadd.f32 0.0, %v1005
  %v1007 = vpop.f32.mrf.mxu0
  %1008 = vdwg.mxu0
  %v1009 = vmul.f32 %v716, %v1006
  %v1010 = vpack.c.bf16 %v1009, %v1009
  %v1012 = vsel %vm171, %v1010, 0
  %1014 = vmatpush.bf16.msra.mxu0 0
  %1015 = vmatpush.bf16.msra.mxu0 0
  %1016 = vmatpush.bf16.msra.mxu0 0
  %1017 = vmatpush.bf16.msra.mxu0 0
  %1018 = vmatpush.bf16.msra.mxu0 0
  %1019 = vmatpush.bf16.msra.mxu0 0
  %1020 = vmatpush.bf16.msra.mxu0 %v888
  %1021 = vmatpush.bf16.msra.mxu0 %v887
  %1022 = vmatmul.bf16.gmra.mxu0 %v1012
  %v1023 = vpop.f32.mrf.mxu0
  %v1024 = vadd.f32 0.0, %v1023
  %v1025 = vpop.f32.mrf.mxu0
  %1026 = vdwg.mxu0
  %v1033 = vunpack.c.l.b16 %v985
  %v1034 = vunpack.c.l.b16 %v986
  %v1035 = vunpack.c.l.b16 %v987
  %v1036 = vunpack.c.l.b16 %v988
  %v1037 = vunpack.c.l.b16 %v989
  %v1038 = vunpack.c.l.b16 %v990
  %v1039 = vpack.c.b16 %v1034, %v1033
  %v1040 = vpack.c.b16 %v1036, %v1035
  %v1041 = vpack.c.b16 %v1038, %v1037
  %vm1045 = vcmask 392192
  %v1047 = vsel %vm1045, %v991, 0
  %1049 = vmatpush.bf16.msra.mxu0 0
  %1050 = vmatpush.bf16.msra.mxu0 0
  %1051 = vmatpush.bf16.msra.mxu0 0
  %1052 = vmatpush.bf16.msra.mxu0 0
  %1053 = vmatpush.bf16.msra.mxu0 0
  %1054 = vmatpush.bf16.msra.mxu0 %v1041
  %1055 = vmatpush.bf16.msra.mxu0 %v1040
  %1056 = vmatpush.bf16.msra.mxu0 %v1039
  %1057 = vmatmul.bf16.gmra.mxu0 %v1047
  %v1058 = vpop.f32.mrf.mxu0
  %v1059 = vadd.f32 %v1024, %v1058
  %v1060 = vpop.f32.mrf.mxu0
  %1061 = vdwg.mxu0
  %v1062 = vpack.c.bf16 %v920, %v920
  %v1063 = vld [vmem:[%s25] sm:$0xf]
  %v1064 = vld [vmem:[%s25 + $0x4] sm:$0xf]
  %v1065 = vld [vmem:[%s27] sm:$0x1]
  %v1067 = vperm.slane %v1065, 0
  %v1071 = vunpack.c.l.b16 %v1063
  %v1072 = vunpack.c.l.b16 %v1064
  %v1073 = vpack.c.b16 %v1072, %v1071
  %vm1075 = vcmask 130048
  %v1077 = vsel %vm1075, %v1062, 0
  %1079 = vmatpush.bf16.msra.mxu0 0
  %1080 = vmatpush.bf16.msra.mxu0 0
  %1081 = vmatpush.bf16.msra.mxu0 0
  %1082 = vmatpush.bf16.msra.mxu0 0
  %1083 = vmatpush.bf16.msra.mxu0 0
  %1084 = vmatpush.bf16.msra.mxu0 0
  %1085 = vmatpush.bf16.msra.mxu0 0
  %1086 = vmatpush.bf16.msra.mxu0 %v1073
  %1087 = vmatmul.bf16.gmra.mxu0 %v1077
  %v1088 = vpop.f32.mrf.mxu0
  %v1089 = vadd.f32 %v1067, %v1088
  %v1090 = vpop.f32.mrf.mxu0
  %1091 = vdwg.mxu0
  %v1092 = vmax.f32 %v1089, 0.0
  %v1093 = vpack.c.bf16 %v1092, %v1092
  %v1094 = vld [vmem:[%s29] sm:$0xf]
  %v1095 = vld [vmem:[%s29 + $0x4] sm:$0xf]
  %v1096 = vld [vmem:[%s31] sm:$0x1]
  %v1098 = vperm.slane %v1096, 0
  %v1102 = vunpack.c.l.b16 %v1094
  %v1103 = vunpack.c.l.b16 %v1095
  %v1104 = vpack.c.b16 %v1103, %v1102
  %v1107 = vsel %vm1075, %v1093, 0
  %1109 = vmatpush.bf16.msra.mxu0 0
  %1110 = vmatpush.bf16.msra.mxu0 0
  %1111 = vmatpush.bf16.msra.mxu0 0
  %1112 = vmatpush.bf16.msra.mxu0 0
  %1113 = vmatpush.bf16.msra.mxu0 0
  %1114 = vmatpush.bf16.msra.mxu0 0
  %1115 = vmatpush.bf16.msra.mxu0 0
  %1116 = vmatpush.bf16.msra.mxu0 %v1104
  %1117 = vmatmul.bf16.gmra.mxu0 %v1107
  %v1118 = vpop.f32.mrf.mxu0
  %v1119 = vadd.f32 %v1098, %v1118
  %v1120 = vpop.f32.mrf.mxu0
  %1121 = vdwg.mxu0
  %v1122 = vmax.f32 %v1119, 0.0
  %v1123 = vpack.c.bf16 %v1059, %v1059
  %v1124 = vld [vmem:[%s33] sm:$0xf]
  %v1125 = vld [vmem:[%s33 + $0x4] sm:$0xf]
  %v1126 = vld [vmem:[%s35] sm:$0x1]
  %v1128 = vperm.slane %v1126, 0
  %v1132 = vunpack.c.l.b16 %v1124
  %v1133 = vunpack.c.l.b16 %v1125
  %v1134 = vpack.c.b16 %v1133, %v1132
  %v1137 = vsel %vm1075, %v1123, 0
  %1139 = vmatpush.bf16.msra.mxu0 0
  %1140 = vmatpush.bf16.msra.mxu0 0
  %1141 = vmatpush.bf16.msra.mxu0 0
  %1142 = vmatpush.bf16.msra.mxu0 0
  %1143 = vmatpush.bf16.msra.mxu0 0
  %1144 = vmatpush.bf16.msra.mxu0 0
  %1145 = vmatpush.bf16.msra.mxu0 0
  %1146 = vmatpush.bf16.msra.mxu0 %v1134
  %1147 = vmatmul.bf16.gmra.mxu0 %v1137
  %v1148 = vpop.f32.mrf.mxu0
  %v1149 = vadd.f32 %v1128, %v1148
  %v1150 = vpop.f32.mrf.mxu0
  %1151 = vdwg.mxu0
  %v1152 = vmax.f32 %v1149, 0.0
  %1154 = vrot.lane.b32.xlu0 %v1152, 8
  %v1155 = vpop.permute.xlu0 %1154
  %vm1157 = vcmask 64512
  %v1158 = vsel %vm1157, %v1122, %v1155
  %vm1159 = vcmask 195584
  %v1160 = vsel %vm1159, %v1158, 0.0
  %1161 = vst [vmem:[%s67] sm:$0xff] %v1160
  // Predicated region
  $region134: #{ple_forward.1} parent=0 // pred_check
    _
  $region135: #{ple_forward.1} parent=0 // pred_check_branch
    %1163 = sbr.rel (0) target = $region137
  $region136: #{ple_forward.1} parent=0 // pred_region
    _
  $region137: #{ple_forward.1} parent=0 // pred_fallthru
    _
  // Predicated region
  $region138: #{ple_forward.1} parent=0 // pred_check
    _
  $region139: #{ple_forward.1} parent=0 // pred_check_branch
    %1165 = sbr.rel (0) target = $region141
  $region140: #{ple_forward.1} parent=0 // pred_region
    _
  $region141: #{ple_forward.1} parent=0 // pred_fallthru
    _

</llo_original>
